<compile_context>
chip_gen: v6e
topology: v6e:2x2x1
jax: 0.10.0
libtpu: 0.0.40
codegen_flags: <defaults>
</compile_context>

<pallas_src>
import functools
import math

import jax
import jax.numpy as jnp
from jax.experimental import pallas as pl
from jax.experimental.pallas import tpu as pltpu


# --------------------------------------------------------------------------
# Fused inverted-residual Pallas kernel
# --------------------------------------------------------------------------

def _inverted_residual_kernel(x_ref, w1_ref, b1_ref, wd_ref, b2_ref,
                              w3_ref, b3_ref, o_ref, hpad_ref,
                              *, H, W, Ho, Wo, stride, use_res):
    """One whole inverted-residual block for a single image.

    x_ref    : (1, H*W, Cin)        input activation block
    w1_ref   : (Cin, hid)           expand weights (BN scale pre-folded)
    b1_ref   : (1, hid)             expand BN bias
    wd_ref   : (3, 3, hid)          depthwise weights (BN scale pre-folded)
    b2_ref   : (1, hid)             depthwise BN bias
    w3_ref   : (hid, Cout)          project weights (BN scale pre-folded)
    b3_ref   : (1, Cout)            project BN bias
    o_ref    : (1, Ho*Wo, Cout)     output block
    hpad_ref : (H+2, W+2, hid) f32  VMEM scratch: padded expanded activation
    """
    hid = w1_ref.shape[1]

    # ---- stage 1: expand 1x1 conv (MXU) + bias + ReLU6 ------------------
    x2d = x_ref[0]                                              # (H*W, Cin)
    h = jnp.dot(x2d, w1_ref[...], preferred_element_type=jnp.float32)
    h = jnp.clip(h + b1_ref[...], 0.0, 6.0)                     # (H*W, hid) f32

    # ---- stage 2: depthwise 3x3 (pad=1, stride=s) + bias + ReLU6 --------
    # Zero the whole padded scratch every step (keeps the halo correct even
    # when the grid is sharded across TensorCores), then write the interior.
    hpad_ref[...] = jnp.zeros_like(hpad_ref)
    hpad_ref[1:H + 1, 1:W + 1, :] = h.reshape(H, W, hid)

    wd = wd_ref[...]                                            # (3, 3, hid), tiny
    acc = jnp.zeros((Ho, Wo, hid), jnp.float32)
    for di in range(3):                    # static 3x3 tap loop (trace-time unrolled)
        for dj in range(3):
            if stride == 1:
                patch = hpad_ref[di:di + Ho, dj:dj + Wo, :]     # per-tap window load
            else:
                # stride-2 blocks (not exercised in the test below)
                patch = hpad_ref[di:di + stride * (Ho - 1) + 1,
                                 dj:dj + stride * (Wo - 1) + 1,
                                 :][::stride, ::stride, :]
            acc = acc + patch * wd[di, dj]
    d = jnp.clip(acc + b2_ref[...].reshape(1, 1, hid), 0.0, 6.0)  # (Ho, Wo, hid)

    # ---- stage 3: project 1x1 conv (MXU) + bias (+ residual) ------------
    y = jnp.dot(d.reshape(Ho * Wo, hid), w3_ref[...],
                preferred_element_type=jnp.float32)
    y = y + b3_ref[...]
    if use_res:
        # x tile is already resident in VMEM -- no HBM re-read for the residual.
        y = y + x2d
    o_ref[0] = y.astype(o_ref.dtype)


def _build_fused_block_call(N, H, W, Cin, hid, Cout, stride, use_res, dtype):
    Ho = (H + 2 - 3) // stride + 1
    Wo = (W + 2 - 3) // stride + 1
    kernel = functools.partial(_inverted_residual_kernel,
                               H=H, W=W, Ho=Ho, Wo=Wo,
                               stride=stride, use_res=use_res)
    call = pl.pallas_call(
        kernel,
        out_shape=jax.ShapeDtypeStruct((N, Ho * Wo, Cout), dtype),
        grid=(N,),                                    # pipelined over images
        in_specs=[
            pl.BlockSpec((1, H * W, Cin), lambda n: (n, 0, 0)),   # x (per image)
            pl.BlockSpec((Cin, hid), lambda n: (0, 0)),           # w1 * s1
            pl.BlockSpec((1, hid), lambda n: (0, 0)),             # b1
            pl.BlockSpec((3, 3, hid), lambda n: (0, 0, 0)),       # wd * s2
            pl.BlockSpec((1, hid), lambda n: (0, 0)),             # b2
            pl.BlockSpec((hid, Cout), lambda n: (0, 0)),          # w3 * s3
            pl.BlockSpec((1, Cout), lambda n: (0, 0)),            # b3
        ],
        out_specs=pl.BlockSpec((1, Ho * Wo, Cout), lambda n: (n, 0, 0)),
        scratch_shapes=[pltpu.VMEM((H + 2, W + 2, hid), jnp.float32)],
        compiler_params=pltpu.CompilerParams(
            dimension_semantics=("parallel",)),       # 2 TCs on v7x
    )
    return call, Ho, Wo


# --------------------------------------------------------------------------
# MobileBlock forward (glue in plain JAX, all heavy work inside Pallas)
# --------------------------------------------------------------------------

def inverted_residual_fwd(x_flat, p, H, W, stride, use_res):
    w1, s1, b1, wd, s2, b2, w3, s3, b3 = p
    Cin, hid = w1.shape
    Cout = w3.shape[1]
    N = x_flat.shape[0]
    # Fold eval-mode BN scale into the conv weights (kernel only adds bias).
    w1f = (w1 * s1).astype(jnp.float32)
    wdf = (wd * s2.reshape(1, 1, hid)).astype(jnp.float32)
    w3f = (w3 * s3).astype(jnp.float32)
    call, Ho, Wo = _build_fused_block_call(
        N, H, W, Cin, hid, Cout, stride, use_res, x_flat.dtype)
    out = call(x_flat, w1f, b1, wdf, b2, w3f, b3)
    return out, Ho, Wo


def mobile_block_fwd(x_nchw, block_params, block_meta):
    N, C, H, W = x_nchw.shape
    # NCHW -> NHWC -> (N, H*W, C): channels on the lane axis, contiguous blocks.
    x = jnp.transpose(x_nchw, (0, 2, 3, 1)).reshape(N, H * W, C)
    for p, (stride, use_res) in zip(block_params, block_meta):
        x, H, W = inverted_residual_fwd(x, p, H, W, stride, use_res)
    Cout = x.shape[-1]
    return jnp.transpose(x.reshape(N, H, W, Cout), (0, 3, 1, 2))


# --------------------------------------------------------------------------
# Deterministic parameter construction (eval-mode BN folded to scale/bias)
# --------------------------------------------------------------------------

def _bn_fold(key, C, eps=1e-5):
    k1, k2, k3, k4 = jax.random.split(key, 4)
    gamma = jax.random.uniform(k1, (C,), minval=0.5, maxval=1.5)
    beta = 0.1 * jax.random.normal(k2, (C,))
    mean = 0.1 * jax.random.normal(k3, (C,))
    var = jax.random.uniform(k4, (C,), minval=0.5, maxval=1.5)
    scale = gamma / jnp.sqrt(var + eps)
    bias = beta - mean * scale
    return (scale.reshape(1, C).astype(jnp.float32),
            bias.reshape(1, C).astype(jnp.float32))


def make_inverted_residual_params(key, inp, oup, expand_ratio):
    hid = inp * expand_ratio
    ks = jax.random.split(key, 6)
    # 1x1 expand: PyTorch weight (hid, inp, 1, 1) -> stored as (inp, hid)
    w1 = (jax.random.normal(ks[0], (inp, hid)) / math.sqrt(inp)).astype(jnp.float32)
    s1, b1 = _bn_fold(ks[1], hid)
    # depthwise 3x3: PyTorch weight (hid, 1, 3, 3) -> stored as (3, 3, hid)
    wd = (jax.random.normal(ks[2], (3, 3, hid)) / 3.0).astype(jnp.float32)
    s2, b2 = _bn_fold(ks[3], hid)
    # 1x1 project: PyTorch weight (oup, hid, 1, 1) -> stored as (hid, oup)
    w3 = (jax.random.normal(ks[4], (hid, oup)) / math.sqrt(hid)).astype(jnp.float32)
    s3, b3 = _bn_fold(ks[5], oup)
    return (w1, s1, b1, wd, s2, b2, w3, s3, b3)


def build_mobile_block(key, residual_setting, input_channel, output_channel):
    t, c, n, s = residual_setting
    params, meta = [], []
    inp = input_channel
    for i in range(n):
        stride = s if i == 0 else 1
        use_res = (stride == 1) and (inp == output_channel)
        key, sub = jax.random.split(key)
        params.append(make_inverted_residual_params(sub, inp, output_channel, t))
        meta.append((stride, use_res))
        inp = output_channel
    return params, meta


# --------------------------------------------------------------------------
# Pure-JAX reference (unfolded BN, for correctness check)
# --------------------------------------------------------------------------

def _ref_block(x, p, stride, use_res):
    w1, s1, b1, wd, s2, b2, w3, s3, b3 = p
    h = jnp.einsum('nhwc,cd->nhwd', x, w1) * s1.reshape(-1) + b1.reshape(-1)
    h = jnp.clip(h, 0.0, 6.0)
    C = h.shape[-1]
    d = jax.lax.conv_general_dilated(
        h, wd[:, :, None, :], window_strides=(stride, stride),
        padding=((1, 1), (1, 1)),
        dimension_numbers=('NHWC', 'HWIO', 'NHWC'),
        feature_group_count=C)
    d = jnp.clip(d * s2.reshape(-1) + b2.reshape(-1), 0.0, 6.0)
    o = jnp.einsum('nhwc,cd->nhwd', d, w3) * s3.reshape(-1) + b3.reshape(-1)
    if use_res:
        o = o + x
    return o


def mobile_block_ref(x_nchw, block_params, block_meta):
    x = jnp.transpose(x_nchw, (0, 2, 3, 1))
    for p, (stride, use_res) in zip(block_params, block_meta):
        x = _ref_block(x, p, stride, use_res)
    return jnp.transpose(x, (0, 3, 1, 2))


# --------------------------------------------------------------------------

if __name__ == "__main__":
    key = jax.random.PRNGKey(0)
    # residual_setting = (t, c, n, s)
    residual_setting = (2, 8, 2, 1)
    input_channel, output_channel = 4, 8
    N, H, W = 2, 16, 16

    key, kx, kp = jax.random.split(key, 3)
    x = jax.random.normal(kx, (N, input_channel, H, W), dtype=jnp.float32)

    block_params, block_meta = build_mobile_block(
        kp, residual_setting, input_channel, output_channel)

    fwd = jax.jit(lambda xx, pp: mobile_block_fwd(xx, pp, block_meta))
    out = jax.block_until_ready(fwd(x, block_params))

    ref = jax.block_until_ready(mobile_block_ref(x, block_params, block_meta))
    assert out.shape == (N, output_channel, H, W)
    assert jnp.allclose(out, ref, atol=1e-3, rtol=1e-3), "mismatch vs JAX reference"

    print("KERNEL_OK")
</pallas_src>

<mosaic_0001>
module attributes {stable_mosaic.version = 11 : i64} {
  func.func @_inverted_residual_kernel(%arg0: i32, %arg1: memref<1x256x8xf32, #tpu.memory_space<vmem>>, %arg2: memref<8x16xf32, #tpu.memory_space<vmem>>, %arg3: memref<1x16xf32, #tpu.memory_space<vmem>>, %arg4: memref<3x3x16xf32, #tpu.memory_space<vmem>>, %arg5: memref<1x16xf32, #tpu.memory_space<vmem>>, %arg6: memref<16x8xf32, #tpu.memory_space<vmem>>, %arg7: memref<1x8xf32, #tpu.memory_space<vmem>>, %arg8: memref<1x256x8xf32, #tpu.memory_space<vmem>>, %arg9: memref<18x18x16xf32, #tpu.memory_space<vmem>>) attributes {dimension_semantics = [#tpu.dimension_semantics<parallel>], iteration_bounds = array<i64: 2>, scalar_prefetch = 0 : i64, scratch_operands = 1 : i64, tpu.core_type = #tpu.core_type<tc>, window_params = [{transform_indices = @transform_0, window_bounds = array<i64: 1, 256, 8>}, {pipeline_mode = #tpu.pipeline_mode<synchronous>, transform_indices = @transform_1, window_bounds = array<i64: 8, 16>}, {pipeline_mode = #tpu.pipeline_mode<synchronous>, transform_indices = @transform_2, window_bounds = array<i64: 1, 16>}, {pipeline_mode = #tpu.pipeline_mode<synchronous>, transform_indices = @transform_3, window_bounds = array<i64: 3, 3, 16>}, {pipeline_mode = #tpu.pipeline_mode<synchronous>, transform_indices = @transform_4, window_bounds = array<i64: 1, 16>}, {pipeline_mode = #tpu.pipeline_mode<synchronous>, transform_indices = @transform_5, window_bounds = array<i64: 16, 8>}, {pipeline_mode = #tpu.pipeline_mode<synchronous>, transform_indices = @transform_6, window_bounds = array<i64: 1, 8>}, {transform_indices = @transform_7, window_bounds = array<i64: 1, 256, 8>}]} {
    %c0 = arith.constant 0 : index
    %c0_0 = arith.constant 0 : index
    %c0_1 = arith.constant 0 : index
    %0 = vector.load %arg1[%c0, %c0_0, %c0_1] : memref<1x256x8xf32, #tpu.memory_space<vmem>>, vector<1x256x8xf32>
    %1 = vector.shape_cast %0 : vector<1x256x8xf32> to vector<256x8xf32>
    %c0_2 = arith.constant 0 : index
    %c0_3 = arith.constant 0 : index
    %2 = vector.load %arg2[%c0_2, %c0_3] : memref<8x16xf32, #tpu.memory_space<vmem>>, vector<8x16xf32>
    %cst = arith.constant dense<0.000000e+00> : vector<256x16xf32>
    %3 = tpu.matmul %1, %2, %cst {dimension_numbers = #tpu.dot_dimension_numbers<[1], [0], [0], [1], [0, 0, 1, 1], [], []>} : vector<256x8xf32>, vector<8x16xf32>, vector<256x16xf32> -> vector<256x16xf32>
    %c0_4 = arith.constant 0 : index
    %c0_5 = arith.constant 0 : index
    %4 = vector.load %arg3[%c0_4, %c0_5] : memref<1x16xf32, #tpu.memory_space<vmem>>, vector<1x16xf32>
    %5 = vector.broadcast %4 : vector<1x16xf32> to vector<256x16xf32>
    %6 = arith.addf %3, %5 : vector<256x16xf32>
    %cst_6 = arith.constant 0.000000e+00 : f32
    %cst_7 = arith.constant 6.000000e+00 : f32
    %7 = vector.broadcast %cst_6 : f32 to vector<256x16xf32>
    %8 = arith.maximumf %7, %6 : vector<256x16xf32>
    %9 = vector.broadcast %cst_7 : f32 to vector<256x16xf32>
    %10 = arith.minimumf %9, %8 : vector<256x16xf32>
    %cst_8 = arith.constant 0.000000e+00 : f32
    %11 = vector.broadcast %cst_8 : f32 to vector<18x18x16xf32>
    %c0_9 = arith.constant 0 : index
    %c0_10 = arith.constant 0 : index
    %c0_11 = arith.constant 0 : index
    %12 = vector.load %arg9[%c0_9, %c0_10, %c0_11] : memref<18x18x16xf32, #tpu.memory_space<vmem>>, vector<18x18x16xf32>
    tpu.vector_store %arg9[%c0_9, %c0_10, %c0_11], %11 {strides = array<i32>} : memref<18x18x16xf32, #tpu.memory_space<vmem>>, vector<18x18x16xf32>,
    %13 = vector.shape_cast %10 : vector<256x16xf32> to vector<16x16x16xf32>
    %c1 = arith.constant 1 : index
    %c1_12 = arith.constant 1 : index
    %c0_13 = arith.constant 0 : index
    %14 = vector.load %arg9[%c1, %c1_12, %c0_13] : memref<18x18x16xf32, #tpu.memory_space<vmem>>, vector<16x16x16xf32>
    tpu.vector_store %arg9[%c1, %c1_12, %c0_13], %13 {strides = array<i32>} : memref<18x18x16xf32, #tpu.memory_space<vmem>>, vector<16x16x16xf32>,
    %c0_14 = arith.constant 0 : index
    %c0_15 = arith.constant 0 : index
    %c0_16 = arith.constant 0 : index
    %15 = vector.load %arg4[%c0_14, %c0_15, %c0_16] : memref<3x3x16xf32, #tpu.memory_space<vmem>>, vector<3x3x16xf32>
    %cst_17 = arith.constant 0.000000e+00 : f32
    %16 = vector.broadcast %cst_17 : f32 to vector<16x16x16xf32>
    %c0_18 = arith.constant 0 : index
    %c0_19 = arith.constant 0 : index
    %c0_20 = arith.constant 0 : index
    %17 = vector.load %arg9[%c0_18, %c0_19, %c0_20] : memref<18x18x16xf32, #tpu.memory_space<vmem>>, vector<16x16x16xf32>
    %18 = vector.extract_strided_slice %15 {offsets = [0, 0, 0], sizes = [1, 1, 16], strides = [1, 1, 1]} : vector<3x3x16xf32> to vector<1x1x16xf32>
    %19 = vector.shape_cast %18 : vector<1x1x16xf32> to vector<16xf32>
    %20 = vector.shape_cast %19 : vector<16xf32> to vector<1x1x16xf32>
    %21 = vector.broadcast %20 : vector<1x1x16xf32> to vector<16x16x16xf32>
    %22 = arith.mulf %17, %21 : vector<16x16x16xf32>
    %23 = arith.addf %16, %22 : vector<16x16x16xf32>
    %c0_21 = arith.constant 0 : index
    %c1_22 = arith.constant 1 : index
    %c0_23 = arith.constant 0 : index
    %24 = vector.load %arg9[%c0_21, %c1_22, %c0_23] : memref<18x18x16xf32, #tpu.memory_space<vmem>>, vector<16x16x16xf32>
    %25 = vector.extract_strided_slice %15 {offsets = [0, 1, 0], sizes = [1, 1, 16], strides = [1, 1, 1]} : vector<3x3x16xf32> to vector<1x1x16xf32>
    %26 = vector.shape_cast %25 : vector<1x1x16xf32> to vector<16xf32>
    %27 = vector.shape_cast %26 : vector<16xf32> to vector<1x1x16xf32>
    %28 = vector.broadcast %27 : vector<1x1x16xf32> to vector<16x16x16xf32>
    %29 = arith.mulf %24, %28 : vector<16x16x16xf32>
    %30 = arith.addf %23, %29 : vector<16x16x16xf32>
    %c0_24 = arith.constant 0 : index
    %c2 = arith.constant 2 : index
    %c0_25 = arith.constant 0 : index
    %31 = vector.load %arg9[%c0_24, %c2, %c0_25] : memref<18x18x16xf32, #tpu.memory_space<vmem>>, vector<16x16x16xf32>
    %32 = vector.extract_strided_slice %15 {offsets = [0, 2, 0], sizes = [1, 1, 16], strides = [1, 1, 1]} : vector<3x3x16xf32> to vector<1x1x16xf32>
    %33 = vector.shape_cast %32 : vector<1x1x16xf32> to vector<16xf32>
    %34 = vector.shape_cast %33 : vector<16xf32> to vector<1x1x16xf32>
    %35 = vector.broadcast %34 : vector<1x1x16xf32> to vector<16x16x16xf32>
    %36 = arith.mulf %31, %35 : vector<16x16x16xf32>
    %37 = arith.addf %30, %36 : vector<16x16x16xf32>
    %c1_26 = arith.constant 1 : index
    %c0_27 = arith.constant 0 : index
    %c0_28 = arith.constant 0 : index
    %38 = vector.load %arg9[%c1_26, %c0_27, %c0_28] : memref<18x18x16xf32, #tpu.memory_space<vmem>>, vector<16x16x16xf32>
    %39 = vector.extract_strided_slice %15 {offsets = [1, 0, 0], sizes = [1, 1, 16], strides = [1, 1, 1]} : vector<3x3x16xf32> to vector<1x1x16xf32>
    %40 = vector.shape_cast %39 : vector<1x1x16xf32> to vector<16xf32>
    %41 = vector.shape_cast %40 : vector<16xf32> to vector<1x1x16xf32>
    %42 = vector.broadcast %41 : vector<1x1x16xf32> to vector<16x16x16xf32>
    %43 = arith.mulf %38, %42 : vector<16x16x16xf32>
    %44 = arith.addf %37, %43 : vector<16x16x16xf32>
    %c1_29 = arith.constant 1 : index
    %c1_30 = arith.constant 1 : index
    %c0_31 = arith.constant 0 : index
    %45 = vector.load %arg9[%c1_29, %c1_30, %c0_31] : memref<18x18x16xf32, #tpu.memory_space<vmem>>, vector<16x16x16xf32>
    %46 = vector.extract_strided_slice %15 {offsets = [1, 1, 0], sizes = [1, 1, 16], strides = [1, 1, 1]} : vector<3x3x16xf32> to vector<1x1x16xf32>
    %47 = vector.shape_cast %46 : vector<1x1x16xf32> to vector<16xf32>
    %48 = vector.shape_cast %47 : vector<16xf32> to vector<1x1x16xf32>
    %49 = vector.broadcast %48 : vector<1x1x16xf32> to vector<16x16x16xf32>
    %50 = arith.mulf %45, %49 : vector<16x16x16xf32>
    %51 = arith.addf %44, %50 : vector<16x16x16xf32>
    %c1_32 = arith.constant 1 : index
    %c2_33 = arith.constant 2 : index
    %c0_34 = arith.constant 0 : index
    %52 = vector.load %arg9[%c1_32, %c2_33, %c0_34] : memref<18x18x16xf32, #tpu.memory_space<vmem>>, vector<16x16x16xf32>
    %53 = vector.extract_strided_slice %15 {offsets = [1, 2, 0], sizes = [1, 1, 16], strides = [1, 1, 1]} : vector<3x3x16xf32> to vector<1x1x16xf32>
    %54 = vector.shape_cast %53 : vector<1x1x16xf32> to vector<16xf32>
    %55 = vector.shape_cast %54 : vector<16xf32> to vector<1x1x16xf32>
    %56 = vector.broadcast %55 : vector<1x1x16xf32> to vector<16x16x16xf32>
    %57 = arith.mulf %52, %56 : vector<16x16x16xf32>
    %58 = arith.addf %51, %57 : vector<16x16x16xf32>
    %c2_35 = arith.constant 2 : index
    %c0_36 = arith.constant 0 : index
    %c0_37 = arith.constant 0 : index
    %59 = vector.load %arg9[%c2_35, %c0_36, %c0_37] : memref<18x18x16xf32, #tpu.memory_space<vmem>>, vector<16x16x16xf32>
    %60 = vector.extract_strided_slice %15 {offsets = [2, 0, 0], sizes = [1, 1, 16], strides = [1, 1, 1]} : vector<3x3x16xf32> to vector<1x1x16xf32>
    %61 = vector.shape_cast %60 : vector<1x1x16xf32> to vector<16xf32>
    %62 = vector.shape_cast %61 : vector<16xf32> to vector<1x1x16xf32>
    %63 = vector.broadcast %62 : vector<1x1x16xf32> to vector<16x16x16xf32>
    %64 = arith.mulf %59, %63 : vector<16x16x16xf32>
    %65 = arith.addf %58, %64 : vector<16x16x16xf32>
    %c2_38 = arith.constant 2 : index
    %c1_39 = arith.constant 1 : index
    %c0_40 = arith.constant 0 : index
    %66 = vector.load %arg9[%c2_38, %c1_39, %c0_40] : memref<18x18x16xf32, #tpu.memory_space<vmem>>, vector<16x16x16xf32>
    %67 = vector.extract_strided_slice %15 {offsets = [2, 1, 0], sizes = [1, 1, 16], strides = [1, 1, 1]} : vector<3x3x16xf32> to vector<1x1x16xf32>
    %68 = vector.shape_cast %67 : vector<1x1x16xf32> to vector<16xf32>
    %69 = vector.shape_cast %68 : vector<16xf32> to vector<1x1x16xf32>
    %70 = vector.broadcast %69 : vector<1x1x16xf32> to vector<16x16x16xf32>
    %71 = arith.mulf %66, %70 : vector<16x16x16xf32>
    %72 = arith.addf %65, %71 : vector<16x16x16xf32>
    %c2_41 = arith.constant 2 : index
    %c2_42 = arith.constant 2 : index
    %c0_43 = arith.constant 0 : index
    %73 = vector.load %arg9[%c2_41, %c2_42, %c0_43] : memref<18x18x16xf32, #tpu.memory_space<vmem>>, vector<16x16x16xf32>
    %74 = vector.extract_strided_slice %15 {offsets = [2, 2, 0], sizes = [1, 1, 16], strides = [1, 1, 1]} : vector<3x3x16xf32> to vector<1x1x16xf32>
    %75 = vector.shape_cast %74 : vector<1x1x16xf32> to vector<16xf32>
    %76 = vector.shape_cast %75 : vector<16xf32> to vector<1x1x16xf32>
    %77 = vector.broadcast %76 : vector<1x1x16xf32> to vector<16x16x16xf32>
    %78 = arith.mulf %73, %77 : vector<16x16x16xf32>
    %79 = arith.addf %72, %78 : vector<16x16x16xf32>
    %c0_44 = arith.constant 0 : index
    %c0_45 = arith.constant 0 : index
    %80 = vector.load %arg5[%c0_44, %c0_45] : memref<1x16xf32, #tpu.memory_space<vmem>>, vector<1x16xf32>
    %81 = vector.shape_cast %80 : vector<1x16xf32> to vector<1x1x16xf32>
    %82 = vector.broadcast %81 : vector<1x1x16xf32> to vector<16x16x16xf32>
    %83 = arith.addf %79, %82 : vector<16x16x16xf32>
    %cst_46 = arith.constant 0.000000e+00 : f32
    %cst_47 = arith.constant 6.000000e+00 : f32
    %84 = vector.broadcast %cst_46 : f32 to vector<16x16x16xf32>
    %85 = arith.maximumf %84, %83 : vector<16x16x16xf32>
    %86 = vector.broadcast %cst_47 : f32 to vector<16x16x16xf32>
    %87 = arith.minimumf %86, %85 : vector<16x16x16xf32>
    %88 = vector.shape_cast %87 : vector<16x16x16xf32> to vector<256x16xf32>
    %c0_48 = arith.constant 0 : index
    %c0_49 = arith.constant 0 : index
    %89 = vector.load %arg6[%c0_48, %c0_49] : memref<16x8xf32, #tpu.memory_space<vmem>>, vector<16x8xf32>
    %cst_50 = arith.constant dense<0.000000e+00> : vector<256x8xf32>
    %90 = tpu.matmul %88, %89, %cst_50 {dimension_numbers = #tpu.dot_dimension_numbers<[1], [0], [0], [1], [0, 0, 1, 1], [], []>} : vector<256x16xf32>, vector<16x8xf32>, vector<256x8xf32> -> vector<256x8xf32>
    %c0_51 = arith.constant 0 : index
    %c0_52 = arith.constant 0 : index
    %91 = vector.load %arg7[%c0_51, %c0_52] : memref<1x8xf32, #tpu.memory_space<vmem>>, vector<1x8xf32>
    %92 = vector.broadcast %91 : vector<1x8xf32> to vector<256x8xf32>
    %93 = arith.addf %90, %92 : vector<256x8xf32>
    %94 = arith.addf %93, %1 : vector<256x8xf32>
    %c0_53 = arith.constant 0 : index
    %c0_54 = arith.constant 0 : index
    %c0_55 = arith.constant 0 : index
    %95 = vector.load %arg8[%c0_53, %c0_54, %c0_55] : memref<1x256x8xf32, #tpu.memory_space<vmem>>, vector<1x256x8xf32>
    %96 = vector.shape_cast %95 : vector<1x256x8xf32> to vector<256x8xf32>
    %97 = vector.shape_cast %94 : vector<256x8xf32> to vector<1x256x8xf32>
    tpu.vector_store %arg8[%c0_53, %c0_54, %c0_55], %97 {strides = array<i32>} : memref<1x256x8xf32, #tpu.memory_space<vmem>>, vector<1x256x8xf32>,
    return
  }
  func.func @transform_0(%arg0: i32) -> (i32, i32, i32) {
    %c0_i32 = arith.constant 0 : i32
    %c0_i32_0 = arith.constant 0 : i32
    %c0_i32_1 = arith.constant 0 : i32
    return %arg0, %c0_i32, %c0_i32_0 : i32, i32, i32
  }
  func.func @transform_1(%arg0: i32) -> (i32, i32) {
    %c0_i32 = arith.constant 0 : i32
    %c0_i32_0 = arith.constant 0 : i32
    %c0_i32_1 = arith.constant 0 : i32
    return %c0_i32, %c0_i32_0 : i32, i32
  }
  func.func @transform_2(%arg0: i32) -> (i32, i32) {
    %c0_i32 = arith.constant 0 : i32
    %c0_i32_0 = arith.constant 0 : i32
    %c0_i32_1 = arith.constant 0 : i32
    return %c0_i32, %c0_i32_0 : i32, i32
  }
  func.func @transform_3(%arg0: i32) -> (i32, i32, i32) {
    %c0_i32 = arith.constant 0 : i32
    %c0_i32_0 = arith.constant 0 : i32
    %c0_i32_1 = arith.constant 0 : i32
    %c0_i32_2 = arith.constant 0 : i32
    return %c0_i32, %c0_i32_0, %c0_i32_1 : i32, i32, i32
  }
  func.func @transform_4(%arg0: i32) -> (i32, i32) {
    %c0_i32 = arith.constant 0 : i32
    %c0_i32_0 = arith.constant 0 : i32
    %c0_i32_1 = arith.constant 0 : i32
    return %c0_i32, %c0_i32_0 : i32, i32
  }
  func.func @transform_5(%arg0: i32) -> (i32, i32) {
    %c0_i32 = arith.constant 0 : i32
    %c0_i32_0 = arith.constant 0 : i32
    %c0_i32_1 = arith.constant 0 : i32
    return %c0_i32, %c0_i32_0 : i32, i32
  }
  func.func @transform_6(%arg0: i32) -> (i32, i32) {
    %c0_i32 = arith.constant 0 : i32
    %c0_i32_0 = arith.constant 0 : i32
    %c0_i32_1 = arith.constant 0 : i32
    return %c0_i32, %c0_i32_0 : i32, i32
  }
  func.func @transform_7(%arg0: i32) -> (i32, i32, i32) {
    %c0_i32 = arith.constant 0 : i32
    %c0_i32_0 = arith.constant 0 : i32
    %c0_i32_1 = arith.constant 0 : i32
    return %arg0, %c0_i32, %c0_i32_0 : i32, i32, i32
  }
}

module attributes {stable_mosaic.version = 11 : i64} {
  func.func @_inverted_residual_kernel(%arg0: i32, %arg1: memref<1x256x4xf32, #tpu.memory_space<vmem>>, %arg2: memref<4x8xf32, #tpu.memory_space<vmem>>, %arg3: memref<1x8xf32, #tpu.memory_space<vmem>>, %arg4: memref<3x3x8xf32, #tpu.memory_space<vmem>>, %arg5: memref<1x8xf32, #tpu.memory_space<vmem>>, %arg6: memref<8x8xf32, #tpu.memory_space<vmem>>, %arg7: memref<1x8xf32, #tpu.memory_space<vmem>>, %arg8: memref<1x256x8xf32, #tpu.memory_space<vmem>>, %arg9: memref<18x18x8xf32, #tpu.memory_space<vmem>>) attributes {dimension_semantics = [#tpu.dimension_semantics<parallel>], iteration_bounds = array<i64: 2>, scalar_prefetch = 0 : i64, scratch_operands = 1 : i64, tpu.core_type = #tpu.core_type<tc>, window_params = [{transform_indices = @transform_0, window_bounds = array<i64: 1, 256, 4>}, {pipeline_mode = #tpu.pipeline_mode<synchronous>, transform_indices = @transform_1, window_bounds = array<i64: 4, 8>}, {pipeline_mode = #tpu.pipeline_mode<synchronous>, transform_indices = @transform_2, window_bounds = array<i64: 1, 8>}, {pipeline_mode = #tpu.pipeline_mode<synchronous>, transform_indices = @transform_3, window_bounds = array<i64: 3, 3, 8>}, {pipeline_mode = #tpu.pipeline_mode<synchronous>, transform_indices = @transform_4, window_bounds = array<i64: 1, 8>}, {pipeline_mode = #tpu.pipeline_mode<synchronous>, transform_indices = @transform_5, window_bounds = array<i64: 8, 8>}, {pipeline_mode = #tpu.pipeline_mode<synchronous>, transform_indices = @transform_6, window_bounds = array<i64: 1, 8>}, {transform_indices = @transform_7, window_bounds = array<i64: 1, 256, 8>}]} {
    %c0 = arith.constant 0 : index
    %c0_0 = arith.constant 0 : index
    %c0_1 = arith.constant 0 : index
    %0 = vector.load %arg1[%c0, %c0_0, %c0_1] : memref<1x256x4xf32, #tpu.memory_space<vmem>>, vector<1x256x4xf32>
    %1 = vector.shape_cast %0 : vector<1x256x4xf32> to vector<256x4xf32>
    %c0_2 = arith.constant 0 : index
    %c0_3 = arith.constant 0 : index
    %2 = vector.load %arg2[%c0_2, %c0_3] : memref<4x8xf32, #tpu.memory_space<vmem>>, vector<4x8xf32>
    %cst = arith.constant dense<0.000000e+00> : vector<256x8xf32>
    %3 = tpu.matmul %1, %2, %cst {dimension_numbers = #tpu.dot_dimension_numbers<[1], [0], [0], [1], [0, 0, 1, 1], [], []>} : vector<256x4xf32>, vector<4x8xf32>, vector<256x8xf32> -> vector<256x8xf32>
    %c0_4 = arith.constant 0 : index
    %c0_5 = arith.constant 0 : index
    %4 = vector.load %arg3[%c0_4, %c0_5] : memref<1x8xf32, #tpu.memory_space<vmem>>, vector<1x8xf32>
    %5 = vector.broadcast %4 : vector<1x8xf32> to vector<256x8xf32>
    %6 = arith.addf %3, %5 : vector<256x8xf32>
    %cst_6 = arith.constant 0.000000e+00 : f32
    %cst_7 = arith.constant 6.000000e+00 : f32
    %7 = vector.broadcast %cst_6 : f32 to vector<256x8xf32>
    %8 = arith.maximumf %7, %6 : vector<256x8xf32>
    %9 = vector.broadcast %cst_7 : f32 to vector<256x8xf32>
    %10 = arith.minimumf %9, %8 : vector<256x8xf32>
    %cst_8 = arith.constant 0.000000e+00 : f32
    %11 = vector.broadcast %cst_8 : f32 to vector<18x18x8xf32>
    %c0_9 = arith.constant 0 : index
    %c0_10 = arith.constant 0 : index
    %c0_11 = arith.constant 0 : index
    %12 = vector.load %arg9[%c0_9, %c0_10, %c0_11] : memref<18x18x8xf32, #tpu.memory_space<vmem>>, vector<18x18x8xf32>
    tpu.vector_store %arg9[%c0_9, %c0_10, %c0_11], %11 {strides = array<i32>} : memref<18x18x8xf32, #tpu.memory_space<vmem>>, vector<18x18x8xf32>,
    %13 = vector.shape_cast %10 : vector<256x8xf32> to vector<16x16x8xf32>
    %c1 = arith.constant 1 : index
    %c1_12 = arith.constant 1 : index
    %c0_13 = arith.constant 0 : index
    %14 = vector.load %arg9[%c1, %c1_12, %c0_13] : memref<18x18x8xf32, #tpu.memory_space<vmem>>, vector<16x16x8xf32>
    tpu.vector_store %arg9[%c1, %c1_12, %c0_13], %13 {strides = array<i32>} : memref<18x18x8xf32, #tpu.memory_space<vmem>>, vector<16x16x8xf32>,
    %c0_14 = arith.constant 0 : index
    %c0_15 = arith.constant 0 : index
    %c0_16 = arith.constant 0 : index
    %15 = vector.load %arg4[%c0_14, %c0_15, %c0_16] : memref<3x3x8xf32, #tpu.memory_space<vmem>>, vector<3x3x8xf32>
    %cst_17 = arith.constant 0.000000e+00 : f32
    %16 = vector.broadcast %cst_17 : f32 to vector<16x16x8xf32>
    %c0_18 = arith.constant 0 : index
    %c0_19 = arith.constant 0 : index
    %c0_20 = arith.constant 0 : index
    %17 = vector.load %arg9[%c0_18, %c0_19, %c0_20] : memref<18x18x8xf32, #tpu.memory_space<vmem>>, vector<16x16x8xf32>
    %18 = vector.extract_strided_slice %15 {offsets = [0, 0, 0], sizes = [1, 1, 8], strides = [1, 1, 1]} : vector<3x3x8xf32> to vector<1x1x8xf32>
    %19 = vector.shape_cast %18 : vector<1x1x8xf32> to vector<8xf32>
    %20 = vector.shape_cast %19 : vector<8xf32> to vector<1x1x8xf32>
    %21 = vector.broadcast %20 : vector<1x1x8xf32> to vector<16x16x8xf32>
    %22 = arith.mulf %17, %21 : vector<16x16x8xf32>
    %23 = arith.addf %16, %22 : vector<16x16x8xf32>
    %c0_21 = arith.constant 0 : index
    %c1_22 = arith.constant 1 : index
    %c0_23 = arith.constant 0 : index
    %24 = vector.load %arg9[%c0_21, %c1_22, %c0_23] : memref<18x18x8xf32, #tpu.memory_space<vmem>>, vector<16x16x8xf32>
    %25 = vector.extract_strided_slice %15 {offsets = [0, 1, 0], sizes = [1, 1, 8], strides = [1, 1, 1]} : vector<3x3x8xf32> to vector<1x1x8xf32>
    %26 = vector.shape_cast %25 : vector<1x1x8xf32> to vector<8xf32>
    %27 = vector.shape_cast %26 : vector<8xf32> to vector<1x1x8xf32>
    %28 = vector.broadcast %27 : vector<1x1x8xf32> to vector<16x16x8xf32>
    %29 = arith.mulf %24, %28 : vector<16x16x8xf32>
    %30 = arith.addf %23, %29 : vector<16x16x8xf32>
    %c0_24 = arith.constant 0 : index
    %c2 = arith.constant 2 : index
    %c0_25 = arith.constant 0 : index
    %31 = vector.load %arg9[%c0_24, %c2, %c0_25] : memref<18x18x8xf32, #tpu.memory_space<vmem>>, vector<16x16x8xf32>
    %32 = vector.extract_strided_slice %15 {offsets = [0, 2, 0], sizes = [1, 1, 8], strides = [1, 1, 1]} : vector<3x3x8xf32> to vector<1x1x8xf32>
    %33 = vector.shape_cast %32 : vector<1x1x8xf32> to vector<8xf32>
    %34 = vector.shape_cast %33 : vector<8xf32> to vector<1x1x8xf32>
    %35 = vector.broadcast %34 : vector<1x1x8xf32> to vector<16x16x8xf32>
    %36 = arith.mulf %31, %35 : vector<16x16x8xf32>
    %37 = arith.addf %30, %36 : vector<16x16x8xf32>
    %c1_26 = arith.constant 1 : index
    %c0_27 = arith.constant 0 : index
    %c0_28 = arith.constant 0 : index
    %38 = vector.load %arg9[%c1_26, %c0_27, %c0_28] : memref<18x18x8xf32, #tpu.memory_space<vmem>>, vector<16x16x8xf32>
    %39 = vector.extract_strided_slice %15 {offsets = [1, 0, 0], sizes = [1, 1, 8], strides = [1, 1, 1]} : vector<3x3x8xf32> to vector<1x1x8xf32>
    %40 = vector.shape_cast %39 : vector<1x1x8xf32> to vector<8xf32>
    %41 = vector.shape_cast %40 : vector<8xf32> to vector<1x1x8xf32>
    %42 = vector.broadcast %41 : vector<1x1x8xf32> to vector<16x16x8xf32>
    %43 = arith.mulf %38, %42 : vector<16x16x8xf32>
    %44 = arith.addf %37, %43 : vector<16x16x8xf32>
    %c1_29 = arith.constant 1 : index
    %c1_30 = arith.constant 1 : index
    %c0_31 = arith.constant 0 : index
    %45 = vector.load %arg9[%c1_29, %c1_30, %c0_31] : memref<18x18x8xf32, #tpu.memory_space<vmem>>, vector<16x16x8xf32>
    %46 = vector.extract_strided_slice %15 {offsets = [1, 1, 0], sizes = [1, 1, 8], strides = [1, 1, 1]} : vector<3x3x8xf32> to vector<1x1x8xf32>
    %47 = vector.shape_cast %46 : vector<1x1x8xf32> to vector<8xf32>
    %48 = vector.shape_cast %47 : vector<8xf32> to vector<1x1x8xf32>
    %49 = vector.broadcast %48 : vector<1x1x8xf32> to vector<16x16x8xf32>
    %50 = arith.mulf %45, %49 : vector<16x16x8xf32>
    %51 = arith.addf %44, %50 : vector<16x16x8xf32>
    %c1_32 = arith.constant 1 : index
    %c2_33 = arith.constant 2 : index
    %c0_34 = arith.constant 0 : index
    %52 = vector.load %arg9[%c1_32, %c2_33, %c0_34] : memref<18x18x8xf32, #tpu.memory_space<vmem>>, vector<16x16x8xf32>
    %53 = vector.extract_strided_slice %15 {offsets = [1, 2, 0], sizes = [1, 1, 8], strides = [1, 1, 1]} : vector<3x3x8xf32> to vector<1x1x8xf32>
    %54 = vector.shape_cast %53 : vector<1x1x8xf32> to vector<8xf32>
    %55 = vector.shape_cast %54 : vector<8xf32> to vector<1x1x8xf32>
    %56 = vector.broadcast %55 : vector<1x1x8xf32> to vector<16x16x8xf32>
    %57 = arith.mulf %52, %56 : vector<16x16x8xf32>
    %58 = arith.addf %51, %57 : vector<16x16x8xf32>
    %c2_35 = arith.constant 2 : index
    %c0_36 = arith.constant 0 : index
    %c0_37 = arith.constant 0 : index
    %59 = vector.load %arg9[%c2_35, %c0_36, %c0_37] : memref<18x18x8xf32, #tpu.memory_space<vmem>>, vector<16x16x8xf32>
    %60 = vector.extract_strided_slice %15 {offsets = [2, 0, 0], sizes = [1, 1, 8], strides = [1, 1, 1]} : vector<3x3x8xf32> to vector<1x1x8xf32>
    %61 = vector.shape_cast %60 : vector<1x1x8xf32> to vector<8xf32>
    %62 = vector.shape_cast %61 : vector<8xf32> to vector<1x1x8xf32>
    %63 = vector.broadcast %62 : vector<1x1x8xf32> to vector<16x16x8xf32>
    %64 = arith.mulf %59, %63 : vector<16x16x8xf32>
    %65 = arith.addf %58, %64 : vector<16x16x8xf32>
    %c2_38 = arith.constant 2 : index
    %c1_39 = arith.constant 1 : index
    %c0_40 = arith.constant 0 : index
    %66 = vector.load %arg9[%c2_38, %c1_39, %c0_40] : memref<18x18x8xf32, #tpu.memory_space<vmem>>, vector<16x16x8xf32>
    %67 = vector.extract_strided_slice %15 {offsets = [2, 1, 0], sizes = [1, 1, 8], strides = [1, 1, 1]} : vector<3x3x8xf32> to vector<1x1x8xf32>
    %68 = vector.shape_cast %67 : vector<1x1x8xf32> to vector<8xf32>
    %69 = vector.shape_cast %68 : vector<8xf32> to vector<1x1x8xf32>
    %70 = vector.broadcast %69 : vector<1x1x8xf32> to vector<16x16x8xf32>
    %71 = arith.mulf %66, %70 : vector<16x16x8xf32>
    %72 = arith.addf %65, %71 : vector<16x16x8xf32>
    %c2_41 = arith.constant 2 : index
    %c2_42 = arith.constant 2 : index
    %c0_43 = arith.constant 0 : index
    %73 = vector.load %arg9[%c2_41, %c2_42, %c0_43] : memref<18x18x8xf32, #tpu.memory_space<vmem>>, vector<16x16x8xf32>
    %74 = vector.extract_strided_slice %15 {offsets = [2, 2, 0], sizes = [1, 1, 8], strides = [1, 1, 1]} : vector<3x3x8xf32> to vector<1x1x8xf32>
    %75 = vector.shape_cast %74 : vector<1x1x8xf32> to vector<8xf32>
    %76 = vector.shape_cast %75 : vector<8xf32> to vector<1x1x8xf32>
    %77 = vector.broadcast %76 : vector<1x1x8xf32> to vector<16x16x8xf32>
    %78 = arith.mulf %73, %77 : vector<16x16x8xf32>
    %79 = arith.addf %72, %78 : vector<16x16x8xf32>
    %c0_44 = arith.constant 0 : index
    %c0_45 = arith.constant 0 : index
    %80 = vector.load %arg5[%c0_44, %c0_45] : memref<1x8xf32, #tpu.memory_space<vmem>>, vector<1x8xf32>
    %81 = vector.shape_cast %80 : vector<1x8xf32> to vector<1x1x8xf32>
    %82 = vector.broadcast %81 : vector<1x1x8xf32> to vector<16x16x8xf32>
    %83 = arith.addf %79, %82 : vector<16x16x8xf32>
    %cst_46 = arith.constant 0.000000e+00 : f32
    %cst_47 = arith.constant 6.000000e+00 : f32
    %84 = vector.broadcast %cst_46 : f32 to vector<16x16x8xf32>
    %85 = arith.maximumf %84, %83 : vector<16x16x8xf32>
    %86 = vector.broadcast %cst_47 : f32 to vector<16x16x8xf32>
    %87 = arith.minimumf %86, %85 : vector<16x16x8xf32>
    %88 = vector.shape_cast %87 : vector<16x16x8xf32> to vector<256x8xf32>
    %c0_48 = arith.constant 0 : index
    %c0_49 = arith.constant 0 : index
    %89 = vector.load %arg6[%c0_48, %c0_49] : memref<8x8xf32, #tpu.memory_space<vmem>>, vector<8x8xf32>
    %cst_50 = arith.constant dense<0.000000e+00> : vector<256x8xf32>
    %90 = tpu.matmul %88, %89, %cst_50 {dimension_numbers = #tpu.dot_dimension_numbers<[1], [0], [0], [1], [0, 0, 1, 1], [], []>} : vector<256x8xf32>, vector<8x8xf32>, vector<256x8xf32> -> vector<256x8xf32>
    %c0_51 = arith.constant 0 : index
    %c0_52 = arith.constant 0 : index
    %91 = vector.load %arg7[%c0_51, %c0_52] : memref<1x8xf32, #tpu.memory_space<vmem>>, vector<1x8xf32>
    %92 = vector.broadcast %91 : vector<1x8xf32> to vector<256x8xf32>
    %93 = arith.addf %90, %92 : vector<256x8xf32>
    %c0_53 = arith.constant 0 : index
    %c0_54 = arith.constant 0 : index
    %c0_55 = arith.constant 0 : index
    %94 = vector.load %arg8[%c0_53, %c0_54, %c0_55] : memref<1x256x8xf32, #tpu.memory_space<vmem>>, vector<1x256x8xf32>
    %95 = vector.shape_cast %94 : vector<1x256x8xf32> to vector<256x8xf32>
    %96 = vector.shape_cast %93 : vector<256x8xf32> to vector<1x256x8xf32>
    tpu.vector_store %arg8[%c0_53, %c0_54, %c0_55], %96 {strides = array<i32>} : memref<1x256x8xf32, #tpu.memory_space<vmem>>, vector<1x256x8xf32>,
    return
  }
  func.func @transform_0(%arg0: i32) -> (i32, i32, i32) {
    %c0_i32 = arith.constant 0 : i32
    %c0_i32_0 = arith.constant 0 : i32
    %c0_i32_1 = arith.constant 0 : i32
    return %arg0, %c0_i32, %c0_i32_0 : i32, i32, i32
  }
  func.func @transform_1(%arg0: i32) -> (i32, i32) {
    %c0_i32 = arith.constant 0 : i32
    %c0_i32_0 = arith.constant 0 : i32
    %c0_i32_1 = arith.constant 0 : i32
    return %c0_i32, %c0_i32_0 : i32, i32
  }
  func.func @transform_2(%arg0: i32) -> (i32, i32) {
    %c0_i32 = arith.constant 0 : i32
    %c0_i32_0 = arith.constant 0 : i32
    %c0_i32_1 = arith.constant 0 : i32
    return %c0_i32, %c0_i32_0 : i32, i32
  }
  func.func @transform_3(%arg0: i32) -> (i32, i32, i32) {
    %c0_i32 = arith.constant 0 : i32
    %c0_i32_0 = arith.constant 0 : i32
    %c0_i32_1 = arith.constant 0 : i32
    %c0_i32_2 = arith.constant 0 : i32
    return %c0_i32, %c0_i32_0, %c0_i32_1 : i32, i32, i32
  }
  func.func @transform_4(%arg0: i32) -> (i32, i32) {
    %c0_i32 = arith.constant 0 : i32
    %c0_i32_0 = arith.constant 0 : i32
    %c0_i32_1 = arith.constant 0 : i32
    return %c0_i32, %c0_i32_0 : i32, i32
  }
  func.func @transform_5(%arg0: i32) -> (i32, i32) {
    %c0_i32 = arith.constant 0 : i32
    %c0_i32_0 = arith.constant 0 : i32
    %c0_i32_1 = arith.constant 0 : i32
    return %c0_i32, %c0_i32_0 : i32, i32
  }
  func.func @transform_6(%arg0: i32) -> (i32, i32) {
    %c0_i32 = arith.constant 0 : i32
    %c0_i32_0 = arith.constant 0 : i32
    %c0_i32_1 = arith.constant 0 : i32
    return %c0_i32, %c0_i32_0 : i32, i32
  }
  func.func @transform_7(%arg0: i32) -> (i32, i32, i32) {
    %c0_i32 = arith.constant 0 : i32
    %c0_i32_0 = arith.constant 0 : i32
    %c0_i32_1 = arith.constant 0 : i32
    return %arg0, %c0_i32, %c0_i32_0 : i32, i32, i32
  }
}

</mosaic_0001>

<llo_original>
// kernel: _lambda_.3
$region0: #{_lambda_.3}
  #allocation0 [shape = 'u32[]', space=smem, size = 0x4, offset = 0x4, fixed_abs, tag = 'smem constant byte address 0x4 - core index']
  #allocation1 [shape = 'u32[144,128]{1,0:T(1,128)}', space=vmem, size = 0x12000, scoped, tag = 'internal scratch']
  #allocation2 [shape = 'f32[18,18,16]{2,1,0:T(8,128)}', space=vmem, size = 0x36000, scoped, tag = 'scratch operand']
  %s0 = inlined_call_operand.vmem [shape: f32[2,256,8], index: 0, kind: input, shape index: {}]
  %s1 = inlined_call_operand.vmem [shape: f32[8,16], index: 1, kind: input, shape index: {}]
  %s2 = inlined_call_operand.vmem [shape: f32[1,16], index: 2, kind: input, shape index: {}]
  %s3 = inlined_call_operand.vmem [shape: f32[3,3,16], index: 3, kind: input, shape index: {}]
  %s4 = inlined_call_operand.vmem [shape: f32[1,16], index: 4, kind: input, shape index: {}]
  %s5 = inlined_call_operand.vmem [shape: f32[16,8], index: 5, kind: input, shape index: {}]
  %s6 = inlined_call_operand.vmem [shape: f32[1,8], index: 6, kind: input, shape index: {}]
  %s7 = inlined_call_operand.vmem [shape: f32[2,256,8], index: 7, kind: output, shape index: {}]
  %s8 = sld [smem:[#allocation0]]
  $region61: #{_lambda_.3} parent=0
    _
  %s10 = ssub.s32 1, %s8
  %s11 = scalar_select 0, %s10, %s8
  loop: start=0, step=1, limit=4
  $region2: #{_lambda_.3} parent=0 // loop_pre_header
    _
  $region3: #{_lambda_.3} parent=0 // loop_header
    %s13 = sphi 0, %s17
    %p14 = scmp.ge.s32.totalorder %s13, 4
    %s23 = sphi 0, %s25
    %s26 = sphi 0, %s23
    %s27 = sphi 0, %s26
    %s43 = sphi 0, %s27
    %s47 = sphi 0, %s47
    %s49 = sphi 0, %s47
    %s50 = sphi 0, %s49
    %s64 = sphi 0, %s50
    %s68 = sphi 0, %s68
    %s70 = sphi 0, %s68
    %s71 = sphi 0, %s70
    %s85 = sphi 0, %s71
    %s89 = sphi 0, %s89
    %s91 = sphi 0, %s89
    %s92 = sphi 0, %s91
    %s106 = sphi 0, %s92
    %s110 = sphi 0, %s110
    %s112 = sphi 0, %s110
    %s113 = sphi 0, %s112
    %s127 = sphi 0, %s113
    %s131 = sphi 0, %s131
    %s133 = sphi 0, %s131
    %s134 = sphi 0, %s133
    %s148 = sphi 0, %s134
    %s152 = sphi 0, %s152
    %s154 = sphi 0, %s152
    %s155 = sphi 0, %s154
    %s169 = sphi 0, %s155
    %s175 = sphi 0, %s177
    %s178 = sphi 0, %s175
    %s179 = sphi 0, %s178
    %s195 = sphi 0, %s179
  $region4: #{_lambda_.3} parent=0 // loop_header_branch
    %16 = sbr.rel (%p14) target = $region8
  $region5: #{_lambda_.3} parent=0 // loop_body
    %s18 = ssub.s32 %s13, 1
    %s19 = ssub.s32 %s13, 2
    %s20 = sadd.s32 %s13, 1
    %s21 = ssub.s32 %s13, %s20
    %p22 = scmp.eq.s32.totalorder %s21, 0
    %s24 = sadd.s32 %s23, 1
    %s25 = scalar_select %p22, %s23, %s24
    %p28 = pneg %p22
    %p29 = scmp.eq.s32.totalorder %s13, 1
    %p30 = por %p28, %p29
    %p31 = scmp.ne.s32.totalorder %s23, %s26
    %p32 = scmp.eq.s32.totalorder %s13, 0
    %p33 = por %p31, %p32
    %p34 = scmp.ne.s32.totalorder %s23, %s26
    %p35 = scmp.eq.s32.totalorder %s18, 1
    %p36 = por %p34, %p35
    %p37 = scmp.ne.s32.totalorder %s26, %s27
    %p38 = scmp.eq.s32.totalorder %s18, 0
    %p39 = por %p37, %p38
    %p40 = scmp.ne.s32.totalorder %s26, %s27
    %p41 = scmp.eq.s32.totalorder %s19, 1
    %p42 = por %p40, %p41
    %p44 = scmp.ne.s32.totalorder %s27, %s43
    %p45 = scmp.eq.s32.totalorder %s19, 0
    %p46 = por %p44, %p45
    %s48 = sadd.s32 %s47, 1
    %p51 = scmp.eq.s32.totalorder %s13, 1
    %p52 = scmp.ne.s32.totalorder %s47, %s49
    %p53 = scmp.eq.s32.totalorder %s13, 0
    %p54 = por %p52, %p53
    %p55 = scmp.ne.s32.totalorder %s47, %s49
    %p56 = scmp.eq.s32.totalorder %s18, 1
    %p57 = por %p55, %p56
    %p58 = scmp.ne.s32.totalorder %s49, %s50
    %p59 = scmp.eq.s32.totalorder %s18, 0
    %p60 = por %p58, %p59
    %p61 = scmp.ne.s32.totalorder %s49, %s50
    %p62 = scmp.eq.s32.totalorder %s19, 1
    %p63 = por %p61, %p62
    %p65 = scmp.ne.s32.totalorder %s50, %s64
    %p66 = scmp.eq.s32.totalorder %s19, 0
    %p67 = por %p65, %p66
    %s69 = sadd.s32 %s68, 1
    %p72 = scmp.eq.s32.totalorder %s13, 1
    %p73 = scmp.ne.s32.totalorder %s68, %s70
    %p74 = scmp.eq.s32.totalorder %s13, 0
    %p75 = por %p73, %p74
    %p76 = scmp.ne.s32.totalorder %s68, %s70
    %p77 = scmp.eq.s32.totalorder %s18, 1
    %p78 = por %p76, %p77
    %p79 = scmp.ne.s32.totalorder %s70, %s71
    %p80 = scmp.eq.s32.totalorder %s18, 0
    %p81 = por %p79, %p80
    %p82 = scmp.ne.s32.totalorder %s70, %s71
    %p83 = scmp.eq.s32.totalorder %s19, 1
    %p84 = por %p82, %p83
    %p86 = scmp.ne.s32.totalorder %s71, %s85
    %p87 = scmp.eq.s32.totalorder %s19, 0
    %p88 = por %p86, %p87
    %s90 = sadd.s32 %s89, 1
    %p93 = scmp.eq.s32.totalorder %s13, 1
    %p94 = scmp.ne.s32.totalorder %s89, %s91
    %p95 = scmp.eq.s32.totalorder %s13, 0
    %p96 = por %p94, %p95
    %p97 = scmp.ne.s32.totalorder %s89, %s91
    %p98 = scmp.eq.s32.totalorder %s18, 1
    %p99 = por %p97, %p98
    %p100 = scmp.ne.s32.totalorder %s91, %s92
    %p101 = scmp.eq.s32.totalorder %s18, 0
    %p102 = por %p100, %p101
    %p103 = scmp.ne.s32.totalorder %s91, %s92
    %p104 = scmp.eq.s32.totalorder %s19, 1
    %p105 = por %p103, %p104
    %p107 = scmp.ne.s32.totalorder %s92, %s106
    %p108 = scmp.eq.s32.totalorder %s19, 0
    %p109 = por %p107, %p108
    %s111 = sadd.s32 %s110, 1
    %p114 = scmp.eq.s32.totalorder %s13, 1
    %p115 = scmp.ne.s32.totalorder %s110, %s112
    %p116 = scmp.eq.s32.totalorder %s13, 0
    %p117 = por %p115, %p116
    %p118 = scmp.ne.s32.totalorder %s110, %s112
    %p119 = scmp.eq.s32.totalorder %s18, 1
    %p120 = por %p118, %p119
    %p121 = scmp.ne.s32.totalorder %s112, %s113
    %p122 = scmp.eq.s32.totalorder %s18, 0
    %p123 = por %p121, %p122
    %p124 = scmp.ne.s32.totalorder %s112, %s113
    %p125 = scmp.eq.s32.totalorder %s19, 1
    %p126 = por %p124, %p125
    %p128 = scmp.ne.s32.totalorder %s113, %s127
    %p129 = scmp.eq.s32.totalorder %s19, 0
    %p130 = por %p128, %p129
    %s132 = sadd.s32 %s131, 1
    %p135 = scmp.eq.s32.totalorder %s13, 1
    %p136 = scmp.ne.s32.totalorder %s131, %s133
    %p137 = scmp.eq.s32.totalorder %s13, 0
    %p138 = por %p136, %p137
    %p139 = scmp.ne.s32.totalorder %s131, %s133
    %p140 = scmp.eq.s32.totalorder %s18, 1
    %p141 = por %p139, %p140
    %p142 = scmp.ne.s32.totalorder %s133, %s134
    %p143 = scmp.eq.s32.totalorder %s18, 0
    %p144 = por %p142, %p143
    %p145 = scmp.ne.s32.totalorder %s133, %s134
    %p146 = scmp.eq.s32.totalorder %s19, 1
    %p147 = por %p145, %p146
    %p149 = scmp.ne.s32.totalorder %s134, %s148
    %p150 = scmp.eq.s32.totalorder %s19, 0
    %p151 = por %p149, %p150
    %s153 = sadd.s32 %s152, 1
    %p156 = scmp.eq.s32.totalorder %s13, 1
    %p157 = scmp.ne.s32.totalorder %s152, %s154
    %p158 = scmp.eq.s32.totalorder %s13, 0
    %p159 = por %p157, %p158
    %p160 = scmp.ne.s32.totalorder %s152, %s154
    %p161 = scmp.eq.s32.totalorder %s18, 1
    %p162 = por %p160, %p161
    %p163 = scmp.ne.s32.totalorder %s154, %s155
    %p164 = scmp.eq.s32.totalorder %s18, 0
    %p165 = por %p163, %p164
    %p166 = scmp.ne.s32.totalorder %s154, %s155
    %p167 = scmp.eq.s32.totalorder %s19, 1
    %p168 = por %p166, %p167
    %p170 = scmp.ne.s32.totalorder %s155, %s169
    %p171 = scmp.eq.s32.totalorder %s19, 0
    %p172 = por %p170, %p171
    %s173 = ssub.s32 %s13, %s20
    %p174 = scmp.eq.s32.totalorder %s173, 0
    %s176 = sadd.s32 %s175, 1
    %s177 = scalar_select %p174, %s175, %s176
    %p180 = pneg %p174
    %p181 = scmp.eq.s32.totalorder %s13, 1
    %p182 = por %p180, %p181
    %p183 = scmp.ne.s32.totalorder %s175, %s178
    %p184 = scmp.eq.s32.totalorder %s13, 0
    %p185 = por %p183, %p184
    %p186 = scmp.ne.s32.totalorder %s175, %s178
    %p187 = scmp.eq.s32.totalorder %s18, 1
    %p188 = por %p186, %p187
    %p189 = scmp.ne.s32.totalorder %s178, %s179
    %p190 = scmp.eq.s32.totalorder %s18, 0
    %p191 = por %p189, %p190
    %p192 = scmp.ne.s32.totalorder %s178, %s179
    %p193 = scmp.eq.s32.totalorder %s19, 1
    %p194 = por %p192, %p193
    %p196 = scmp.ne.s32.totalorder %s179, %s195
    %p197 = scmp.eq.s32.totalorder %s19, 0
    %p198 = por %p196, %p197
    %p199 = scmp.le.s32.totalorder 1, %s13
    %p200 = scmp.lt.s32.totalorder %s13, 3
    %p201 = pnand %p199, %p200
    %p202 = pneg %p201
    // Predicated region
    $region9: #{_lambda_.3} parent=5 // pred_check
      _
    $region10: #{_lambda_.3} parent=5 // pred_check_branch
      %204 = sbr.rel (%p201) target = $region12
    $region11: #{_lambda_.3} parent=5 // pred_region
      %s205 = ssub.s32 %s13, 1
      // Predicated region
      $region13: #{_lambda_.3} parent=11 // pred_check
        %p206 = pneg %p60
      $region14: #{_lambda_.3} parent=11 // pred_check_branch
        %208 = sbr.rel (%p206) target = $region16
      $region15: #{_lambda_.3} parent=11 // pred_region
        _
      $region16: #{_lambda_.3} parent=11 // pred_fallthru
        _
      // Predicated region
      $region17: #{_lambda_.3} parent=11 // pred_check
        %p209 = pneg %p81
      $region18: #{_lambda_.3} parent=11 // pred_check_branch
        %211 = sbr.rel (%p209) target = $region20
      $region19: #{_lambda_.3} parent=11 // pred_region
        _
      $region20: #{_lambda_.3} parent=11 // pred_fallthru
        _
      // Predicated region
      $region21: #{_lambda_.3} parent=11 // pred_check
        %p212 = pneg %p102
      $region22: #{_lambda_.3} parent=11 // pred_check_branch
        %214 = sbr.rel (%p212) target = $region24
      $region23: #{_lambda_.3} parent=11 // pred_region
        _
      $region24: #{_lambda_.3} parent=11 // pred_fallthru
        _
      // Predicated region
      $region25: #{_lambda_.3} parent=11 // pred_check
        %p215 = pneg %p123
      $region26: #{_lambda_.3} parent=11 // pred_check_branch
        %217 = sbr.rel (%p215) target = $region28
      $region27: #{_lambda_.3} parent=11 // pred_region
        _
      $region28: #{_lambda_.3} parent=11 // pred_fallthru
        _
      // Predicated region
      $region29: #{_lambda_.3} parent=11 // pred_check
        %p218 = pneg %p144
      $region30: #{_lambda_.3} parent=11 // pred_check_branch
        %220 = sbr.rel (%p218) target = $region32
      $region31: #{_lambda_.3} parent=11 // pred_region
        _
      $region32: #{_lambda_.3} parent=11 // pred_fallthru
        _
      // Predicated region
      $region33: #{_lambda_.3} parent=11 // pred_check
        %p221 = pneg %p165
      $region34: #{_lambda_.3} parent=11 // pred_check_branch
        %223 = sbr.rel (%p221) target = $region36
      $region35: #{_lambda_.3} parent=11 // pred_region
        _
      $region36: #{_lambda_.3} parent=11 // pred_fallthru
        _
    $region12: #{_lambda_.3} parent=5 // pred_fallthru
      _
    %p224 = scmp.lt.s32.totalorder %s13, 2
    // Predicated region
    $region37: #{_lambda_.3} parent=5 // pred_check
      %p225 = pneg %p224
    $region38: #{_lambda_.3} parent=5 // pred_check_branch
      %227 = sbr.rel (%p225) target = $region40
    $region39: #{_lambda_.3} parent=5 // pred_region
      // Predicated region
      $region41: #{_lambda_.3} parent=39 // pred_check
        %p228 = pneg %p33
      $region42: #{_lambda_.3} parent=39 // pred_check_branch
        %230 = sbr.rel (%p228) target = $region44
      $region43: #{_lambda_.3} parent=39 // pred_region
        %p231 = scmp.lt.s32.totalorder %s13, 1
        %s232 = scalar_select %p231, %s13, 1
        %s233 = smul.addr %s232, 32
        %s234 = smul.addr %s233, 8
        %s235 = scalar_lea.vmem %s0, %s234
      $region44: #{_lambda_.3} parent=39 // pred_fallthru
        _
    $region40: #{_lambda_.3} parent=5 // pred_fallthru
      _
    %p236 = scmp.le.s32.totalorder 1, %s13
    %p237 = scmp.lt.s32.totalorder %s13, 3
    %p238 = pnand %p236, %p237
    %p239 = pneg %p238
    // Predicated region
    $region45: #{_lambda_.3} parent=5 // pred_check
      _
    $region46: #{_lambda_.3} parent=5 // pred_check_branch
      %241 = sbr.rel (%p238) target = $region48
    $region47: #{_lambda_.3} parent=5 // pred_region
      %s242 = ssub.s32 %s13, 1
      %p243 = scmp.lt.s32.totalorder %s18, 1
      %s244 = scalar_select %p243, %s18, 1
      %s245 = smul.addr %s244, 32
      %s246 = smul.addr %s245, 8
      %s247 = scalar_lea.vmem %s0, %s246
      %p248 = pneg %p39
      %p249 = pneg %p36
      %p250 = pneg %p60
      %p251 = pneg %p57
      %p252 = pneg %p81
      %p253 = pneg %p78
      %p254 = pneg %p102
      %p255 = pneg %p99
      %p256 = pneg %p123
      %p257 = pneg %p120
      %p258 = pneg %p144
      %p259 = pneg %p141
      %p260 = pneg %p165
      %p261 = pneg %p162
      %p262 = pneg %p191
      %p263 = pneg %p188
      %p264 = scmp.lt.s32.totalorder %s18, 1
      %s265 = scalar_select %p264, %s18, 1
      %s266 = smul.addr %s265, 32
      %s267 = smul.addr %s266, 8
      %s268 = scalar_lea.vmem %s7, %s267
      %p269 = scmp.lt.s32.totalorder %s18, 1
      %s270 = scalar_select %p269, %s18, 1
      %s271 = smul.addr %s270, 32
      %s272 = smul.addr %s271, 8
      %s273 = scalar_lea.vmem %s0, %s272
      %p274 = scmp.lt.s32.totalorder %s18, 1
      %s275 = scalar_select %p274, %s18, 1
      %s276 = smul.addr %s275, 32
      %s277 = smul.addr %s276, 8
      %s278 = scalar_lea.vmem %s7, %s277
      %v279 = vld [vmem:[%s273] sm:$0xff]
      %v280 = vld [vmem:[%s273 + $0x8] sm:$0xff]
      %v281 = vld [vmem:[%s273 + $0x10] sm:$0xff]
      %v282 = vld [vmem:[%s273 + $0x18] sm:$0xff]
      %v283 = vld [vmem:[%s273 + $0x20] sm:$0xff]
      %v284 = vld [vmem:[%s273 + $0x28] sm:$0xff]
      %v285 = vld [vmem:[%s273 + $0x30] sm:$0xff]
      %v286 = vld [vmem:[%s273 + $0x38] sm:$0xff]
      %v287 = vld [vmem:[%s273 + $0x40] sm:$0xff]
      %v288 = vld [vmem:[%s273 + $0x48] sm:$0xff]
      %v289 = vld [vmem:[%s273 + $0x50] sm:$0xff]
      %v290 = vld [vmem:[%s273 + $0x58] sm:$0xff]
      %v291 = vld [vmem:[%s273 + $0x60] sm:$0xff]
      %v292 = vld [vmem:[%s273 + $0x68] sm:$0xff]
      %v293 = vld [vmem:[%s273 + $0x70] sm:$0xff]
      %v294 = vld [vmem:[%s273 + $0x78] sm:$0xff]
      %v295 = vld [vmem:[%s273 + $0x80] sm:$0xff]
      %v296 = vld [vmem:[%s273 + $0x88] sm:$0xff]
      %v297 = vld [vmem:[%s273 + $0x90] sm:$0xff]
      %v298 = vld [vmem:[%s273 + $0x98] sm:$0xff]
      %v299 = vld [vmem:[%s273 + $0xa0] sm:$0xff]
      %v300 = vld [vmem:[%s273 + $0xa8] sm:$0xff]
      %v301 = vld [vmem:[%s273 + $0xb0] sm:$0xff]
      %v302 = vld [vmem:[%s273 + $0xb8] sm:$0xff]
      %v303 = vld [vmem:[%s273 + $0xc0] sm:$0xff]
      %v304 = vld [vmem:[%s273 + $0xc8] sm:$0xff]
      %v305 = vld [vmem:[%s273 + $0xd0] sm:$0xff]
      %v306 = vld [vmem:[%s273 + $0xd8] sm:$0xff]
      %v307 = vld [vmem:[%s273 + $0xe0] sm:$0xff]
      %v308 = vld [vmem:[%s273 + $0xe8] sm:$0xff]
      %v309 = vld [vmem:[%s273 + $0xf0] sm:$0xff]
      %v310 = vld [vmem:[%s273 + $0xf8] sm:$0xff]
      %v311 = vld [vmem:[%s1] sm:$0xff]
      %v312 = vld [vmem:[%s2] sm:$0x1]
      %v314 = vlaneseq
      %v315 = vshrl.u32 %v314, 7
      %v316 = vsub.s32 0, %v315
      %v317 = vrot.slane %v312, %v316
      %vm319 = vcmask 64512
      %v321 = vsel %vm319, %v279, 0
      %v324 = vsel %vm319, %v280, 0
      %v327 = vsel %vm319, %v281, 0
      %v330 = vsel %vm319, %v282, 0
      %v333 = vsel %vm319, %v283, 0
      %v336 = vsel %vm319, %v284, 0
      %v339 = vsel %vm319, %v285, 0
      %v342 = vsel %vm319, %v286, 0
      %v345 = vsel %vm319, %v287, 0
      %v348 = vsel %vm319, %v288, 0
      %v351 = vsel %vm319, %v289, 0
      %v354 = vsel %vm319, %v290, 0
      %v357 = vsel %vm319, %v291, 0
      %v360 = vsel %vm319, %v292, 0
      %v363 = vsel %vm319, %v293, 0
      %v366 = vsel %vm319, %v294, 0
      %v369 = vsel %vm319, %v295, 0
      %v372 = vsel %vm319, %v296, 0
      %v375 = vsel %vm319, %v297, 0
      %v378 = vsel %vm319, %v298, 0
      %v381 = vsel %vm319, %v299, 0
      %v384 = vsel %vm319, %v300, 0
      %v387 = vsel %vm319, %v301, 0
      %v390 = vsel %vm319, %v302, 0
      %v393 = vsel %vm319, %v303, 0
      %v396 = vsel %vm319, %v304, 0
      %v399 = vsel %vm319, %v305, 0
      %v402 = vsel %vm319, %v306, 0
      %v405 = vsel %vm319, %v307, 0
      %v408 = vsel %vm319, %v308, 0
      %v411 = vsel %vm319, %v309, 0
      %v414 = vsel %vm319, %v310, 0
      %416 = vmatprep.subr.mxu0 0.0
      %417 = vmatpush1.msra.mxu0 0.0
      %418 = vmatprep.subr.mxu0 0.0
      %419 = vmatpush1.msra.mxu0 0.0
      %420 = vmatprep.subr.mxu0 0.0
      %421 = vmatpush1.msra.mxu0 0.0
      %422 = vmatprep.subr.mxu0 0.0
      %423 = vmatpush1.msra.mxu0 0.0
      %424 = vmatprep.subr.mxu0 0.0
      %425 = vmatpush1.msra.mxu0 0.0
      %426 = vmatprep.subr.mxu0 0.0
      %427 = vmatpush1.msra.mxu0 0.0
      %428 = vmatprep.subr.mxu0 0.0
      %429 = vmatpush1.msra.mxu0 0.0
      %430 = vmatprep.subr.mxu0 0.0
      %431 = vmatpush1.msra.mxu0 0.0
      %432 = vmatprep.subr.mxu0 0.0
      %433 = vmatpush1.msra.mxu0 0.0
      %434 = vmatprep.subr.mxu0 0.0
      %435 = vmatpush1.msra.mxu0 0.0
      %436 = vmatprep.subr.mxu0 0.0
      %437 = vmatpush1.msra.mxu0 0.0
      %438 = vmatprep.subr.mxu0 0.0
      %439 = vmatpush1.msra.mxu0 0.0
      %440 = vmatprep.subr.mxu0 0.0
      %441 = vmatpush1.msra.mxu0 0.0
      %442 = vmatprep.subr.mxu0 0.0
      %443 = vmatpush1.msra.mxu0 0.0
      %444 = vmatprep.subr.mxu0 0.0
      %445 = vmatpush1.msra.mxu0 0.0
      %446 = vmatprep.subr.mxu0 0.0
      %447 = vmatpush1.msra.mxu0 %v311
      %448 = vmatprep.subr.mxu0 0.0
      %449 = vmatpush2.msra.mxu0 0.0
      %450 = vmatprep.subr.mxu0 0.0
      %451 = vmatpush2.msra.mxu0 0.0
      %452 = vmatprep.subr.mxu0 0.0
      %453 = vmatpush2.msra.mxu0 0.0
      %454 = vmatprep.subr.mxu0 0.0
      %455 = vmatpush2.msra.mxu0 0.0
      %456 = vmatprep.subr.mxu0 0.0
      %457 = vmatpush2.msra.mxu0 0.0
      %458 = vmatprep.subr.mxu0 0.0
      %459 = vmatpush2.msra.mxu0 0.0
      %460 = vmatprep.subr.mxu0 0.0
      %461 = vmatpush2.msra.mxu0 0.0
      %462 = vmatprep.subr.mxu0 0.0
      %463 = vmatpush2.msra.mxu0 0.0
      %464 = vmatprep.subr.mxu0 0.0
      %465 = vmatpush2.msra.mxu0 0.0
      %466 = vmatprep.subr.mxu0 0.0
      %467 = vmatpush2.msra.mxu0 0.0
      %468 = vmatprep.subr.mxu0 0.0
      %469 = vmatpush2.msra.mxu0 0.0
      %470 = vmatprep.subr.mxu0 0.0
      %471 = vmatpush2.msra.mxu0 0.0
      %472 = vmatprep.subr.mxu0 0.0
      %473 = vmatpush2.msra.mxu0 0.0
      %474 = vmatprep.subr.mxu0 0.0
      %475 = vmatpush2.msra.mxu0 0.0
      %476 = vmatprep.subr.mxu0 0.0
      %477 = vmatpush2.msra.mxu0 0.0
      %478 = vmatprep.subr.mxu0 0.0
      %479 = vmatpush2.msra.mxu0 0.0
      %480 = vmatprep.mubr.f32.mxu0 0.0
      %481 = vmatmul.mubr.f32.gmra.mxu0 %v321
      %v482 = vpop.f32.mrf.mxu0
      %v483 = vadd.f32 %v317, %v482
      %v484 = vpop.f32.mrf.mxu0
      %485 = vmatprep.mubr.f32.mxu0 0.0
      %486 = vmatmul.mubr.f32.gmra.mxu0 %v324
      %v487 = vpop.f32.mrf.mxu0
      %v488 = vadd.f32 %v317, %v487
      %v489 = vpop.f32.mrf.mxu0
      %490 = vmatprep.mubr.f32.mxu0 0.0
      %491 = vmatmul.mubr.f32.gmra.mxu0 %v327
      %v492 = vpop.f32.mrf.mxu0
      %v493 = vadd.f32 %v317, %v492
      %v494 = vpop.f32.mrf.mxu0
      %495 = vmatprep.mubr.f32.mxu0 0.0
      %496 = vmatmul.mubr.f32.gmra.mxu0 %v330
      %v497 = vpop.f32.mrf.mxu0
      %v498 = vadd.f32 %v317, %v497
      %v499 = vpop.f32.mrf.mxu0
      %500 = vmatprep.mubr.f32.mxu0 0.0
      %501 = vmatmul.mubr.f32.gmra.mxu0 %v333
      %v502 = vpop.f32.mrf.mxu0
      %v503 = vadd.f32 %v317, %v502
      %v504 = vpop.f32.mrf.mxu0
      %505 = vmatprep.mubr.f32.mxu0 0.0
      %506 = vmatmul.mubr.f32.gmra.mxu0 %v336
      %v507 = vpop.f32.mrf.mxu0
      %v508 = vadd.f32 %v317, %v507
      %v509 = vpop.f32.mrf.mxu0
      %510 = vmatprep.mubr.f32.mxu0 0.0
      %511 = vmatmul.mubr.f32.gmra.mxu0 %v339
      %v512 = vpop.f32.mrf.mxu0
      %v513 = vadd.f32 %v317, %v512
      %v514 = vpop.f32.mrf.mxu0
      %515 = vmatprep.mubr.f32.mxu0 0.0
      %516 = vmatmul.mubr.f32.gmra.mxu0 %v342
      %v517 = vpop.f32.mrf.mxu0
      %v518 = vadd.f32 %v317, %v517
      %v519 = vpop.f32.mrf.mxu0
      %520 = vmatprep.mubr.f32.mxu0 0.0
      %521 = vmatmul.mubr.f32.gmra.mxu0 %v345
      %v522 = vpop.f32.mrf.mxu0
      %v523 = vadd.f32 %v317, %v522
      %v524 = vpop.f32.mrf.mxu0
      %525 = vmatprep.mubr.f32.mxu0 0.0
      %526 = vmatmul.mubr.f32.gmra.mxu0 %v348
      %v527 = vpop.f32.mrf.mxu0
      %v528 = vadd.f32 %v317, %v527
      %v529 = vpop.f32.mrf.mxu0
      %530 = vmatprep.mubr.f32.mxu0 0.0
      %531 = vmatmul.mubr.f32.gmra.mxu0 %v351
      %v532 = vpop.f32.mrf.mxu0
      %v533 = vadd.f32 %v317, %v532
      %v534 = vpop.f32.mrf.mxu0
      %535 = vmatprep.mubr.f32.mxu0 0.0
      %536 = vmatmul.mubr.f32.gmra.mxu0 %v354
      %v537 = vpop.f32.mrf.mxu0
      %v538 = vadd.f32 %v317, %v537
      %v539 = vpop.f32.mrf.mxu0
      %540 = vmatprep.mubr.f32.mxu0 0.0
      %541 = vmatmul.mubr.f32.gmra.mxu0 %v357
      %v542 = vpop.f32.mrf.mxu0
      %v543 = vadd.f32 %v317, %v542
      %v544 = vpop.f32.mrf.mxu0
      %545 = vmatprep.mubr.f32.mxu0 0.0
      %546 = vmatmul.mubr.f32.gmra.mxu0 %v360
      %v547 = vpop.f32.mrf.mxu0
      %v548 = vadd.f32 %v317, %v547
      %v549 = vpop.f32.mrf.mxu0
      %550 = vmatprep.mubr.f32.mxu0 0.0
      %551 = vmatmul.mubr.f32.gmra.mxu0 %v363
      %v552 = vpop.f32.mrf.mxu0
      %v553 = vadd.f32 %v317, %v552
      %v554 = vpop.f32.mrf.mxu0
      %555 = vmatprep.mubr.f32.mxu0 0.0
      %556 = vmatmul.mubr.f32.gmra.mxu0 %v366
      %v557 = vpop.f32.mrf.mxu0
      %v558 = vadd.f32 %v317, %v557
      %v559 = vpop.f32.mrf.mxu0
      %560 = vmatprep.mubr.f32.mxu0 0.0
      %561 = vmatmul.mubr.f32.gmra.mxu0 %v369
      %v562 = vpop.f32.mrf.mxu0
      %v563 = vadd.f32 %v317, %v562
      %v564 = vpop.f32.mrf.mxu0
      %565 = vmatprep.mubr.f32.mxu0 0.0
      %566 = vmatmul.mubr.f32.gmra.mxu0 %v372
      %v567 = vpop.f32.mrf.mxu0
      %v568 = vadd.f32 %v317, %v567
      %v569 = vpop.f32.mrf.mxu0
      %570 = vmatprep.mubr.f32.mxu0 0.0
      %571 = vmatmul.mubr.f32.gmra.mxu0 %v375
      %v572 = vpop.f32.mrf.mxu0
      %v573 = vadd.f32 %v317, %v572
      %v574 = vpop.f32.mrf.mxu0
      %575 = vmatprep.mubr.f32.mxu0 0.0
      %576 = vmatmul.mubr.f32.gmra.mxu0 %v378
      %v577 = vpop.f32.mrf.mxu0
      %v578 = vadd.f32 %v317, %v577
      %v579 = vpop.f32.mrf.mxu0
      %580 = vmatprep.mubr.f32.mxu0 0.0
      %581 = vmatmul.mubr.f32.gmra.mxu0 %v381
      %v582 = vpop.f32.mrf.mxu0
      %v583 = vadd.f32 %v317, %v582
      %v584 = vpop.f32.mrf.mxu0
      %585 = vmatprep.mubr.f32.mxu0 0.0
      %586 = vmatmul.mubr.f32.gmra.mxu0 %v384
      %v587 = vpop.f32.mrf.mxu0
      %v588 = vadd.f32 %v317, %v587
      %v589 = vpop.f32.mrf.mxu0
      %590 = vmatprep.mubr.f32.mxu0 0.0
      %591 = vmatmul.mubr.f32.gmra.mxu0 %v387
      %v592 = vpop.f32.mrf.mxu0
      %v593 = vadd.f32 %v317, %v592
      %v594 = vpop.f32.mrf.mxu0
      %595 = vmatprep.mubr.f32.mxu0 0.0
      %596 = vmatmul.mubr.f32.gmra.mxu0 %v390
      %v597 = vpop.f32.mrf.mxu0
      %v598 = vadd.f32 %v317, %v597
      %v599 = vpop.f32.mrf.mxu0
      %600 = vmatprep.mubr.f32.mxu0 0.0
      %601 = vmatmul.mubr.f32.gmra.mxu0 %v393
      %v602 = vpop.f32.mrf.mxu0
      %v603 = vadd.f32 %v317, %v602
      %v604 = vpop.f32.mrf.mxu0
      %605 = vmatprep.mubr.f32.mxu0 0.0
      %606 = vmatmul.mubr.f32.gmra.mxu0 %v396
      %v607 = vpop.f32.mrf.mxu0
      %v608 = vadd.f32 %v317, %v607
      %v609 = vpop.f32.mrf.mxu0
      %610 = vmatprep.mubr.f32.mxu0 0.0
      %611 = vmatmul.mubr.f32.gmra.mxu0 %v399
      %v612 = vpop.f32.mrf.mxu0
      %v613 = vadd.f32 %v317, %v612
      %v614 = vpop.f32.mrf.mxu0
      %615 = vmatprep.mubr.f32.mxu0 0.0
      %616 = vmatmul.mubr.f32.gmra.mxu0 %v402
      %v617 = vpop.f32.mrf.mxu0
      %v618 = vadd.f32 %v317, %v617
      %v619 = vpop.f32.mrf.mxu0
      %620 = vmatprep.mubr.f32.mxu0 0.0
      %621 = vmatmul.mubr.f32.gmra.mxu0 %v405
      %v622 = vpop.f32.mrf.mxu0
      %v623 = vadd.f32 %v317, %v622
      %v624 = vpop.f32.mrf.mxu0
      %625 = vmatprep.mubr.f32.mxu0 0.0
      %626 = vmatmul.mubr.f32.gmra.mxu0 %v408
      %v627 = vpop.f32.mrf.mxu0
      %v628 = vadd.f32 %v317, %v627
      %v629 = vpop.f32.mrf.mxu0
      %630 = vmatprep.mubr.f32.mxu0 0.0
      %631 = vmatmul.mubr.f32.gmra.mxu0 %v411
      %v632 = vpop.f32.mrf.mxu0
      %v633 = vadd.f32 %v317, %v632
      %v634 = vpop.f32.mrf.mxu0
      %635 = vmatprep.mubr.f32.mxu0 0.0
      %636 = vmatmul.mubr.f32.gmra.mxu0 %v414
      %v637 = vpop.f32.mrf.mxu0
      %v638 = vadd.f32 %v317, %v637
      %v639 = vpop.f32.mrf.mxu0
      %640 = vdwg.mxu0
      %v641 = vmax.f32 %v483, 0.0
      %v642 = vmax.f32 %v488, 0.0
      %v643 = vmax.f32 %v493, 0.0
      %v644 = vmax.f32 %v498, 0.0
      %v645 = vmax.f32 %v503, 0.0
      %v646 = vmax.f32 %v508, 0.0
      %v647 = vmax.f32 %v513, 0.0
      %v648 = vmax.f32 %v518, 0.0
      %v649 = vmax.f32 %v523, 0.0
      %v650 = vmax.f32 %v528, 0.0
      %v651 = vmax.f32 %v533, 0.0
      %v652 = vmax.f32 %v538, 0.0
      %v653 = vmax.f32 %v543, 0.0
      %v654 = vmax.f32 %v548, 0.0
      %v655 = vmax.f32 %v553, 0.0
      %v656 = vmax.f32 %v558, 0.0
      %v657 = vmax.f32 %v563, 0.0
      %v658 = vmax.f32 %v568, 0.0
      %v659 = vmax.f32 %v573, 0.0
      %v660 = vmax.f32 %v578, 0.0
      %v661 = vmax.f32 %v583, 0.0
      %v662 = vmax.f32 %v588, 0.0
      %v663 = vmax.f32 %v593, 0.0
      %v664 = vmax.f32 %v598, 0.0
      %v665 = vmax.f32 %v603, 0.0
      %v666 = vmax.f32 %v608, 0.0
      %v667 = vmax.f32 %v613, 0.0
      %v668 = vmax.f32 %v618, 0.0
      %v669 = vmax.f32 %v623, 0.0
      %v670 = vmax.f32 %v628, 0.0
      %v671 = vmax.f32 %v633, 0.0
      %v672 = vmax.f32 %v638, 0.0
      %v673 = vmin.f32 %v641, 6.0
      %v674 = vmin.f32 %v642, 6.0
      %v675 = vmin.f32 %v643, 6.0
      %v676 = vmin.f32 %v644, 6.0
      %v677 = vmin.f32 %v645, 6.0
      %v678 = vmin.f32 %v646, 6.0
      %v679 = vmin.f32 %v647, 6.0
      %v680 = vmin.f32 %v648, 6.0
      %v681 = vmin.f32 %v649, 6.0
      %v682 = vmin.f32 %v650, 6.0
      %v683 = vmin.f32 %v651, 6.0
      %v684 = vmin.f32 %v652, 6.0
      %v685 = vmin.f32 %v653, 6.0
      %v686 = vmin.f32 %v654, 6.0
      %v687 = vmin.f32 %v655, 6.0
      %v688 = vmin.f32 %v656, 6.0
      %v689 = vmin.f32 %v657, 6.0
      %v690 = vmin.f32 %v658, 6.0
      %v691 = vmin.f32 %v659, 6.0
      %v692 = vmin.f32 %v660, 6.0
      %v693 = vmin.f32 %v661, 6.0
      %v694 = vmin.f32 %v662, 6.0
      %v695 = vmin.f32 %v663, 6.0
      %v696 = vmin.f32 %v664, 6.0
      %v697 = vmin.f32 %v665, 6.0
      %v698 = vmin.f32 %v666, 6.0
      %v699 = vmin.f32 %v667, 6.0
      %v700 = vmin.f32 %v668, 6.0
      %v701 = vmin.f32 %v669, 6.0
      %v702 = vmin.f32 %v670, 6.0
      %v703 = vmin.f32 %v671, 6.0
      %v704 = vmin.f32 %v672, 6.0
      %vm705 = vcmask 130048
      %706 = vst.msk [vmem:[#allocation2] sm:$0xff] %vm705, 0.0
      %707 = vst.msk [vmem:[#allocation2 + $0x8] sm:$0xff] %vm705, 0.0
      %vm708 = vcmask 123904
      %709 = vst.msk [vmem:[#allocation2 + $0x10] sm:$0x3] %vm708, 0.0
      %710 = vst.msk [vmem:[#allocation2 + $0x18] sm:$0xff] %vm705, 0.0
      %711 = vst.msk [vmem:[#allocation2 + $0x20] sm:$0xff] %vm705, 0.0
      %712 = vst.msk [vmem:[#allocation2 + $0x28] sm:$0x3] %vm708, 0.0
      %713 = vst.msk [vmem:[#allocation2 + $0x30] sm:$0xff] %vm705, 0.0
      %714 = vst.msk [vmem:[#allocation2 + $0x38] sm:$0xff] %vm705, 0.0
      %715 = vst.msk [vmem:[#allocation2 + $0x40] sm:$0x3] %vm708, 0.0
      %716 = vst.msk [vmem:[#allocation2 + $0x48] sm:$0xff] %vm705, 0.0
      %717 = vst.msk [vmem:[#allocation2 + $0x50] sm:$0xff] %vm705, 0.0
      %718 = vst.msk [vmem:[#allocation2 + $0x58] sm:$0x3] %vm708, 0.0
      %719 = vst.msk [vmem:[#allocation2 + $0x60] sm:$0xff] %vm705, 0.0
      %720 = vst.msk [vmem:[#allocation2 + $0x68] sm:$0xff] %vm705, 0.0
      %721 = vst.msk [vmem:[#allocation2 + $0x70] sm:$0x3] %vm708, 0.0
      %722 = vst.msk [vmem:[#allocation2 + $0x78] sm:$0xff] %vm705, 0.0
      %723 = vst.msk [vmem:[#allocation2 + $0x80] sm:$0xff] %vm705, 0.0
      %724 = vst.msk [vmem:[#allocation2 + $0x88] sm:$0x3] %vm708, 0.0
      %725 = vst.msk [vmem:[#allocation2 + $0x90] sm:$0xff] %vm705, 0.0
      %726 = vst.msk [vmem:[#allocation2 + $0x98] sm:$0xff] %vm705, 0.0
      %727 = vst.msk [vmem:[#allocation2 + $0xa0] sm:$0x3] %vm708, 0.0
      %728 = vst.msk [vmem:[#allocation2 + $0xa8] sm:$0xff] %vm705, 0.0
      %729 = vst.msk [vmem:[#allocation2 + $0xb0] sm:$0xff] %vm705, 0.0
      %730 = vst.msk [vmem:[#allocation2 + $0xb8] sm:$0x3] %vm708, 0.0
      %731 = vst.msk [vmem:[#allocation2 + $0xc0] sm:$0xff] %vm705, 0.0
      %732 = vst.msk [vmem:[#allocation2 + $0xc8] sm:$0xff] %vm705, 0.0
      %733 = vst.msk [vmem:[#allocation2 + $0xd0] sm:$0x3] %vm708, 0.0
      %734 = vst.msk [vmem:[#allocation2 + $0xd8] sm:$0xff] %vm705, 0.0
      %735 = vst.msk [vmem:[#allocation2 + $0xe0] sm:$0xff] %vm705, 0.0
      %736 = vst.msk [vmem:[#allocation2 + $0xe8] sm:$0x3] %vm708, 0.0
      %737 = vst.msk [vmem:[#allocation2 + $0xf0] sm:$0xff] %vm705, 0.0
      %738 = vst.msk [vmem:[#allocation2 + $0xf8] sm:$0xff] %vm705, 0.0
      %739 = vst.msk [vmem:[#allocation2 + $0x100] sm:$0x3] %vm708, 0.0
      %740 = vst.msk [vmem:[#allocation2 + $0x108] sm:$0xff] %vm705, 0.0
      %741 = vst.msk [vmem:[#allocation2 + $0x110] sm:$0xff] %vm705, 0.0
      %742 = vst.msk [vmem:[#allocation2 + $0x118] sm:$0x3] %vm708, 0.0
      %743 = vst.msk [vmem:[#allocation2 + $0x120] sm:$0xff] %vm705, 0.0
      %744 = vst.msk [vmem:[#allocation2 + $0x128] sm:$0xff] %vm705, 0.0
      %745 = vst.msk [vmem:[#allocation2 + $0x130] sm:$0x3] %vm708, 0.0
      %746 = vst.msk [vmem:[#allocation2 + $0x138] sm:$0xff] %vm705, 0.0
      %747 = vst.msk [vmem:[#allocation2 + $0x140] sm:$0xff] %vm705, 0.0
      %748 = vst.msk [vmem:[#allocation2 + $0x148] sm:$0x3] %vm708, 0.0
      %749 = vst.msk [vmem:[#allocation2 + $0x150] sm:$0xff] %vm705, 0.0
      %750 = vst.msk [vmem:[#allocation2 + $0x158] sm:$0xff] %vm705, 0.0
      %751 = vst.msk [vmem:[#allocation2 + $0x160] sm:$0x3] %vm708, 0.0
      %752 = vst.msk [vmem:[#allocation2 + $0x168] sm:$0xff] %vm705, 0.0
      %753 = vst.msk [vmem:[#allocation2 + $0x170] sm:$0xff] %vm705, 0.0
      %754 = vst.msk [vmem:[#allocation2 + $0x178] sm:$0x3] %vm708, 0.0
      %755 = vst.msk [vmem:[#allocation2 + $0x180] sm:$0xff] %vm705, 0.0
      %756 = vst.msk [vmem:[#allocation2 + $0x188] sm:$0xff] %vm705, 0.0
      %757 = vst.msk [vmem:[#allocation2 + $0x190] sm:$0x3] %vm708, 0.0
      %758 = vst.msk [vmem:[#allocation2 + $0x198] sm:$0xff] %vm705, 0.0
      %759 = vst.msk [vmem:[#allocation2 + $0x1a0] sm:$0xff] %vm705, 0.0
      %760 = vst.msk [vmem:[#allocation2 + $0x1a8] sm:$0x3] %vm708, 0.0
      %s761 = scalar_lea.vmem [#allocation2], 24
      %762 = vst.msk [vmem:[%s761 + $0x1] sm:$0xff] %vm705, %v673
      %763 = vst.msk [vmem:[%s761 + $0x9] sm:$0xff] %vm705, %v674
      %764 = vst.msk [vmem:[%s761 + $0x19] sm:$0xff] %vm705, %v675
      %765 = vst.msk [vmem:[%s761 + $0x21] sm:$0xff] %vm705, %v676
      %766 = vst.msk [vmem:[%s761 + $0x31] sm:$0xff] %vm705, %v677
      %767 = vst.msk [vmem:[%s761 + $0x39] sm:$0xff] %vm705, %v678
      %768 = vst.msk [vmem:[%s761 + $0x49] sm:$0xff] %vm705, %v679
      %769 = vst.msk [vmem:[%s761 + $0x51] sm:$0xff] %vm705, %v680
      %770 = vst.msk [vmem:[%s761 + $0x61] sm:$0xff] %vm705, %v681
      %771 = vst.msk [vmem:[%s761 + $0x69] sm:$0xff] %vm705, %v682
      %772 = vst.msk [vmem:[%s761 + $0x79] sm:$0xff] %vm705, %v683
      %773 = vst.msk [vmem:[%s761 + $0x81] sm:$0xff] %vm705, %v684
      %774 = vst.msk [vmem:[%s761 + $0x91] sm:$0xff] %vm705, %v685
      %775 = vst.msk [vmem:[%s761 + $0x99] sm:$0xff] %vm705, %v686
      %776 = vst.msk [vmem:[%s761 + $0xa9] sm:$0xff] %vm705, %v687
      %777 = vst.msk [vmem:[%s761 + $0xb1] sm:$0xff] %vm705, %v688
      %778 = vst.msk [vmem:[%s761 + $0xc1] sm:$0xff] %vm705, %v689
      %779 = vst.msk [vmem:[%s761 + $0xc9] sm:$0xff] %vm705, %v690
      %780 = vst.msk [vmem:[%s761 + $0xd9] sm:$0xff] %vm705, %v691
      %781 = vst.msk [vmem:[%s761 + $0xe1] sm:$0xff] %vm705, %v692
      %782 = vst.msk [vmem:[%s761 + $0xf1] sm:$0xff] %vm705, %v693
      %783 = vst.msk [vmem:[%s761 + $0xf9] sm:$0xff] %vm705, %v694
      %784 = vst.msk [vmem:[%s761 + $0x109] sm:$0xff] %vm705, %v695
      %785 = vst.msk [vmem:[%s761 + $0x111] sm:$0xff] %vm705, %v696
      %786 = vst.msk [vmem:[%s761 + $0x121] sm:$0xff] %vm705, %v697
      %787 = vst.msk [vmem:[%s761 + $0x129] sm:$0xff] %vm705, %v698
      %788 = vst.msk [vmem:[%s761 + $0x139] sm:$0xff] %vm705, %v699
      %789 = vst.msk [vmem:[%s761 + $0x141] sm:$0xff] %vm705, %v700
      %790 = vst.msk [vmem:[%s761 + $0x151] sm:$0xff] %vm705, %v701
      %791 = vst.msk [vmem:[%s761 + $0x159] sm:$0xff] %vm705, %v702
      %792 = vst.msk [vmem:[%s761 + $0x169] sm:$0xff] %vm705, %v703
      %793 = vst.msk [vmem:[%s761 + $0x171] sm:$0xff] %vm705, %v704
      %v794 = vld [vmem:[%s3] sm:$0x7]
      %v795 = vld [vmem:[%s3 + $0x4] sm:$0x7]
      %v796 = vld [vmem:[%s3 + $0x8] sm:$0x7]
      %v797 = vld [vmem:[#allocation2] sm:$0xff]
      %v798 = vld [vmem:[#allocation2 + $0x8] sm:$0xff]
      %v799 = vld [vmem:[#allocation2 + $0x18] sm:$0xff]
      %v800 = vld [vmem:[#allocation2 + $0x20] sm:$0xff]
      %v801 = vld [vmem:[#allocation2 + $0x30] sm:$0xff]
      %v802 = vld [vmem:[#allocation2 + $0x38] sm:$0xff]
      %v803 = vld [vmem:[#allocation2 + $0x48] sm:$0xff]
      %v804 = vld [vmem:[#allocation2 + $0x50] sm:$0xff]
      %v805 = vld [vmem:[#allocation2 + $0x60] sm:$0xff]
      %v806 = vld [vmem:[#allocation2 + $0x68] sm:$0xff]
      %v807 = vld [vmem:[#allocation2 + $0x78] sm:$0xff]
      %v808 = vld [vmem:[#allocation2 + $0x80] sm:$0xff]
      %v809 = vld [vmem:[#allocation2 + $0x90] sm:$0xff]
      %v810 = vld [vmem:[#allocation2 + $0x98] sm:$0xff]
      %v811 = vld [vmem:[#allocation2 + $0xa8] sm:$0xff]
      %v812 = vld [vmem:[#allocation2 + $0xb0] sm:$0xff]
      %v813 = vld [vmem:[#allocation2 + $0xc0] sm:$0xff]
      %v814 = vld [vmem:[#allocation2 + $0xc8] sm:$0xff]
      %v815 = vld [vmem:[#allocation2 + $0xd8] sm:$0xff]
      %v816 = vld [vmem:[#allocation2 + $0xe0] sm:$0xff]
      %v817 = vld [vmem:[#allocation2 + $0xf0] sm:$0xff]
      %v818 = vld [vmem:[#allocation2 + $0xf8] sm:$0xff]
      %v819 = vld [vmem:[#allocation2 + $0x108] sm:$0xff]
      %v820 = vld [vmem:[#allocation2 + $0x110] sm:$0xff]
      %v821 = vld [vmem:[#allocation2 + $0x120] sm:$0xff]
      %v822 = vld [vmem:[#allocation2 + $0x128] sm:$0xff]
      %v823 = vld [vmem:[#allocation2 + $0x138] sm:$0xff]
      %v824 = vld [vmem:[#allocation2 + $0x140] sm:$0xff]
      %v825 = vld [vmem:[#allocation2 + $0x150] sm:$0xff]
      %v826 = vld [vmem:[#allocation2 + $0x158] sm:$0xff]
      %v827 = vld [vmem:[#allocation2 + $0x168] sm:$0xff]
      %v828 = vld [vmem:[#allocation2 + $0x170] sm:$0xff]
      %v829 = vlaneseq
      %v830 = vshrl.u32 %v829, 7
      %v831 = vsub.s32 0, %v830
      %v832 = vrot.slane %v794, %v831
      %v833 = vmul.f32 %v797, %v832
      %v834 = vmul.f32 %v798, %v832
      %v835 = vmul.f32 %v799, %v832
      %v836 = vmul.f32 %v800, %v832
      %v837 = vmul.f32 %v801, %v832
      %v838 = vmul.f32 %v802, %v832
      %v839 = vmul.f32 %v803, %v832
      %v840 = vmul.f32 %v804, %v832
      %v841 = vmul.f32 %v805, %v832
      %v842 = vmul.f32 %v806, %v832
      %v843 = vmul.f32 %v807, %v832
      %v844 = vmul.f32 %v808, %v832
      %v845 = vmul.f32 %v809, %v832
      %v846 = vmul.f32 %v810, %v832
      %v847 = vmul.f32 %v811, %v832
      %v848 = vmul.f32 %v812, %v832
      %v849 = vmul.f32 %v813, %v832
      %v850 = vmul.f32 %v814, %v832
      %v851 = vmul.f32 %v815, %v832
      %v852 = vmul.f32 %v816, %v832
      %v853 = vmul.f32 %v817, %v832
      %v854 = vmul.f32 %v818, %v832
      %v855 = vmul.f32 %v819, %v832
      %v856 = vmul.f32 %v820, %v832
      %v857 = vmul.f32 %v821, %v832
      %v858 = vmul.f32 %v822, %v832
      %v859 = vmul.f32 %v823, %v832
      %v860 = vmul.f32 %v824, %v832
      %v861 = vmul.f32 %v825, %v832
      %v862 = vmul.f32 %v826, %v832
      %v863 = vmul.f32 %v827, %v832
      %v864 = vmul.f32 %v828, %v832
      %v865 = vadd.f32 %v833, 0.0
      %v866 = vadd.f32 %v834, 0.0
      %v867 = vadd.f32 %v835, 0.0
      %v868 = vadd.f32 %v836, 0.0
      %v869 = vadd.f32 %v837, 0.0
      %v870 = vadd.f32 %v838, 0.0
      %v871 = vadd.f32 %v839, 0.0
      %v872 = vadd.f32 %v840, 0.0
      %v873 = vadd.f32 %v841, 0.0
      %v874 = vadd.f32 %v842, 0.0
      %v875 = vadd.f32 %v843, 0.0
      %v876 = vadd.f32 %v844, 0.0
      %v877 = vadd.f32 %v845, 0.0
      %v878 = vadd.f32 %v846, 0.0
      %v879 = vadd.f32 %v847, 0.0
      %v880 = vadd.f32 %v848, 0.0
      %v881 = vadd.f32 %v849, 0.0
      %v882 = vadd.f32 %v850, 0.0
      %v883 = vadd.f32 %v851, 0.0
      %v884 = vadd.f32 %v852, 0.0
      %v885 = vadd.f32 %v853, 0.0
      %v886 = vadd.f32 %v854, 0.0
      %v887 = vadd.f32 %v855, 0.0
      %v888 = vadd.f32 %v856, 0.0
      %v889 = vadd.f32 %v857, 0.0
      %v890 = vadd.f32 %v858, 0.0
      %v891 = vadd.f32 %v859, 0.0
      %v892 = vadd.f32 %v860, 0.0
      %v893 = vadd.f32 %v861, 0.0
      %v894 = vadd.f32 %v862, 0.0
      %v895 = vadd.f32 %v863, 0.0
      %v896 = vadd.f32 %v864, 0.0
      %v897 = vld [vmem:[#allocation2 + $0x1] sm:$0xff]
      %v898 = vld [vmem:[#allocation2 + $0x9] sm:$0xff]
      %v899 = vld [vmem:[#allocation2 + $0x19] sm:$0xff]
      %v900 = vld [vmem:[#allocation2 + $0x21] sm:$0xff]
      %v901 = vld [vmem:[#allocation2 + $0x31] sm:$0xff]
      %v902 = vld [vmem:[#allocation2 + $0x39] sm:$0xff]
      %v903 = vld [vmem:[#allocation2 + $0x49] sm:$0xff]
      %v904 = vld [vmem:[#allocation2 + $0x51] sm:$0xff]
      %v905 = vld [vmem:[#allocation2 + $0x61] sm:$0xff]
      %v906 = vld [vmem:[#allocation2 + $0x69] sm:$0xff]
      %v907 = vld [vmem:[#allocation2 + $0x79] sm:$0xff]
      %v908 = vld [vmem:[#allocation2 + $0x81] sm:$0xff]
      %v909 = vld [vmem:[#allocation2 + $0x91] sm:$0xff]
      %v910 = vld [vmem:[#allocation2 + $0x99] sm:$0xff]
      %v911 = vld [vmem:[#allocation2 + $0xa9] sm:$0xff]
      %v912 = vld [vmem:[#allocation2 + $0xb1] sm:$0xff]
      %v913 = vld [vmem:[#allocation2 + $0xc1] sm:$0xff]
      %v914 = vld [vmem:[#allocation2 + $0xc9] sm:$0xff]
      %v915 = vld [vmem:[#allocation2 + $0xd9] sm:$0xff]
      %v916 = vld [vmem:[#allocation2 + $0xe1] sm:$0xff]
      %v917 = vld [vmem:[#allocation2 + $0xf1] sm:$0xff]
      %v918 = vld [vmem:[#allocation2 + $0xf9] sm:$0xff]
      %v919 = vld [vmem:[#allocation2 + $0x109] sm:$0xff]
      %v920 = vld [vmem:[#allocation2 + $0x111] sm:$0xff]
      %v921 = vld [vmem:[#allocation2 + $0x121] sm:$0xff]
      %v922 = vld [vmem:[#allocation2 + $0x129] sm:$0xff]
      %v923 = vld [vmem:[#allocation2 + $0x139] sm:$0xff]
      %v924 = vld [vmem:[#allocation2 + $0x141] sm:$0xff]
      %v925 = vld [vmem:[#allocation2 + $0x151] sm:$0xff]
      %v926 = vld [vmem:[#allocation2 + $0x159] sm:$0xff]
      %v927 = vld [vmem:[#allocation2 + $0x169] sm:$0xff]
      %v928 = vld [vmem:[#allocation2 + $0x171] sm:$0xff]
      %v929 = vlaneseq
      %v930 = vshrl.u32 %v929, 7
      %v931 = vsub.s32 1, %v930
      %v932 = vrot.slane %v794, %v931
      %v933 = vmul.f32 %v897, %v932
      %v934 = vmul.f32 %v898, %v932
      %v935 = vmul.f32 %v899, %v932
      %v936 = vmul.f32 %v900, %v932
      %v937 = vmul.f32 %v901, %v932
      %v938 = vmul.f32 %v902, %v932
      %v939 = vmul.f32 %v903, %v932
      %v940 = vmul.f32 %v904, %v932
      %v941 = vmul.f32 %v905, %v932
      %v942 = vmul.f32 %v906, %v932
      %v943 = vmul.f32 %v907, %v932
      %v944 = vmul.f32 %v908, %v932
      %v945 = vmul.f32 %v909, %v932
      %v946 = vmul.f32 %v910, %v932
      %v947 = vmul.f32 %v911, %v932
      %v948 = vmul.f32 %v912, %v932
      %v949 = vmul.f32 %v913, %v932
      %v950 = vmul.f32 %v914, %v932
      %v951 = vmul.f32 %v915, %v932
      %v952 = vmul.f32 %v916, %v932
      %v953 = vmul.f32 %v917, %v932
      %v954 = vmul.f32 %v918, %v932
      %v955 = vmul.f32 %v919, %v932
      %v956 = vmul.f32 %v920, %v932
      %v957 = vmul.f32 %v921, %v932
      %v958 = vmul.f32 %v922, %v932
      %v959 = vmul.f32 %v923, %v932
      %v960 = vmul.f32 %v924, %v932
      %v961 = vmul.f32 %v925, %v932
      %v962 = vmul.f32 %v926, %v932
      %v963 = vmul.f32 %v927, %v932
      %v964 = vmul.f32 %v928, %v932
      %v965 = vadd.f32 %v865, %v933
      %v966 = vadd.f32 %v866, %v934
      %v967 = vadd.f32 %v867, %v935
      %v968 = vadd.f32 %v868, %v936
      %v969 = vadd.f32 %v869, %v937
      %v970 = vadd.f32 %v870, %v938
      %v971 = vadd.f32 %v871, %v939
      %v972 = vadd.f32 %v872, %v940
      %v973 = vadd.f32 %v873, %v941
      %v974 = vadd.f32 %v874, %v942
      %v975 = vadd.f32 %v875, %v943
      %v976 = vadd.f32 %v876, %v944
      %v977 = vadd.f32 %v877, %v945
      %v978 = vadd.f32 %v878, %v946
      %v979 = vadd.f32 %v879, %v947
      %v980 = vadd.f32 %v880, %v948
      %v981 = vadd.f32 %v881, %v949
      %v982 = vadd.f32 %v882, %v950
      %v983 = vadd.f32 %v883, %v951
      %v984 = vadd.f32 %v884, %v952
      %v985 = vadd.f32 %v885, %v953
      %v986 = vadd.f32 %v886, %v954
      %v987 = vadd.f32 %v887, %v955
      %v988 = vadd.f32 %v888, %v956
      %v989 = vadd.f32 %v889, %v957
      %v990 = vadd.f32 %v890, %v958
      %v991 = vadd.f32 %v891, %v959
      %v992 = vadd.f32 %v892, %v960
      %v993 = vadd.f32 %v893, %v961
      %v994 = vadd.f32 %v894, %v962
      %v995 = vadd.f32 %v895, %v963
      %v996 = vadd.f32 %v896, %v964
      %v997 = vld [vmem:[#allocation2 + $0x2] sm:$0xff]
      %v998 = vld [vmem:[#allocation2 + $0xa] sm:$0xff]
      %v999 = vld [vmem:[#allocation2 + $0x1a] sm:$0xff]
      %v1000 = vld [vmem:[#allocation2 + $0x22] sm:$0xff]
      %v1001 = vld [vmem:[#allocation2 + $0x32] sm:$0xff]
      %v1002 = vld [vmem:[#allocation2 + $0x3a] sm:$0xff]
      %v1003 = vld [vmem:[#allocation2 + $0x4a] sm:$0xff]
      %v1004 = vld [vmem:[#allocation2 + $0x52] sm:$0xff]
      %v1005 = vld [vmem:[#allocation2 + $0x62] sm:$0xff]
      %v1006 = vld [vmem:[#allocation2 + $0x6a] sm:$0xff]
      %v1007 = vld [vmem:[#allocation2 + $0x7a] sm:$0xff]
      %v1008 = vld [vmem:[#allocation2 + $0x82] sm:$0xff]
      %v1009 = vld [vmem:[#allocation2 + $0x92] sm:$0xff]
      %v1010 = vld [vmem:[#allocation2 + $0x9a] sm:$0xff]
      %v1011 = vld [vmem:[#allocation2 + $0xaa] sm:$0xff]
      %v1012 = vld [vmem:[#allocation2 + $0xb2] sm:$0xff]
      %v1013 = vld [vmem:[#allocation2 + $0xc2] sm:$0xff]
      %v1014 = vld [vmem:[#allocation2 + $0xca] sm:$0xff]
      %v1015 = vld [vmem:[#allocation2 + $0xda] sm:$0xff]
      %v1016 = vld [vmem:[#allocation2 + $0xe2] sm:$0xff]
      %v1017 = vld [vmem:[#allocation2 + $0xf2] sm:$0xff]
      %v1018 = vld [vmem:[#allocation2 + $0xfa] sm:$0xff]
      %v1019 = vld [vmem:[#allocation2 + $0x10a] sm:$0xff]
      %v1020 = vld [vmem:[#allocation2 + $0x112] sm:$0xff]
      %v1021 = vld [vmem:[#allocation2 + $0x122] sm:$0xff]
      %v1022 = vld [vmem:[#allocation2 + $0x12a] sm:$0xff]
      %v1023 = vld [vmem:[#allocation2 + $0x13a] sm:$0xff]
      %v1024 = vld [vmem:[#allocation2 + $0x142] sm:$0xff]
      %v1025 = vld [vmem:[#allocation2 + $0x152] sm:$0xff]
      %v1026 = vld [vmem:[#allocation2 + $0x15a] sm:$0xff]
      %v1027 = vld [vmem:[#allocation2 + $0x16a] sm:$0xff]
      %v1028 = vld [vmem:[#allocation2 + $0x172] sm:$0xff]
      %v1029 = vlaneseq
      %v1030 = vshrl.u32 %v1029, 7
      %v1031 = vsub.s32 2, %v1030
      %v1032 = vrot.slane %v794, %v1031
      %v1033 = vmul.f32 %v997, %v1032
      %v1034 = vmul.f32 %v998, %v1032
      %v1035 = vmul.f32 %v999, %v1032
      %v1036 = vmul.f32 %v1000, %v1032
      %v1037 = vmul.f32 %v1001, %v1032
      %v1038 = vmul.f32 %v1002, %v1032
      %v1039 = vmul.f32 %v1003, %v1032
      %v1040 = vmul.f32 %v1004, %v1032
      %v1041 = vmul.f32 %v1005, %v1032
      %v1042 = vmul.f32 %v1006, %v1032
      %v1043 = vmul.f32 %v1007, %v1032
      %v1044 = vmul.f32 %v1008, %v1032
      %v1045 = vmul.f32 %v1009, %v1032
      %v1046 = vmul.f32 %v1010, %v1032
      %v1047 = vmul.f32 %v1011, %v1032
      %v1048 = vmul.f32 %v1012, %v1032
      %v1049 = vmul.f32 %v1013, %v1032
      %v1050 = vmul.f32 %v1014, %v1032
      %v1051 = vmul.f32 %v1015, %v1032
      %v1052 = vmul.f32 %v1016, %v1032
      %v1053 = vmul.f32 %v1017, %v1032
      %v1054 = vmul.f32 %v1018, %v1032
      %v1055 = vmul.f32 %v1019, %v1032
      %v1056 = vmul.f32 %v1020, %v1032
      %v1057 = vmul.f32 %v1021, %v1032
      %v1058 = vmul.f32 %v1022, %v1032
      %v1059 = vmul.f32 %v1023, %v1032
      %v1060 = vmul.f32 %v1024, %v1032
      %v1061 = vmul.f32 %v1025, %v1032
      %v1062 = vmul.f32 %v1026, %v1032
      %v1063 = vmul.f32 %v1027, %v1032
      %v1064 = vmul.f32 %v1028, %v1032
      %v1065 = vadd.f32 %v965, %v1033
      %v1066 = vadd.f32 %v966, %v1034
      %v1067 = vadd.f32 %v967, %v1035
      %v1068 = vadd.f32 %v968, %v1036
      %v1069 = vadd.f32 %v969, %v1037
      %v1070 = vadd.f32 %v970, %v1038
      %v1071 = vadd.f32 %v971, %v1039
      %v1072 = vadd.f32 %v972, %v1040
      %v1073 = vadd.f32 %v973, %v1041
      %v1074 = vadd.f32 %v974, %v1042
      %v1075 = vadd.f32 %v975, %v1043
      %v1076 = vadd.f32 %v976, %v1044
      %v1077 = vadd.f32 %v977, %v1045
      %v1078 = vadd.f32 %v978, %v1046
      %v1079 = vadd.f32 %v979, %v1047
      %v1080 = vadd.f32 %v980, %v1048
      %v1081 = vadd.f32 %v981, %v1049
      %v1082 = vadd.f32 %v982, %v1050
      %v1083 = vadd.f32 %v983, %v1051
      %v1084 = vadd.f32 %v984, %v1052
      %v1085 = vadd.f32 %v985, %v1053
      %v1086 = vadd.f32 %v986, %v1054
      %v1087 = vadd.f32 %v987, %v1055
      %v1088 = vadd.f32 %v988, %v1056
      %v1089 = vadd.f32 %v989, %v1057
      %v1090 = vadd.f32 %v990, %v1058
      %v1091 = vadd.f32 %v991, %v1059
      %v1092 = vadd.f32 %v992, %v1060
      %v1093 = vadd.f32 %v993, %v1061
      %v1094 = vadd.f32 %v994, %v1062
      %v1095 = vadd.f32 %v995, %v1063
      %v1096 = vadd.f32 %v996, %v1064
      %v1097 = vld [vmem:[%s761] sm:$0xff]
      %v1098 = vld [vmem:[%s761 + $0x8] sm:$0xff]
      %v1099 = vld [vmem:[%s761 + $0x18] sm:$0xff]
      %v1100 = vld [vmem:[%s761 + $0x20] sm:$0xff]
      %v1101 = vld [vmem:[%s761 + $0x30] sm:$0xff]
      %v1102 = vld [vmem:[%s761 + $0x38] sm:$0xff]
      %v1103 = vld [vmem:[%s761 + $0x48] sm:$0xff]
      %v1104 = vld [vmem:[%s761 + $0x50] sm:$0xff]
      %v1105 = vld [vmem:[%s761 + $0x60] sm:$0xff]
      %v1106 = vld [vmem:[%s761 + $0x68] sm:$0xff]
      %v1107 = vld [vmem:[%s761 + $0x78] sm:$0xff]
      %v1108 = vld [vmem:[%s761 + $0x80] sm:$0xff]
      %v1109 = vld [vmem:[%s761 + $0x90] sm:$0xff]
      %v1110 = vld [vmem:[%s761 + $0x98] sm:$0xff]
      %v1111 = vld [vmem:[%s761 + $0xa8] sm:$0xff]
      %v1112 = vld [vmem:[%s761 + $0xb0] sm:$0xff]
      %v1113 = vld [vmem:[%s761 + $0xc0] sm:$0xff]
      %v1114 = vld [vmem:[%s761 + $0xc8] sm:$0xff]
      %v1115 = vld [vmem:[%s761 + $0xd8] sm:$0xff]
      %v1116 = vld [vmem:[%s761 + $0xe0] sm:$0xff]
      %v1117 = vld [vmem:[%s761 + $0xf0] sm:$0xff]
      %v1118 = vld [vmem:[%s761 + $0xf8] sm:$0xff]
      %v1119 = vld [vmem:[%s761 + $0x108] sm:$0xff]
      %v1120 = vld [vmem:[%s761 + $0x110] sm:$0xff]
      %v1121 = vld [vmem:[%s761 + $0x120] sm:$0xff]
      %v1122 = vld [vmem:[%s761 + $0x128] sm:$0xff]
      %v1123 = vld [vmem:[%s761 + $0x138] sm:$0xff]
      %v1124 = vld [vmem:[%s761 + $0x140] sm:$0xff]
      %v1125 = vld [vmem:[%s761 + $0x150] sm:$0xff]
      %v1126 = vld [vmem:[%s761 + $0x158] sm:$0xff]
      %v1127 = vld [vmem:[%s761 + $0x168] sm:$0xff]
      %v1128 = vld [vmem:[%s761 + $0x170] sm:$0xff]
      %v1129 = vlaneseq
      %v1130 = vshrl.u32 %v1129, 7
      %v1131 = vsub.s32 0, %v1130
      %v1132 = vrot.slane %v795, %v1131
      %v1133 = vmul.f32 %v1097, %v1132
      %v1134 = vmul.f32 %v1098, %v1132
      %v1135 = vmul.f32 %v1099, %v1132
      %v1136 = vmul.f32 %v1100, %v1132
      %v1137 = vmul.f32 %v1101, %v1132
      %v1138 = vmul.f32 %v1102, %v1132
      %v1139 = vmul.f32 %v1103, %v1132
      %v1140 = vmul.f32 %v1104, %v1132
      %v1141 = vmul.f32 %v1105, %v1132
      %v1142 = vmul.f32 %v1106, %v1132
      %v1143 = vmul.f32 %v1107, %v1132
      %v1144 = vmul.f32 %v1108, %v1132
      %v1145 = vmul.f32 %v1109, %v1132
      %v1146 = vmul.f32 %v1110, %v1132
      %v1147 = vmul.f32 %v1111, %v1132
      %v1148 = vmul.f32 %v1112, %v1132
      %v1149 = vmul.f32 %v1113, %v1132
      %v1150 = vmul.f32 %v1114, %v1132
      %v1151 = vmul.f32 %v1115, %v1132
      %v1152 = vmul.f32 %v1116, %v1132
      %v1153 = vmul.f32 %v1117, %v1132
      %v1154 = vmul.f32 %v1118, %v1132
      %v1155 = vmul.f32 %v1119, %v1132
      %v1156 = vmul.f32 %v1120, %v1132
      %v1157 = vmul.f32 %v1121, %v1132
      %v1158 = vmul.f32 %v1122, %v1132
      %v1159 = vmul.f32 %v1123, %v1132
      %v1160 = vmul.f32 %v1124, %v1132
      %v1161 = vmul.f32 %v1125, %v1132
      %v1162 = vmul.f32 %v1126, %v1132
      %v1163 = vmul.f32 %v1127, %v1132
      %v1164 = vmul.f32 %v1128, %v1132
      %v1165 = vadd.f32 %v1065, %v1133
      %v1166 = vadd.f32 %v1066, %v1134
      %v1167 = vadd.f32 %v1067, %v1135
      %v1168 = vadd.f32 %v1068, %v1136
      %v1169 = vadd.f32 %v1069, %v1137
      %v1170 = vadd.f32 %v1070, %v1138
      %v1171 = vadd.f32 %v1071, %v1139
      %v1172 = vadd.f32 %v1072, %v1140
      %v1173 = vadd.f32 %v1073, %v1141
      %v1174 = vadd.f32 %v1074, %v1142
      %v1175 = vadd.f32 %v1075, %v1143
      %v1176 = vadd.f32 %v1076, %v1144
      %v1177 = vadd.f32 %v1077, %v1145
      %v1178 = vadd.f32 %v1078, %v1146
      %v1179 = vadd.f32 %v1079, %v1147
      %v1180 = vadd.f32 %v1080, %v1148
      %v1181 = vadd.f32 %v1081, %v1149
      %v1182 = vadd.f32 %v1082, %v1150
      %v1183 = vadd.f32 %v1083, %v1151
      %v1184 = vadd.f32 %v1084, %v1152
      %v1185 = vadd.f32 %v1085, %v1153
      %v1186 = vadd.f32 %v1086, %v1154
      %v1187 = vadd.f32 %v1087, %v1155
      %v1188 = vadd.f32 %v1088, %v1156
      %v1189 = vadd.f32 %v1089, %v1157
      %v1190 = vadd.f32 %v1090, %v1158
      %v1191 = vadd.f32 %v1091, %v1159
      %v1192 = vadd.f32 %v1092, %v1160
      %v1193 = vadd.f32 %v1093, %v1161
      %v1194 = vadd.f32 %v1094, %v1162
      %v1195 = vadd.f32 %v1095, %v1163
      %v1196 = vadd.f32 %v1096, %v1164
      %v1197 = vld [vmem:[%s761 + $0x1] sm:$0xff]
      %v1198 = vld [vmem:[%s761 + $0x9] sm:$0xff]
      %v1199 = vld [vmem:[%s761 + $0x19] sm:$0xff]
      %v1200 = vld [vmem:[%s761 + $0x21] sm:$0xff]
      %v1201 = vld [vmem:[%s761 + $0x31] sm:$0xff]
      %v1202 = vld [vmem:[%s761 + $0x39] sm:$0xff]
      %v1203 = vld [vmem:[%s761 + $0x49] sm:$0xff]
      %v1204 = vld [vmem:[%s761 + $0x51] sm:$0xff]
      %v1205 = vld [vmem:[%s761 + $0x61] sm:$0xff]
      %v1206 = vld [vmem:[%s761 + $0x69] sm:$0xff]
      %v1207 = vld [vmem:[%s761 + $0x79] sm:$0xff]
      %v1208 = vld [vmem:[%s761 + $0x81] sm:$0xff]
      %v1209 = vld [vmem:[%s761 + $0x91] sm:$0xff]
      %v1210 = vld [vmem:[%s761 + $0x99] sm:$0xff]
      %v1211 = vld [vmem:[%s761 + $0xa9] sm:$0xff]
      %v1212 = vld [vmem:[%s761 + $0xb1] sm:$0xff]
      %v1213 = vld [vmem:[%s761 + $0xc1] sm:$0xff]
      %v1214 = vld [vmem:[%s761 + $0xc9] sm:$0xff]
      %v1215 = vld [vmem:[%s761 + $0xd9] sm:$0xff]
      %v1216 = vld [vmem:[%s761 + $0xe1] sm:$0xff]
      %v1217 = vld [vmem:[%s761 + $0xf1] sm:$0xff]
      %v1218 = vld [vmem:[%s761 + $0xf9] sm:$0xff]
      %v1219 = vld [vmem:[%s761 + $0x109] sm:$0xff]
      %v1220 = vld [vmem:[%s761 + $0x111] sm:$0xff]
      %v1221 = vld [vmem:[%s761 + $0x121] sm:$0xff]
      %v1222 = vld [vmem:[%s761 + $0x129] sm:$0xff]
      %v1223 = vld [vmem:[%s761 + $0x139] sm:$0xff]
      %v1224 = vld [vmem:[%s761 + $0x141] sm:$0xff]
      %v1225 = vld [vmem:[%s761 + $0x151] sm:$0xff]
      %v1226 = vld [vmem:[%s761 + $0x159] sm:$0xff]
      %v1227 = vld [vmem:[%s761 + $0x169] sm:$0xff]
      %v1228 = vld [vmem:[%s761 + $0x171] sm:$0xff]
      %v1229 = vlaneseq
      %v1230 = vshrl.u32 %v1229, 7
      %v1231 = vsub.s32 1, %v1230
      %v1232 = vrot.slane %v795, %v1231
      %v1233 = vmul.f32 %v1197, %v1232
      %v1234 = vmul.f32 %v1198, %v1232
      %v1235 = vmul.f32 %v1199, %v1232
      %v1236 = vmul.f32 %v1200, %v1232
      %v1237 = vmul.f32 %v1201, %v1232
      %v1238 = vmul.f32 %v1202, %v1232
      %v1239 = vmul.f32 %v1203, %v1232
      %v1240 = vmul.f32 %v1204, %v1232
      %v1241 = vmul.f32 %v1205, %v1232
      %v1242 = vmul.f32 %v1206, %v1232
      %v1243 = vmul.f32 %v1207, %v1232
      %v1244 = vmul.f32 %v1208, %v1232
      %v1245 = vmul.f32 %v1209, %v1232
      %v1246 = vmul.f32 %v1210, %v1232
      %v1247 = vmul.f32 %v1211, %v1232
      %v1248 = vmul.f32 %v1212, %v1232
      %v1249 = vmul.f32 %v1213, %v1232
      %v1250 = vmul.f32 %v1214, %v1232
      %v1251 = vmul.f32 %v1215, %v1232
      %v1252 = vmul.f32 %v1216, %v1232
      %v1253 = vmul.f32 %v1217, %v1232
      %v1254 = vmul.f32 %v1218, %v1232
      %v1255 = vmul.f32 %v1219, %v1232
      %v1256 = vmul.f32 %v1220, %v1232
      %v1257 = vmul.f32 %v1221, %v1232
      %v1258 = vmul.f32 %v1222, %v1232
      %v1259 = vmul.f32 %v1223, %v1232
      %v1260 = vmul.f32 %v1224, %v1232
      %v1261 = vmul.f32 %v1225, %v1232
      %v1262 = vmul.f32 %v1226, %v1232
      %v1263 = vmul.f32 %v1227, %v1232
      %v1264 = vmul.f32 %v1228, %v1232
      %v1265 = vadd.f32 %v1165, %v1233
      %v1266 = vadd.f32 %v1166, %v1234
      %v1267 = vadd.f32 %v1167, %v1235
      %v1268 = vadd.f32 %v1168, %v1236
      %v1269 = vadd.f32 %v1169, %v1237
      %v1270 = vadd.f32 %v1170, %v1238
      %v1271 = vadd.f32 %v1171, %v1239
      %v1272 = vadd.f32 %v1172, %v1240
      %v1273 = vadd.f32 %v1173, %v1241
      %v1274 = vadd.f32 %v1174, %v1242
      %v1275 = vadd.f32 %v1175, %v1243
      %v1276 = vadd.f32 %v1176, %v1244
      %v1277 = vadd.f32 %v1177, %v1245
      %v1278 = vadd.f32 %v1178, %v1246
      %v1279 = vadd.f32 %v1179, %v1247
      %v1280 = vadd.f32 %v1180, %v1248
      %v1281 = vadd.f32 %v1181, %v1249
      %v1282 = vadd.f32 %v1182, %v1250
      %v1283 = vadd.f32 %v1183, %v1251
      %v1284 = vadd.f32 %v1184, %v1252
      %v1285 = vadd.f32 %v1185, %v1253
      %v1286 = vadd.f32 %v1186, %v1254
      %v1287 = vadd.f32 %v1187, %v1255
      %v1288 = vadd.f32 %v1188, %v1256
      %v1289 = vadd.f32 %v1189, %v1257
      %v1290 = vadd.f32 %v1190, %v1258
      %v1291 = vadd.f32 %v1191, %v1259
      %v1292 = vadd.f32 %v1192, %v1260
      %v1293 = vadd.f32 %v1193, %v1261
      %v1294 = vadd.f32 %v1194, %v1262
      %v1295 = vadd.f32 %v1195, %v1263
      %v1296 = vadd.f32 %v1196, %v1264
      %v1297 = vld [vmem:[%s761 + $0x2] sm:$0xff]
      %v1298 = vld [vmem:[%s761 + $0xa] sm:$0xff]
      %v1299 = vld [vmem:[%s761 + $0x1a] sm:$0xff]
      %v1300 = vld [vmem:[%s761 + $0x22] sm:$0xff]
      %v1301 = vld [vmem:[%s761 + $0x32] sm:$0xff]
      %v1302 = vld [vmem:[%s761 + $0x3a] sm:$0xff]
      %v1303 = vld [vmem:[%s761 + $0x4a] sm:$0xff]
      %v1304 = vld [vmem:[%s761 + $0x52] sm:$0xff]
      %v1305 = vld [vmem:[%s761 + $0x62] sm:$0xff]
      %v1306 = vld [vmem:[%s761 + $0x6a] sm:$0xff]
      %v1307 = vld [vmem:[%s761 + $0x7a] sm:$0xff]
      %v1308 = vld [vmem:[%s761 + $0x82] sm:$0xff]
      %v1309 = vld [vmem:[%s761 + $0x92] sm:$0xff]
      %v1310 = vld [vmem:[%s761 + $0x9a] sm:$0xff]
      %v1311 = vld [vmem:[%s761 + $0xaa] sm:$0xff]
      %v1312 = vld [vmem:[%s761 + $0xb2] sm:$0xff]
      %v1313 = vld [vmem:[%s761 + $0xc2] sm:$0xff]
      %v1314 = vld [vmem:[%s761 + $0xca] sm:$0xff]
      %v1315 = vld [vmem:[%s761 + $0xda] sm:$0xff]
      %v1316 = vld [vmem:[%s761 + $0xe2] sm:$0xff]
      %v1317 = vld [vmem:[%s761 + $0xf2] sm:$0xff]
      %v1318 = vld [vmem:[%s761 + $0xfa] sm:$0xff]
      %v1319 = vld [vmem:[%s761 + $0x10a] sm:$0xff]
      %v1320 = vld [vmem:[%s761 + $0x112] sm:$0xff]
      %v1321 = vld [vmem:[%s761 + $0x122] sm:$0xff]
      %v1322 = vld [vmem:[%s761 + $0x12a] sm:$0xff]
      %v1323 = vld [vmem:[%s761 + $0x13a] sm:$0xff]
      %v1324 = vld [vmem:[%s761 + $0x142] sm:$0xff]
      %v1325 = vld [vmem:[%s761 + $0x152] sm:$0xff]
      %v1326 = vld [vmem:[%s761 + $0x15a] sm:$0xff]
      %v1327 = vld [vmem:[%s761 + $0x16a] sm:$0xff]
      %v1328 = vld [vmem:[%s761 + $0x172] sm:$0xff]
      %v1329 = vlaneseq
      %v1330 = vshrl.u32 %v1329, 7
      %v1331 = vsub.s32 2, %v1330
      %v1332 = vrot.slane %v795, %v1331
      %v1333 = vmul.f32 %v1297, %v1332
      %v1334 = vmul.f32 %v1298, %v1332
      %v1335 = vmul.f32 %v1299, %v1332
      %v1336 = vmul.f32 %v1300, %v1332
      %v1337 = vmul.f32 %v1301, %v1332
      %v1338 = vmul.f32 %v1302, %v1332
      %v1339 = vmul.f32 %v1303, %v1332
      %v1340 = vmul.f32 %v1304, %v1332
      %v1341 = vmul.f32 %v1305, %v1332
      %v1342 = vmul.f32 %v1306, %v1332
      %v1343 = vmul.f32 %v1307, %v1332
      %v1344 = vmul.f32 %v1308, %v1332
      %v1345 = vmul.f32 %v1309, %v1332
      %v1346 = vmul.f32 %v1310, %v1332
      %v1347 = vmul.f32 %v1311, %v1332
      %v1348 = vmul.f32 %v1312, %v1332
      %v1349 = vmul.f32 %v1313, %v1332
      %v1350 = vmul.f32 %v1314, %v1332
      %v1351 = vmul.f32 %v1315, %v1332
      %v1352 = vmul.f32 %v1316, %v1332
      %v1353 = vmul.f32 %v1317, %v1332
      %v1354 = vmul.f32 %v1318, %v1332
      %v1355 = vmul.f32 %v1319, %v1332
      %v1356 = vmul.f32 %v1320, %v1332
      %v1357 = vmul.f32 %v1321, %v1332
      %v1358 = vmul.f32 %v1322, %v1332
      %v1359 = vmul.f32 %v1323, %v1332
      %v1360 = vmul.f32 %v1324, %v1332
      %v1361 = vmul.f32 %v1325, %v1332
      %v1362 = vmul.f32 %v1326, %v1332
      %v1363 = vmul.f32 %v1327, %v1332
      %v1364 = vmul.f32 %v1328, %v1332
      %v1365 = vadd.f32 %v1265, %v1333
      %v1366 = vadd.f32 %v1266, %v1334
      %v1367 = vadd.f32 %v1267, %v1335
      %v1368 = vadd.f32 %v1268, %v1336
      %v1369 = vadd.f32 %v1269, %v1337
      %v1370 = vadd.f32 %v1270, %v1338
      %v1371 = vadd.f32 %v1271, %v1339
      %v1372 = vadd.f32 %v1272, %v1340
      %v1373 = vadd.f32 %v1273, %v1341
      %v1374 = vadd.f32 %v1274, %v1342
      %v1375 = vadd.f32 %v1275, %v1343
      %v1376 = vadd.f32 %v1276, %v1344
      %v1377 = vadd.f32 %v1277, %v1345
      %v1378 = vadd.f32 %v1278, %v1346
      %v1379 = vadd.f32 %v1279, %v1347
      %v1380 = vadd.f32 %v1280, %v1348
      %v1381 = vadd.f32 %v1281, %v1349
      %v1382 = vadd.f32 %v1282, %v1350
      %v1383 = vadd.f32 %v1283, %v1351
      %v1384 = vadd.f32 %v1284, %v1352
      %v1385 = vadd.f32 %v1285, %v1353
      %v1386 = vadd.f32 %v1286, %v1354
      %v1387 = vadd.f32 %v1287, %v1355
      %v1388 = vadd.f32 %v1288, %v1356
      %v1389 = vadd.f32 %v1289, %v1357
      %v1390 = vadd.f32 %v1290, %v1358
      %v1391 = vadd.f32 %v1291, %v1359
      %v1392 = vadd.f32 %v1292, %v1360
      %v1393 = vadd.f32 %v1293, %v1361
      %v1394 = vadd.f32 %v1294, %v1362
      %v1395 = vadd.f32 %v1295, %v1363
      %v1396 = vadd.f32 %v1296, %v1364
      %s1397 = scalar_lea.vmem [#allocation2], 48
      %v1398 = vld [vmem:[%s1397] sm:$0xff]
      %v1399 = vld [vmem:[%s1397 + $0x8] sm:$0xff]
      %v1400 = vld [vmem:[%s1397 + $0x18] sm:$0xff]
      %v1401 = vld [vmem:[%s1397 + $0x20] sm:$0xff]
      %v1402 = vld [vmem:[%s1397 + $0x30] sm:$0xff]
      %v1403 = vld [vmem:[%s1397 + $0x38] sm:$0xff]
      %v1404 = vld [vmem:[%s1397 + $0x48] sm:$0xff]
      %v1405 = vld [vmem:[%s1397 + $0x50] sm:$0xff]
      %v1406 = vld [vmem:[%s1397 + $0x60] sm:$0xff]
      %v1407 = vld [vmem:[%s1397 + $0x68] sm:$0xff]
      %v1408 = vld [vmem:[%s1397 + $0x78] sm:$0xff]
      %v1409 = vld [vmem:[%s1397 + $0x80] sm:$0xff]
      %v1410 = vld [vmem:[%s1397 + $0x90] sm:$0xff]
      %v1411 = vld [vmem:[%s1397 + $0x98] sm:$0xff]
      %v1412 = vld [vmem:[%s1397 + $0xa8] sm:$0xff]
      %v1413 = vld [vmem:[%s1397 + $0xb0] sm:$0xff]
      %v1414 = vld [vmem:[%s1397 + $0xc0] sm:$0xff]
      %v1415 = vld [vmem:[%s1397 + $0xc8] sm:$0xff]
      %v1416 = vld [vmem:[%s1397 + $0xd8] sm:$0xff]
      %v1417 = vld [vmem:[%s1397 + $0xe0] sm:$0xff]
      %v1418 = vld [vmem:[%s1397 + $0xf0] sm:$0xff]
      %v1419 = vld [vmem:[%s1397 + $0xf8] sm:$0xff]
      %v1420 = vld [vmem:[%s1397 + $0x108] sm:$0xff]
      %v1421 = vld [vmem:[%s1397 + $0x110] sm:$0xff]
      %v1422 = vld [vmem:[%s1397 + $0x120] sm:$0xff]
      %v1423 = vld [vmem:[%s1397 + $0x128] sm:$0xff]
      %v1424 = vld [vmem:[%s1397 + $0x138] sm:$0xff]
      %v1425 = vld [vmem:[%s1397 + $0x140] sm:$0xff]
      %v1426 = vld [vmem:[%s1397 + $0x150] sm:$0xff]
      %v1427 = vld [vmem:[%s1397 + $0x158] sm:$0xff]
      %v1428 = vld [vmem:[%s1397 + $0x168] sm:$0xff]
      %v1429 = vld [vmem:[%s1397 + $0x170] sm:$0xff]
      %v1430 = vlaneseq
      %v1431 = vshrl.u32 %v1430, 7
      %v1432 = vsub.s32 0, %v1431
      %v1433 = vrot.slane %v796, %v1432
      %v1434 = vmul.f32 %v1398, %v1433
      %v1435 = vmul.f32 %v1399, %v1433
      %v1436 = vmul.f32 %v1400, %v1433
      %v1437 = vmul.f32 %v1401, %v1433
      %v1438 = vmul.f32 %v1402, %v1433
      %v1439 = vmul.f32 %v1403, %v1433
      %v1440 = vmul.f32 %v1404, %v1433
      %v1441 = vmul.f32 %v1405, %v1433
      %v1442 = vmul.f32 %v1406, %v1433
      %v1443 = vmul.f32 %v1407, %v1433
      %v1444 = vmul.f32 %v1408, %v1433
      %v1445 = vmul.f32 %v1409, %v1433
      %v1446 = vmul.f32 %v1410, %v1433
      %v1447 = vmul.f32 %v1411, %v1433
      %v1448 = vmul.f32 %v1412, %v1433
      %v1449 = vmul.f32 %v1413, %v1433
      %v1450 = vmul.f32 %v1414, %v1433
      %v1451 = vmul.f32 %v1415, %v1433
      %v1452 = vmul.f32 %v1416, %v1433
      %v1453 = vmul.f32 %v1417, %v1433
      %v1454 = vmul.f32 %v1418, %v1433
      %v1455 = vmul.f32 %v1419, %v1433
      %v1456 = vmul.f32 %v1420, %v1433
      %v1457 = vmul.f32 %v1421, %v1433
      %v1458 = vmul.f32 %v1422, %v1433
      %v1459 = vmul.f32 %v1423, %v1433
      %v1460 = vmul.f32 %v1424, %v1433
      %v1461 = vmul.f32 %v1425, %v1433
      %v1462 = vmul.f32 %v1426, %v1433
      %v1463 = vmul.f32 %v1427, %v1433
      %v1464 = vmul.f32 %v1428, %v1433
      %v1465 = vmul.f32 %v1429, %v1433
      %v1466 = vadd.f32 %v1365, %v1434
      %v1467 = vadd.f32 %v1366, %v1435
      %v1468 = vadd.f32 %v1367, %v1436
      %v1469 = vadd.f32 %v1368, %v1437
      %v1470 = vadd.f32 %v1369, %v1438
      %v1471 = vadd.f32 %v1370, %v1439
      %v1472 = vadd.f32 %v1371, %v1440
      %v1473 = vadd.f32 %v1372, %v1441
      %v1474 = vadd.f32 %v1373, %v1442
      %v1475 = vadd.f32 %v1374, %v1443
      %v1476 = vadd.f32 %v1375, %v1444
      %v1477 = vadd.f32 %v1376, %v1445
      %v1478 = vadd.f32 %v1377, %v1446
      %v1479 = vadd.f32 %v1378, %v1447
      %v1480 = vadd.f32 %v1379, %v1448
      %v1481 = vadd.f32 %v1380, %v1449
      %v1482 = vadd.f32 %v1381, %v1450
      %v1483 = vadd.f32 %v1382, %v1451
      %v1484 = vadd.f32 %v1383, %v1452
      %v1485 = vadd.f32 %v1384, %v1453
      %v1486 = vadd.f32 %v1385, %v1454
      %v1487 = vadd.f32 %v1386, %v1455
      %v1488 = vadd.f32 %v1387, %v1456
      %v1489 = vadd.f32 %v1388, %v1457
      %v1490 = vadd.f32 %v1389, %v1458
      %v1491 = vadd.f32 %v1390, %v1459
      %v1492 = vadd.f32 %v1391, %v1460
      %v1493 = vadd.f32 %v1392, %v1461
      %v1494 = vadd.f32 %v1393, %v1462
      %v1495 = vadd.f32 %v1394, %v1463
      %v1496 = vadd.f32 %v1395, %v1464
      %v1497 = vadd.f32 %v1396, %v1465
      %v1498 = vld [vmem:[%s1397 + $0x1] sm:$0xff]
      %v1499 = vld [vmem:[%s1397 + $0x9] sm:$0xff]
      %v1500 = vld [vmem:[%s1397 + $0x19] sm:$0xff]
      %v1501 = vld [vmem:[%s1397 + $0x21] sm:$0xff]
      %v1502 = vld [vmem:[%s1397 + $0x31] sm:$0xff]
      %v1503 = vld [vmem:[%s1397 + $0x39] sm:$0xff]
      %v1504 = vld [vmem:[%s1397 + $0x49] sm:$0xff]
      %v1505 = vld [vmem:[%s1397 + $0x51] sm:$0xff]
      %v1506 = vld [vmem:[%s1397 + $0x61] sm:$0xff]
      %v1507 = vld [vmem:[%s1397 + $0x69] sm:$0xff]
      %v1508 = vld [vmem:[%s1397 + $0x79] sm:$0xff]
      %v1509 = vld [vmem:[%s1397 + $0x81] sm:$0xff]
      %v1510 = vld [vmem:[%s1397 + $0x91] sm:$0xff]
      %v1511 = vld [vmem:[%s1397 + $0x99] sm:$0xff]
      %v1512 = vld [vmem:[%s1397 + $0xa9] sm:$0xff]
      %v1513 = vld [vmem:[%s1397 + $0xb1] sm:$0xff]
      %v1514 = vld [vmem:[%s1397 + $0xc1] sm:$0xff]
      %v1515 = vld [vmem:[%s1397 + $0xc9] sm:$0xff]
      %v1516 = vld [vmem:[%s1397 + $0xd9] sm:$0xff]
      %v1517 = vld [vmem:[%s1397 + $0xe1] sm:$0xff]
      %v1518 = vld [vmem:[%s1397 + $0xf1] sm:$0xff]
      %v1519 = vld [vmem:[%s1397 + $0xf9] sm:$0xff]
      %v1520 = vld [vmem:[%s1397 + $0x109] sm:$0xff]
      %v1521 = vld [vmem:[%s1397 + $0x111] sm:$0xff]
      %v1522 = vld [vmem:[%s1397 + $0x121] sm:$0xff]
      %v1523 = vld [vmem:[%s1397 + $0x129] sm:$0xff]
      %v1524 = vld [vmem:[%s1397 + $0x139] sm:$0xff]
      %v1525 = vld [vmem:[%s1397 + $0x141] sm:$0xff]
      %v1526 = vld [vmem:[%s1397 + $0x151] sm:$0xff]
      %v1527 = vld [vmem:[%s1397 + $0x159] sm:$0xff]
      %v1528 = vld [vmem:[%s1397 + $0x169] sm:$0xff]
      %v1529 = vld [vmem:[%s1397 + $0x171] sm:$0xff]
      %v1530 = vlaneseq
      %v1531 = vshrl.u32 %v1530, 7
      %v1532 = vsub.s32 1, %v1531
      %v1533 = vrot.slane %v796, %v1532
      %v1534 = vmul.f32 %v1498, %v1533
      %v1535 = vmul.f32 %v1499, %v1533
      %v1536 = vmul.f32 %v1500, %v1533
      %v1537 = vmul.f32 %v1501, %v1533
      %v1538 = vmul.f32 %v1502, %v1533
      %v1539 = vmul.f32 %v1503, %v1533
      %v1540 = vmul.f32 %v1504, %v1533
      %v1541 = vmul.f32 %v1505, %v1533
      %v1542 = vmul.f32 %v1506, %v1533
      %v1543 = vmul.f32 %v1507, %v1533
      %v1544 = vmul.f32 %v1508, %v1533
      %v1545 = vmul.f32 %v1509, %v1533
      %v1546 = vmul.f32 %v1510, %v1533
      %v1547 = vmul.f32 %v1511, %v1533
      %v1548 = vmul.f32 %v1512, %v1533
      %v1549 = vmul.f32 %v1513, %v1533
      %v1550 = vmul.f32 %v1514, %v1533
      %v1551 = vmul.f32 %v1515, %v1533
      %v1552 = vmul.f32 %v1516, %v1533
      %v1553 = vmul.f32 %v1517, %v1533
      %v1554 = vmul.f32 %v1518, %v1533
      %v1555 = vmul.f32 %v1519, %v1533
      %v1556 = vmul.f32 %v1520, %v1533
      %v1557 = vmul.f32 %v1521, %v1533
      %v1558 = vmul.f32 %v1522, %v1533
      %v1559 = vmul.f32 %v1523, %v1533
      %v1560 = vmul.f32 %v1524, %v1533
      %v1561 = vmul.f32 %v1525, %v1533
      %v1562 = vmul.f32 %v1526, %v1533
      %v1563 = vmul.f32 %v1527, %v1533
      %v1564 = vmul.f32 %v1528, %v1533
      %v1565 = vmul.f32 %v1529, %v1533
      %v1566 = vadd.f32 %v1466, %v1534
      %v1567 = vadd.f32 %v1467, %v1535
      %v1568 = vadd.f32 %v1468, %v1536
      %v1569 = vadd.f32 %v1469, %v1537
      %v1570 = vadd.f32 %v1470, %v1538
      %v1571 = vadd.f32 %v1471, %v1539
      %v1572 = vadd.f32 %v1472, %v1540
      %v1573 = vadd.f32 %v1473, %v1541
      %v1574 = vadd.f32 %v1474, %v1542
      %v1575 = vadd.f32 %v1475, %v1543
      %v1576 = vadd.f32 %v1476, %v1544
      %v1577 = vadd.f32 %v1477, %v1545
      %v1578 = vadd.f32 %v1478, %v1546
      %v1579 = vadd.f32 %v1479, %v1547
      %v1580 = vadd.f32 %v1480, %v1548
      %v1581 = vadd.f32 %v1481, %v1549
      %v1582 = vadd.f32 %v1482, %v1550
      %v1583 = vadd.f32 %v1483, %v1551
      %v1584 = vadd.f32 %v1484, %v1552
      %v1585 = vadd.f32 %v1485, %v1553
      %v1586 = vadd.f32 %v1486, %v1554
      %v1587 = vadd.f32 %v1487, %v1555
      %v1588 = vadd.f32 %v1488, %v1556
      %v1589 = vadd.f32 %v1489, %v1557
      %v1590 = vadd.f32 %v1490, %v1558
      %v1591 = vadd.f32 %v1491, %v1559
      %v1592 = vadd.f32 %v1492, %v1560
      %v1593 = vadd.f32 %v1493, %v1561
      %v1594 = vadd.f32 %v1494, %v1562
      %v1595 = vadd.f32 %v1495, %v1563
      %v1596 = vadd.f32 %v1496, %v1564
      %v1597 = vadd.f32 %v1497, %v1565
      %v1598 = vld [vmem:[%s1397 + $0x2] sm:$0xff]
      %v1599 = vld [vmem:[%s1397 + $0xa] sm:$0xff]
      %v1600 = vld [vmem:[%s1397 + $0x1a] sm:$0xff]
      %v1601 = vld [vmem:[%s1397 + $0x22] sm:$0xff]
      %v1602 = vld [vmem:[%s1397 + $0x32] sm:$0xff]
      %v1603 = vld [vmem:[%s1397 + $0x3a] sm:$0xff]
      %v1604 = vld [vmem:[%s1397 + $0x4a] sm:$0xff]
      %v1605 = vld [vmem:[%s1397 + $0x52] sm:$0xff]
      %v1606 = vld [vmem:[%s1397 + $0x62] sm:$0xff]
      %v1607 = vld [vmem:[%s1397 + $0x6a] sm:$0xff]
      %v1608 = vld [vmem:[%s1397 + $0x7a] sm:$0xff]
      %v1609 = vld [vmem:[%s1397 + $0x82] sm:$0xff]
      %v1610 = vld [vmem:[%s1397 + $0x92] sm:$0xff]
      %v1611 = vld [vmem:[%s1397 + $0x9a] sm:$0xff]
      %v1612 = vld [vmem:[%s1397 + $0xaa] sm:$0xff]
      %v1613 = vld [vmem:[%s1397 + $0xb2] sm:$0xff]
      %v1614 = vld [vmem:[%s1397 + $0xc2] sm:$0xff]
      %v1615 = vld [vmem:[%s1397 + $0xca] sm:$0xff]
      %v1616 = vld [vmem:[%s1397 + $0xda] sm:$0xff]
      %v1617 = vld [vmem:[%s1397 + $0xe2] sm:$0xff]
      %v1618 = vld [vmem:[%s1397 + $0xf2] sm:$0xff]
      %v1619 = vld [vmem:[%s1397 + $0xfa] sm:$0xff]
      %v1620 = vld [vmem:[%s1397 + $0x10a] sm:$0xff]
      %v1621 = vld [vmem:[%s1397 + $0x112] sm:$0xff]
      %v1622 = vld [vmem:[%s1397 + $0x122] sm:$0xff]
      %v1623 = vld [vmem:[%s1397 + $0x12a] sm:$0xff]
      %v1624 = vld [vmem:[%s1397 + $0x13a] sm:$0xff]
      %v1625 = vld [vmem:[%s1397 + $0x142] sm:$0xff]
      %v1626 = vld [vmem:[%s1397 + $0x152] sm:$0xff]
      %v1627 = vld [vmem:[%s1397 + $0x15a] sm:$0xff]
      %v1628 = vld [vmem:[%s1397 + $0x16a] sm:$0xff]
      %v1629 = vld [vmem:[%s1397 + $0x172] sm:$0xff]
      %v1630 = vlaneseq
      %v1631 = vshrl.u32 %v1630, 7
      %v1632 = vsub.s32 2, %v1631
      %v1633 = vrot.slane %v796, %v1632
      %v1634 = vmul.f32 %v1598, %v1633
      %v1635 = vmul.f32 %v1599, %v1633
      %v1636 = vmul.f32 %v1600, %v1633
      %v1637 = vmul.f32 %v1601, %v1633
      %v1638 = vmul.f32 %v1602, %v1633
      %v1639 = vmul.f32 %v1603, %v1633
      %v1640 = vmul.f32 %v1604, %v1633
      %v1641 = vmul.f32 %v1605, %v1633
      %v1642 = vmul.f32 %v1606, %v1633
      %v1643 = vmul.f32 %v1607, %v1633
      %v1644 = vmul.f32 %v1608, %v1633
      %v1645 = vmul.f32 %v1609, %v1633
      %v1646 = vmul.f32 %v1610, %v1633
      %v1647 = vmul.f32 %v1611, %v1633
      %v1648 = vmul.f32 %v1612, %v1633
      %v1649 = vmul.f32 %v1613, %v1633
      %v1650 = vmul.f32 %v1614, %v1633
      %v1651 = vmul.f32 %v1615, %v1633
      %v1652 = vmul.f32 %v1616, %v1633
      %v1653 = vmul.f32 %v1617, %v1633
      %v1654 = vmul.f32 %v1618, %v1633
      %v1655 = vmul.f32 %v1619, %v1633
      %v1656 = vmul.f32 %v1620, %v1633
      %v1657 = vmul.f32 %v1621, %v1633
      %v1658 = vmul.f32 %v1622, %v1633
      %v1659 = vmul.f32 %v1623, %v1633
      %v1660 = vmul.f32 %v1624, %v1633
      %v1661 = vmul.f32 %v1625, %v1633
      %v1662 = vmul.f32 %v1626, %v1633
      %v1663 = vmul.f32 %v1627, %v1633
      %v1664 = vmul.f32 %v1628, %v1633
      %v1665 = vmul.f32 %v1629, %v1633
      %v1666 = vadd.f32 %v1566, %v1634
      %v1667 = vadd.f32 %v1567, %v1635
      %v1668 = vadd.f32 %v1568, %v1636
      %v1669 = vadd.f32 %v1569, %v1637
      %v1670 = vadd.f32 %v1570, %v1638
      %v1671 = vadd.f32 %v1571, %v1639
      %v1672 = vadd.f32 %v1572, %v1640
      %v1673 = vadd.f32 %v1573, %v1641
      %v1674 = vadd.f32 %v1574, %v1642
      %v1675 = vadd.f32 %v1575, %v1643
      %v1676 = vadd.f32 %v1576, %v1644
      %v1677 = vadd.f32 %v1577, %v1645
      %v1678 = vadd.f32 %v1578, %v1646
      %v1679 = vadd.f32 %v1579, %v1647
      %v1680 = vadd.f32 %v1580, %v1648
      %v1681 = vadd.f32 %v1581, %v1649
      %v1682 = vadd.f32 %v1582, %v1650
      %v1683 = vadd.f32 %v1583, %v1651
      %v1684 = vadd.f32 %v1584, %v1652
      %v1685 = vadd.f32 %v1585, %v1653
      %v1686 = vadd.f32 %v1586, %v1654
      %v1687 = vadd.f32 %v1587, %v1655
      %v1688 = vadd.f32 %v1588, %v1656
      %v1689 = vadd.f32 %v1589, %v1657
      %v1690 = vadd.f32 %v1590, %v1658
      %v1691 = vadd.f32 %v1591, %v1659
      %v1692 = vadd.f32 %v1592, %v1660
      %v1693 = vadd.f32 %v1593, %v1661
      %v1694 = vadd.f32 %v1594, %v1662
      %v1695 = vadd.f32 %v1595, %v1663
      %v1696 = vadd.f32 %v1596, %v1664
      %v1697 = vadd.f32 %v1597, %v1665
      %v1698 = vld [vmem:[%s4] sm:$0x1]
      %v1700 = vlaneseq
      %v1701 = vshrl.u32 %v1700, 7
      %v1702 = vsub.s32 0, %v1701
      %v1703 = vrot.slane %v1698, %v1702
      %v1705 = vadd.f32 %v1666, %v1703
      %v1706 = vadd.f32 %v1667, %v1703
      %v1707 = vadd.f32 %v1668, %v1703
      %v1708 = vadd.f32 %v1669, %v1703
      %v1709 = vadd.f32 %v1670, %v1703
      %v1710 = vadd.f32 %v1671, %v1703
      %v1711 = vadd.f32 %v1672, %v1703
      %v1712 = vadd.f32 %v1673, %v1703
      %v1713 = vadd.f32 %v1674, %v1703
      %v1714 = vadd.f32 %v1675, %v1703
      %v1715 = vadd.f32 %v1676, %v1703
      %v1716 = vadd.f32 %v1677, %v1703
      %v1717 = vadd.f32 %v1678, %v1703
      %v1718 = vadd.f32 %v1679, %v1703
      %v1719 = vadd.f32 %v1680, %v1703
      %v1720 = vadd.f32 %v1681, %v1703
      %v1721 = vadd.f32 %v1682, %v1703
      %v1722 = vadd.f32 %v1683, %v1703
      %v1723 = vadd.f32 %v1684, %v1703
      %v1724 = vadd.f32 %v1685, %v1703
      %v1725 = vadd.f32 %v1686, %v1703
      %v1726 = vadd.f32 %v1687, %v1703
      %v1727 = vadd.f32 %v1688, %v1703
      %v1728 = vadd.f32 %v1689, %v1703
      %v1729 = vadd.f32 %v1690, %v1703
      %v1730 = vadd.f32 %v1691, %v1703
      %v1731 = vadd.f32 %v1692, %v1703
      %v1732 = vadd.f32 %v1693, %v1703
      %v1733 = vadd.f32 %v1694, %v1703
      %v1734 = vadd.f32 %v1695, %v1703
      %v1735 = vadd.f32 %v1696, %v1703
      %v1736 = vadd.f32 %v1697, %v1703
      %v1737 = vmax.f32 %v1705, 0.0
      %v1738 = vmax.f32 %v1706, 0.0
      %v1739 = vmax.f32 %v1707, 0.0
      %v1740 = vmax.f32 %v1708, 0.0
      %v1741 = vmax.f32 %v1709, 0.0
      %v1742 = vmax.f32 %v1710, 0.0
      %v1743 = vmax.f32 %v1711, 0.0
      %v1744 = vmax.f32 %v1712, 0.0
      %v1745 = vmax.f32 %v1713, 0.0
      %v1746 = vmax.f32 %v1714, 0.0
      %v1747 = vmax.f32 %v1715, 0.0
      %v1748 = vmax.f32 %v1716, 0.0
      %v1749 = vmax.f32 %v1717, 0.0
      %v1750 = vmax.f32 %v1718, 0.0
      %v1751 = vmax.f32 %v1719, 0.0
      %v1752 = vmax.f32 %v1720, 0.0
      %v1753 = vmax.f32 %v1721, 0.0
      %v1754 = vmax.f32 %v1722, 0.0
      %v1755 = vmax.f32 %v1723, 0.0
      %v1756 = vmax.f32 %v1724, 0.0
      %v1757 = vmax.f32 %v1725, 0.0
      %v1758 = vmax.f32 %v1726, 0.0
      %v1759 = vmax.f32 %v1727, 0.0
      %v1760 = vmax.f32 %v1728, 0.0
      %v1761 = vmax.f32 %v1729, 0.0
      %v1762 = vmax.f32 %v1730, 0.0
      %v1763 = vmax.f32 %v1731, 0.0
      %v1764 = vmax.f32 %v1732, 0.0
      %v1765 = vmax.f32 %v1733, 0.0
      %v1766 = vmax.f32 %v1734, 0.0
      %v1767 = vmax.f32 %v1735, 0.0
      %v1768 = vmax.f32 %v1736, 0.0
      %v1769 = vmin.f32 %v1737, 6.0
      %v1770 = vmin.f32 %v1738, 6.0
      %v1771 = vmin.f32 %v1739, 6.0
      %v1772 = vmin.f32 %v1740, 6.0
      %v1773 = vmin.f32 %v1741, 6.0
      %v1774 = vmin.f32 %v1742, 6.0
      %v1775 = vmin.f32 %v1743, 6.0
      %v1776 = vmin.f32 %v1744, 6.0
      %v1777 = vmin.f32 %v1745, 6.0
      %v1778 = vmin.f32 %v1746, 6.0
      %v1779 = vmin.f32 %v1747, 6.0
      %v1780 = vmin.f32 %v1748, 6.0
      %v1781 = vmin.f32 %v1749, 6.0
      %v1782 = vmin.f32 %v1750, 6.0
      %v1783 = vmin.f32 %v1751, 6.0
      %v1784 = vmin.f32 %v1752, 6.0
      %v1785 = vmin.f32 %v1753, 6.0
      %v1786 = vmin.f32 %v1754, 6.0
      %v1787 = vmin.f32 %v1755, 6.0
      %v1788 = vmin.f32 %v1756, 6.0
      %v1789 = vmin.f32 %v1757, 6.0
      %v1790 = vmin.f32 %v1758, 6.0
      %v1791 = vmin.f32 %v1759, 6.0
      %v1792 = vmin.f32 %v1760, 6.0
      %v1793 = vmin.f32 %v1761, 6.0
      %v1794 = vmin.f32 %v1762, 6.0
      %v1795 = vmin.f32 %v1763, 6.0
      %v1796 = vmin.f32 %v1764, 6.0
      %v1797 = vmin.f32 %v1765, 6.0
      %v1798 = vmin.f32 %v1766, 6.0
      %v1799 = vmin.f32 %v1767, 6.0
      %v1800 = vmin.f32 %v1768, 6.0
      %v1801 = vld [vmem:[%s5] sm:$0xff]
      %v1802 = vld [vmem:[%s5 + $0x8] sm:$0xff]
      %v1803 = vld [vmem:[%s6] sm:$0x1]
      %v1805 = vlaneseq
      %v1806 = vshrl.u32 %v1805, 7
      %v1807 = vsub.s32 0, %v1806
      %v1808 = vrot.slane %v1803, %v1807
      %v1811 = vsel %vm705, %v1769, 0
      %v1814 = vsel %vm705, %v1770, 0
      %v1817 = vsel %vm705, %v1771, 0
      %v1820 = vsel %vm705, %v1772, 0
      %v1823 = vsel %vm705, %v1773, 0
      %v1826 = vsel %vm705, %v1774, 0
      %v1829 = vsel %vm705, %v1775, 0
      %v1832 = vsel %vm705, %v1776, 0
      %v1835 = vsel %vm705, %v1777, 0
      %v1838 = vsel %vm705, %v1778, 0
      %v1841 = vsel %vm705, %v1779, 0
      %v1844 = vsel %vm705, %v1780, 0
      %v1847 = vsel %vm705, %v1781, 0
      %v1850 = vsel %vm705, %v1782, 0
      %v1853 = vsel %vm705, %v1783, 0
      %v1856 = vsel %vm705, %v1784, 0
      %v1859 = vsel %vm705, %v1785, 0
      %v1862 = vsel %vm705, %v1786, 0
      %v1865 = vsel %vm705, %v1787, 0
      %v1868 = vsel %vm705, %v1788, 0
      %v1871 = vsel %vm705, %v1789, 0
      %v1874 = vsel %vm705, %v1790, 0
      %v1877 = vsel %vm705, %v1791, 0
      %v1880 = vsel %vm705, %v1792, 0
      %v1883 = vsel %vm705, %v1793, 0
      %v1886 = vsel %vm705, %v1794, 0
      %v1889 = vsel %vm705, %v1795, 0
      %v1892 = vsel %vm705, %v1796, 0
      %v1895 = vsel %vm705, %v1797, 0
      %v1898 = vsel %vm705, %v1798, 0
      %v1901 = vsel %vm705, %v1799, 0
      %v1904 = vsel %vm705, %v1800, 0
      %1906 = vmatprep.subr.mxu0 0.0
      %1907 = vmatpush1.msra.mxu0 0.0
      %1908 = vmatprep.subr.mxu0 0.0
      %1909 = vmatpush1.msra.mxu0 0.0
      %1910 = vmatprep.subr.mxu0 0.0
      %1911 = vmatpush1.msra.mxu0 0.0
      %1912 = vmatprep.subr.mxu0 0.0
      %1913 = vmatpush1.msra.mxu0 0.0
      %1914 = vmatprep.subr.mxu0 0.0
      %1915 = vmatpush1.msra.mxu0 0.0
      %1916 = vmatprep.subr.mxu0 0.0
      %1917 = vmatpush1.msra.mxu0 0.0
      %1918 = vmatprep.subr.mxu0 0.0
      %1919 = vmatpush1.msra.mxu0 0.0
      %1920 = vmatprep.subr.mxu0 0.0
      %1921 = vmatpush1.msra.mxu0 0.0
      %1922 = vmatprep.subr.mxu0 0.0
      %1923 = vmatpush1.msra.mxu0 0.0
      %1924 = vmatprep.subr.mxu0 0.0
      %1925 = vmatpush1.msra.mxu0 0.0
      %1926 = vmatprep.subr.mxu0 0.0
      %1927 = vmatpush1.msra.mxu0 0.0
      %1928 = vmatprep.subr.mxu0 0.0
      %1929 = vmatpush1.msra.mxu0 0.0
      %1930 = vmatprep.subr.mxu0 0.0
      %1931 = vmatpush1.msra.mxu0 0.0
      %1932 = vmatprep.subr.mxu0 0.0
      %1933 = vmatpush1.msra.mxu0 0.0
      %1934 = vmatprep.subr.mxu0 0.0
      %1935 = vmatpush1.msra.mxu0 %v1802
      %1936 = vmatprep.subr.mxu0 0.0
      %1937 = vmatpush1.msra.mxu0 %v1801
      %1938 = vmatprep.subr.mxu0 0.0
      %1939 = vmatpush2.msra.mxu0 0.0
      %1940 = vmatprep.subr.mxu0 0.0
      %1941 = vmatpush2.msra.mxu0 0.0
      %1942 = vmatprep.subr.mxu0 0.0
      %1943 = vmatpush2.msra.mxu0 0.0
      %1944 = vmatprep.subr.mxu0 0.0
      %1945 = vmatpush2.msra.mxu0 0.0
      %1946 = vmatprep.subr.mxu0 0.0
      %1947 = vmatpush2.msra.mxu0 0.0
      %1948 = vmatprep.subr.mxu0 0.0
      %1949 = vmatpush2.msra.mxu0 0.0
      %1950 = vmatprep.subr.mxu0 0.0
      %1951 = vmatpush2.msra.mxu0 0.0
      %1952 = vmatprep.subr.mxu0 0.0
      %1953 = vmatpush2.msra.mxu0 0.0
      %1954 = vmatprep.subr.mxu0 0.0
      %1955 = vmatpush2.msra.mxu0 0.0
      %1956 = vmatprep.subr.mxu0 0.0
      %1957 = vmatpush2.msra.mxu0 0.0
      %1958 = vmatprep.subr.mxu0 0.0
      %1959 = vmatpush2.msra.mxu0 0.0
      %1960 = vmatprep.subr.mxu0 0.0
      %1961 = vmatpush2.msra.mxu0 0.0
      %1962 = vmatprep.subr.mxu0 0.0
      %1963 = vmatpush2.msra.mxu0 0.0
      %1964 = vmatprep.subr.mxu0 0.0
      %1965 = vmatpush2.msra.mxu0 0.0
      %1966 = vmatprep.subr.mxu0 0.0
      %1967 = vmatpush2.msra.mxu0 0.0
      %1968 = vmatprep.subr.mxu0 0.0
      %1969 = vmatpush2.msra.mxu0 0.0
      %1970 = vmatprep.mubr.f32.mxu0 0.0
      %1971 = vmatmul.mubr.f32.gmra.mxu0 %v1811
      %v1972 = vpop.f32.mrf.mxu0
      %v1973 = vadd.f32 %v1808, %v1972
      %v1974 = vpop.f32.mrf.mxu0
      %1975 = vmatprep.mubr.f32.mxu0 0.0
      %1976 = vmatmul.mubr.f32.gmra.mxu0 %v1814
      %v1977 = vpop.f32.mrf.mxu0
      %v1978 = vadd.f32 %v1808, %v1977
      %v1979 = vpop.f32.mrf.mxu0
      %1980 = vmatprep.mubr.f32.mxu0 0.0
      %1981 = vmatmul.mubr.f32.gmra.mxu0 %v1817
      %v1982 = vpop.f32.mrf.mxu0
      %v1983 = vadd.f32 %v1808, %v1982
      %v1984 = vpop.f32.mrf.mxu0
      %1985 = vmatprep.mubr.f32.mxu0 0.0
      %1986 = vmatmul.mubr.f32.gmra.mxu0 %v1820
      %v1987 = vpop.f32.mrf.mxu0
      %v1988 = vadd.f32 %v1808, %v1987
      %v1989 = vpop.f32.mrf.mxu0
      %1990 = vmatprep.mubr.f32.mxu0 0.0
      %1991 = vmatmul.mubr.f32.gmra.mxu0 %v1823
      %v1992 = vpop.f32.mrf.mxu0
      %v1993 = vadd.f32 %v1808, %v1992
      %v1994 = vpop.f32.mrf.mxu0
      %1995 = vmatprep.mubr.f32.mxu0 0.0
      %1996 = vmatmul.mubr.f32.gmra.mxu0 %v1826
      %v1997 = vpop.f32.mrf.mxu0
      %v1998 = vadd.f32 %v1808, %v1997
      %v1999 = vpop.f32.mrf.mxu0
      %2000 = vmatprep.mubr.f32.mxu0 0.0
      %2001 = vmatmul.mubr.f32.gmra.mxu0 %v1829
      %v2002 = vpop.f32.mrf.mxu0
      %v2003 = vadd.f32 %v1808, %v2002
      %v2004 = vpop.f32.mrf.mxu0
      %2005 = vmatprep.mubr.f32.mxu0 0.0
      %2006 = vmatmul.mubr.f32.gmra.mxu0 %v1832
      %v2007 = vpop.f32.mrf.mxu0
      %v2008 = vadd.f32 %v1808, %v2007
      %v2009 = vpop.f32.mrf.mxu0
      %2010 = vmatprep.mubr.f32.mxu0 0.0
      %2011 = vmatmul.mubr.f32.gmra.mxu0 %v1835
      %v2012 = vpop.f32.mrf.mxu0
      %v2013 = vadd.f32 %v1808, %v2012
      %v2014 = vpop.f32.mrf.mxu0
      %2015 = vmatprep.mubr.f32.mxu0 0.0
      %2016 = vmatmul.mubr.f32.gmra.mxu0 %v1838
      %v2017 = vpop.f32.mrf.mxu0
      %v2018 = vadd.f32 %v1808, %v2017
      %v2019 = vpop.f32.mrf.mxu0
      %2020 = vmatprep.mubr.f32.mxu0 0.0
      %2021 = vmatmul.mubr.f32.gmra.mxu0 %v1841
      %v2022 = vpop.f32.mrf.mxu0
      %v2023 = vadd.f32 %v1808, %v2022
      %v2024 = vpop.f32.mrf.mxu0
      %2025 = vmatprep.mubr.f32.mxu0 0.0
      %2026 = vmatmul.mubr.f32.gmra.mxu0 %v1844
      %v2027 = vpop.f32.mrf.mxu0
      %v2028 = vadd.f32 %v1808, %v2027
      %v2029 = vpop.f32.mrf.mxu0
      %2030 = vmatprep.mubr.f32.mxu0 0.0
      %2031 = vmatmul.mubr.f32.gmra.mxu0 %v1847
      %v2032 = vpop.f32.mrf.mxu0
      %v2033 = vadd.f32 %v1808, %v2032
      %v2034 = vpop.f32.mrf.mxu0
      %2035 = vmatprep.mubr.f32.mxu0 0.0
      %2036 = vmatmul.mubr.f32.gmra.mxu0 %v1850
      %v2037 = vpop.f32.mrf.mxu0
      %v2038 = vadd.f32 %v1808, %v2037
      %v2039 = vpop.f32.mrf.mxu0
      %2040 = vmatprep.mubr.f32.mxu0 0.0
      %2041 = vmatmul.mubr.f32.gmra.mxu0 %v1853
      %v2042 = vpop.f32.mrf.mxu0
      %v2043 = vadd.f32 %v1808, %v2042
      %v2044 = vpop.f32.mrf.mxu0
      %2045 = vmatprep.mubr.f32.mxu0 0.0
      %2046 = vmatmul.mubr.f32.gmra.mxu0 %v1856
      %v2047 = vpop.f32.mrf.mxu0
      %v2048 = vadd.f32 %v1808, %v2047
      %v2049 = vpop.f32.mrf.mxu0
      %2050 = vmatprep.mubr.f32.mxu0 0.0
      %2051 = vmatmul.mubr.f32.gmra.mxu0 %v1859
      %v2052 = vpop.f32.mrf.mxu0
      %v2053 = vadd.f32 %v1808, %v2052
      %v2054 = vpop.f32.mrf.mxu0
      %2055 = vmatprep.mubr.f32.mxu0 0.0
      %2056 = vmatmul.mubr.f32.gmra.mxu0 %v1862
      %v2057 = vpop.f32.mrf.mxu0
      %v2058 = vadd.f32 %v1808, %v2057
      %v2059 = vpop.f32.mrf.mxu0
      %2060 = vmatprep.mubr.f32.mxu0 0.0
      %2061 = vmatmul.mubr.f32.gmra.mxu0 %v1865
      %v2062 = vpop.f32.mrf.mxu0
      %v2063 = vadd.f32 %v1808, %v2062
      %v2064 = vpop.f32.mrf.mxu0
      %2065 = vmatprep.mubr.f32.mxu0 0.0
      %2066 = vmatmul.mubr.f32.gmra.mxu0 %v1868
      %v2067 = vpop.f32.mrf.mxu0
      %v2068 = vadd.f32 %v1808, %v2067
      %v2069 = vpop.f32.mrf.mxu0
      %2070 = vmatprep.mubr.f32.mxu0 0.0
      %2071 = vmatmul.mubr.f32.gmra.mxu0 %v1871
      %v2072 = vpop.f32.mrf.mxu0
      %v2073 = vadd.f32 %v1808, %v2072
      %v2074 = vpop.f32.mrf.mxu0
      %2075 = vmatprep.mubr.f32.mxu0 0.0
      %2076 = vmatmul.mubr.f32.gmra.mxu0 %v1874
      %v2077 = vpop.f32.mrf.mxu0
      %v2078 = vadd.f32 %v1808, %v2077
      %v2079 = vpop.f32.mrf.mxu0
      %2080 = vmatprep.mubr.f32.mxu0 0.0
      %2081 = vmatmul.mubr.f32.gmra.mxu0 %v1877
      %v2082 = vpop.f32.mrf.mxu0
      %v2083 = vadd.f32 %v1808, %v2082
      %v2084 = vpop.f32.mrf.mxu0
      %2085 = vmatprep.mubr.f32.mxu0 0.0
      %2086 = vmatmul.mubr.f32.gmra.mxu0 %v1880
      %v2087 = vpop.f32.mrf.mxu0
      %v2088 = vadd.f32 %v1808, %v2087
      %v2089 = vpop.f32.mrf.mxu0
      %2090 = vmatprep.mubr.f32.mxu0 0.0
      %2091 = vmatmul.mubr.f32.gmra.mxu0 %v1883
      %v2092 = vpop.f32.mrf.mxu0
      %v2093 = vadd.f32 %v1808, %v2092
      %v2094 = vpop.f32.mrf.mxu0
      %2095 = vmatprep.mubr.f32.mxu0 0.0
      %2096 = vmatmul.mubr.f32.gmra.mxu0 %v1886
      %v2097 = vpop.f32.mrf.mxu0
      %v2098 = vadd.f32 %v1808, %v2097
      %v2099 = vpop.f32.mrf.mxu0
      %2100 = vmatprep.mubr.f32.mxu0 0.0
      %2101 = vmatmul.mubr.f32.gmra.mxu0 %v1889
      %v2102 = vpop.f32.mrf.mxu0
      %v2103 = vadd.f32 %v1808, %v2102
      %v2104 = vpop.f32.mrf.mxu0
      %2105 = vmatprep.mubr.f32.mxu0 0.0
      %2106 = vmatmul.mubr.f32.gmra.mxu0 %v1892
      %v2107 = vpop.f32.mrf.mxu0
      %v2108 = vadd.f32 %v1808, %v2107
      %v2109 = vpop.f32.mrf.mxu0
      %2110 = vmatprep.mubr.f32.mxu0 0.0
      %2111 = vmatmul.mubr.f32.gmra.mxu0 %v1895
      %v2112 = vpop.f32.mrf.mxu0
      %v2113 = vadd.f32 %v1808, %v2112
      %v2114 = vpop.f32.mrf.mxu0
      %2115 = vmatprep.mubr.f32.mxu0 0.0
      %2116 = vmatmul.mubr.f32.gmra.mxu0 %v1898
      %v2117 = vpop.f32.mrf.mxu0
      %v2118 = vadd.f32 %v1808, %v2117
      %v2119 = vpop.f32.mrf.mxu0
      %2120 = vmatprep.mubr.f32.mxu0 0.0
      %2121 = vmatmul.mubr.f32.gmra.mxu0 %v1901
      %v2122 = vpop.f32.mrf.mxu0
      %v2123 = vadd.f32 %v1808, %v2122
      %v2124 = vpop.f32.mrf.mxu0
      %2125 = vmatprep.mubr.f32.mxu0 0.0
      %2126 = vmatmul.mubr.f32.gmra.mxu0 %v1904
      %v2127 = vpop.f32.mrf.mxu0
      %v2128 = vadd.f32 %v1808, %v2127
      %v2129 = vpop.f32.mrf.mxu0
      %2130 = vdwg.mxu0
      %v2131 = vadd.f32 %v1973, %v279
      %v2132 = vadd.f32 %v1978, %v280
      %v2133 = vadd.f32 %v1983, %v281
      %v2134 = vadd.f32 %v1988, %v282
      %v2135 = vadd.f32 %v1993, %v283
      %v2136 = vadd.f32 %v1998, %v284
      %v2137 = vadd.f32 %v2003, %v285
      %v2138 = vadd.f32 %v2008, %v286
      %v2139 = vadd.f32 %v2013, %v287
      %v2140 = vadd.f32 %v2018, %v288
      %v2141 = vadd.f32 %v2023, %v289
      %v2142 = vadd.f32 %v2028, %v290
      %v2143 = vadd.f32 %v2033, %v291
      %v2144 = vadd.f32 %v2038, %v292
      %v2145 = vadd.f32 %v2043, %v293
      %v2146 = vadd.f32 %v2048, %v294
      %v2147 = vadd.f32 %v2053, %v295
      %v2148 = vadd.f32 %v2058, %v296
      %v2149 = vadd.f32 %v2063, %v297
      %v2150 = vadd.f32 %v2068, %v298
      %v2151 = vadd.f32 %v2073, %v299
      %v2152 = vadd.f32 %v2078, %v300
      %v2153 = vadd.f32 %v2083, %v301
      %v2154 = vadd.f32 %v2088, %v302
      %v2155 = vadd.f32 %v2093, %v303
      %v2156 = vadd.f32 %v2098, %v304
      %v2157 = vadd.f32 %v2103, %v305
      %v2158 = vadd.f32 %v2108, %v306
      %v2159 = vadd.f32 %v2113, %v307
      %v2160 = vadd.f32 %v2118, %v308
      %v2161 = vadd.f32 %v2123, %v309
      %v2162 = vadd.f32 %v2128, %v310
      %2163 = vst.msk [vmem:[%s278] sm:$0xff] %vm319, %v2131
      %2164 = vst.msk [vmem:[%s278 + $0x8] sm:$0xff] %vm319, %v2132
      %2165 = vst.msk [vmem:[%s278 + $0x10] sm:$0xff] %vm319, %v2133
      %2166 = vst.msk [vmem:[%s278 + $0x18] sm:$0xff] %vm319, %v2134
      %2167 = vst.msk [vmem:[%s278 + $0x20] sm:$0xff] %vm319, %v2135
      %2168 = vst.msk [vmem:[%s278 + $0x28] sm:$0xff] %vm319, %v2136
      %2169 = vst.msk [vmem:[%s278 + $0x30] sm:$0xff] %vm319, %v2137
      %2170 = vst.msk [vmem:[%s278 + $0x38] sm:$0xff] %vm319, %v2138
      %2171 = vst.msk [vmem:[%s278 + $0x40] sm:$0xff] %vm319, %v2139
      %2172 = vst.msk [vmem:[%s278 + $0x48] sm:$0xff] %vm319, %v2140
      %2173 = vst.msk [vmem:[%s278 + $0x50] sm:$0xff] %vm319, %v2141
      %2174 = vst.msk [vmem:[%s278 + $0x58] sm:$0xff] %vm319, %v2142
      %2175 = vst.msk [vmem:[%s278 + $0x60] sm:$0xff] %vm319, %v2143
      %2176 = vst.msk [vmem:[%s278 + $0x68] sm:$0xff] %vm319, %v2144
      %2177 = vst.msk [vmem:[%s278 + $0x70] sm:$0xff] %vm319, %v2145
      %2178 = vst.msk [vmem:[%s278 + $0x78] sm:$0xff] %vm319, %v2146
      %2179 = vst.msk [vmem:[%s278 + $0x80] sm:$0xff] %vm319, %v2147
      %2180 = vst.msk [vmem:[%s278 + $0x88] sm:$0xff] %vm319, %v2148
      %2181 = vst.msk [vmem:[%s278 + $0x90] sm:$0xff] %vm319, %v2149
      %2182 = vst.msk [vmem:[%s278 + $0x98] sm:$0xff] %vm319, %v2150
      %2183 = vst.msk [vmem:[%s278 + $0xa0] sm:$0xff] %vm319, %v2151
      %2184 = vst.msk [vmem:[%s278 + $0xa8] sm:$0xff] %vm319, %v2152
      %2185 = vst.msk [vmem:[%s278 + $0xb0] sm:$0xff] %vm319, %v2153
      %2186 = vst.msk [vmem:[%s278 + $0xb8] sm:$0xff] %vm319, %v2154
      %2187 = vst.msk [vmem:[%s278 + $0xc0] sm:$0xff] %vm319, %v2155
      %2188 = vst.msk [vmem:[%s278 + $0xc8] sm:$0xff] %vm319, %v2156
      %2189 = vst.msk [vmem:[%s278 + $0xd0] sm:$0xff] %vm319, %v2157
      %2190 = vst.msk [vmem:[%s278 + $0xd8] sm:$0xff] %vm319, %v2158
      %2191 = vst.msk [vmem:[%s278 + $0xe0] sm:$0xff] %vm319, %v2159
      %2192 = vst.msk [vmem:[%s278 + $0xe8] sm:$0xff] %vm319, %v2160
      %2193 = vst.msk [vmem:[%s278 + $0xf0] sm:$0xff] %vm319, %v2161
      %2194 = vst.msk [vmem:[%s278 + $0xf8] sm:$0xff] %vm319, %v2162
      %p2195 = scmp.lt.s32.totalorder %s18, 1
      %s2196 = scalar_select %p2195, %s18, 1
      %s2197 = smul.addr %s2196, 32
      %s2198 = smul.addr %s2197, 8
      %s2199 = scalar_lea.vmem %s7, %s2198
      // Predicated region
      $region49: #{_lambda_.3} parent=47 // pred_check
        %p2200 = pneg %p188
      $region50: #{_lambda_.3} parent=47 // pred_check_branch
        %2202 = sbr.rel (%p2200) target = $region52
      $region51: #{_lambda_.3} parent=47 // pred_region
        _
      $region52: #{_lambda_.3} parent=47 // pred_fallthru
        _
    $region48: #{_lambda_.3} parent=5 // pred_fallthru
      _
    %p2203 = scmp.le.s32.totalorder 2, %s13
    // Predicated region
    $region53: #{_lambda_.3} parent=5 // pred_check
      %p2204 = pneg %p2203
    $region54: #{_lambda_.3} parent=5 // pred_check_branch
      %2206 = sbr.rel (%p2204) target = $region56
    $region55: #{_lambda_.3} parent=5 // pred_region
      %s2207 = ssub.s32 %s13, 2
      // Predicated region
      $region57: #{_lambda_.3} parent=55 // pred_check
        %p2208 = pneg %p194
      $region58: #{_lambda_.3} parent=55 // pred_check_branch
        %2210 = sbr.rel (%p2208) target = $region60
      $region59: #{_lambda_.3} parent=55 // pred_region
        %p2211 = scmp.lt.s32.totalorder %s19, 1
        %s2212 = scalar_select %p2211, %s19, 1
        %s2213 = smul.addr %s2212, 32
        %s2214 = smul.addr %s2213, 8
        %s2215 = scalar_lea.vmem %s7, %s2214
      $region60: #{_lambda_.3} parent=55 // pred_fallthru
        _
    $region56: #{_lambda_.3} parent=5 // pred_fallthru
      _
  $region6: #{_lambda_.3} parent=0 // loop_footer
    %s17 = sadd.s32 1, %s13
  $region7: #{_lambda_.3} parent=0 // loop_footer_branch
    %12 = sbr.rel target = $region3
  $region8: #{_lambda_.3} parent=0 // loop_exit
    _

// kernel: _lambda_.2
$region0: #{_lambda_.2}
  #allocation0 [shape = 'u32[]', space=smem, size = 0x4, offset = 0x4, fixed_abs, tag = 'smem constant byte address 0x4 - core index']
  #allocation1 [shape = 'u32[144,128]{1,0:T(1,128)}', space=vmem, size = 0x12000, scoped, tag = 'internal scratch']
  #allocation2 [shape = 'f32[18,18,8]{2,1,0:T(8,128)}', space=vmem, size = 0x36000, scoped, tag = 'scratch operand']
  %s0 = inlined_call_operand.vmem [shape: f32[2,256,4], index: 0, kind: input, shape index: {}]
  %s1 = inlined_call_operand.vmem [shape: f32[4,8], index: 1, kind: input, shape index: {}]
  %s2 = inlined_call_operand.vmem [shape: f32[1,8], index: 2, kind: input, shape index: {}]
  %s3 = inlined_call_operand.vmem [shape: f32[3,3,8], index: 3, kind: input, shape index: {}]
  %s4 = inlined_call_operand.vmem [shape: f32[1,8], index: 4, kind: input, shape index: {}]
  %s5 = inlined_call_operand.vmem [shape: f32[8,8], index: 5, kind: input, shape index: {}]
  %s6 = inlined_call_operand.vmem [shape: f32[1,8], index: 6, kind: input, shape index: {}]
  %s7 = inlined_call_operand.vmem [shape: f32[2,256,8], index: 7, kind: output, shape index: {}]
  %s8 = sld [smem:[#allocation0]]
  $region61: #{_lambda_.2} parent=0
    _
  %s10 = ssub.s32 1, %s8
  %s11 = scalar_select 0, %s10, %s8
  loop: start=0, step=1, limit=4
  $region2: #{_lambda_.2} parent=0 // loop_pre_header
    _
  $region3: #{_lambda_.2} parent=0 // loop_header
    %s13 = sphi 0, %s17
    %p14 = scmp.ge.s32.totalorder %s13, 4
    %s23 = sphi 0, %s25
    %s26 = sphi 0, %s23
    %s27 = sphi 0, %s26
    %s43 = sphi 0, %s27
    %s47 = sphi 0, %s47
    %s49 = sphi 0, %s47
    %s50 = sphi 0, %s49
    %s64 = sphi 0, %s50
    %s68 = sphi 0, %s68
    %s70 = sphi 0, %s68
    %s71 = sphi 0, %s70
    %s85 = sphi 0, %s71
    %s89 = sphi 0, %s89
    %s91 = sphi 0, %s89
    %s92 = sphi 0, %s91
    %s106 = sphi 0, %s92
    %s110 = sphi 0, %s110
    %s112 = sphi 0, %s110
    %s113 = sphi 0, %s112
    %s127 = sphi 0, %s113
    %s131 = sphi 0, %s131
    %s133 = sphi 0, %s131
    %s134 = sphi 0, %s133
    %s148 = sphi 0, %s134
    %s152 = sphi 0, %s152
    %s154 = sphi 0, %s152
    %s155 = sphi 0, %s154
    %s169 = sphi 0, %s155
    %s175 = sphi 0, %s177
    %s178 = sphi 0, %s175
    %s179 = sphi 0, %s178
    %s195 = sphi 0, %s179
  $region4: #{_lambda_.2} parent=0 // loop_header_branch
    %16 = sbr.rel (%p14) target = $region8
  $region5: #{_lambda_.2} parent=0 // loop_body
    %s18 = ssub.s32 %s13, 1
    %s19 = ssub.s32 %s13, 2
    %s20 = sadd.s32 %s13, 1
    %s21 = ssub.s32 %s13, %s20
    %p22 = scmp.eq.s32.totalorder %s21, 0
    %s24 = sadd.s32 %s23, 1
    %s25 = scalar_select %p22, %s23, %s24
    %p28 = pneg %p22
    %p29 = scmp.eq.s32.totalorder %s13, 1
    %p30 = por %p28, %p29
    %p31 = scmp.ne.s32.totalorder %s23, %s26
    %p32 = scmp.eq.s32.totalorder %s13, 0
    %p33 = por %p31, %p32
    %p34 = scmp.ne.s32.totalorder %s23, %s26
    %p35 = scmp.eq.s32.totalorder %s18, 1
    %p36 = por %p34, %p35
    %p37 = scmp.ne.s32.totalorder %s26, %s27
    %p38 = scmp.eq.s32.totalorder %s18, 0
    %p39 = por %p37, %p38
    %p40 = scmp.ne.s32.totalorder %s26, %s27
    %p41 = scmp.eq.s32.totalorder %s19, 1
    %p42 = por %p40, %p41
    %p44 = scmp.ne.s32.totalorder %s27, %s43
    %p45 = scmp.eq.s32.totalorder %s19, 0
    %p46 = por %p44, %p45
    %s48 = sadd.s32 %s47, 1
    %p51 = scmp.eq.s32.totalorder %s13, 1
    %p52 = scmp.ne.s32.totalorder %s47, %s49
    %p53 = scmp.eq.s32.totalorder %s13, 0
    %p54 = por %p52, %p53
    %p55 = scmp.ne.s32.totalorder %s47, %s49
    %p56 = scmp.eq.s32.totalorder %s18, 1
    %p57 = por %p55, %p56
    %p58 = scmp.ne.s32.totalorder %s49, %s50
    %p59 = scmp.eq.s32.totalorder %s18, 0
    %p60 = por %p58, %p59
    %p61 = scmp.ne.s32.totalorder %s49, %s50
    %p62 = scmp.eq.s32.totalorder %s19, 1
    %p63 = por %p61, %p62
    %p65 = scmp.ne.s32.totalorder %s50, %s64
    %p66 = scmp.eq.s32.totalorder %s19, 0
    %p67 = por %p65, %p66
    %s69 = sadd.s32 %s68, 1
    %p72 = scmp.eq.s32.totalorder %s13, 1
    %p73 = scmp.ne.s32.totalorder %s68, %s70
    %p74 = scmp.eq.s32.totalorder %s13, 0
    %p75 = por %p73, %p74
    %p76 = scmp.ne.s32.totalorder %s68, %s70
    %p77 = scmp.eq.s32.totalorder %s18, 1
    %p78 = por %p76, %p77
    %p79 = scmp.ne.s32.totalorder %s70, %s71
    %p80 = scmp.eq.s32.totalorder %s18, 0
    %p81 = por %p79, %p80
    %p82 = scmp.ne.s32.totalorder %s70, %s71
    %p83 = scmp.eq.s32.totalorder %s19, 1
    %p84 = por %p82, %p83
    %p86 = scmp.ne.s32.totalorder %s71, %s85
    %p87 = scmp.eq.s32.totalorder %s19, 0
    %p88 = por %p86, %p87
    %s90 = sadd.s32 %s89, 1
    %p93 = scmp.eq.s32.totalorder %s13, 1
    %p94 = scmp.ne.s32.totalorder %s89, %s91
    %p95 = scmp.eq.s32.totalorder %s13, 0
    %p96 = por %p94, %p95
    %p97 = scmp.ne.s32.totalorder %s89, %s91
    %p98 = scmp.eq.s32.totalorder %s18, 1
    %p99 = por %p97, %p98
    %p100 = scmp.ne.s32.totalorder %s91, %s92
    %p101 = scmp.eq.s32.totalorder %s18, 0
    %p102 = por %p100, %p101
    %p103 = scmp.ne.s32.totalorder %s91, %s92
    %p104 = scmp.eq.s32.totalorder %s19, 1
    %p105 = por %p103, %p104
    %p107 = scmp.ne.s32.totalorder %s92, %s106
    %p108 = scmp.eq.s32.totalorder %s19, 0
    %p109 = por %p107, %p108
    %s111 = sadd.s32 %s110, 1
    %p114 = scmp.eq.s32.totalorder %s13, 1
    %p115 = scmp.ne.s32.totalorder %s110, %s112
    %p116 = scmp.eq.s32.totalorder %s13, 0
    %p117 = por %p115, %p116
    %p118 = scmp.ne.s32.totalorder %s110, %s112
    %p119 = scmp.eq.s32.totalorder %s18, 1
    %p120 = por %p118, %p119
    %p121 = scmp.ne.s32.totalorder %s112, %s113
    %p122 = scmp.eq.s32.totalorder %s18, 0
    %p123 = por %p121, %p122
    %p124 = scmp.ne.s32.totalorder %s112, %s113
    %p125 = scmp.eq.s32.totalorder %s19, 1
    %p126 = por %p124, %p125
    %p128 = scmp.ne.s32.totalorder %s113, %s127
    %p129 = scmp.eq.s32.totalorder %s19, 0
    %p130 = por %p128, %p129
    %s132 = sadd.s32 %s131, 1
    %p135 = scmp.eq.s32.totalorder %s13, 1
    %p136 = scmp.ne.s32.totalorder %s131, %s133
    %p137 = scmp.eq.s32.totalorder %s13, 0
    %p138 = por %p136, %p137
    %p139 = scmp.ne.s32.totalorder %s131, %s133
    %p140 = scmp.eq.s32.totalorder %s18, 1
    %p141 = por %p139, %p140
    %p142 = scmp.ne.s32.totalorder %s133, %s134
    %p143 = scmp.eq.s32.totalorder %s18, 0
    %p144 = por %p142, %p143
    %p145 = scmp.ne.s32.totalorder %s133, %s134
    %p146 = scmp.eq.s32.totalorder %s19, 1
    %p147 = por %p145, %p146
    %p149 = scmp.ne.s32.totalorder %s134, %s148
    %p150 = scmp.eq.s32.totalorder %s19, 0
    %p151 = por %p149, %p150
    %s153 = sadd.s32 %s152, 1
    %p156 = scmp.eq.s32.totalorder %s13, 1
    %p157 = scmp.ne.s32.totalorder %s152, %s154
    %p158 = scmp.eq.s32.totalorder %s13, 0
    %p159 = por %p157, %p158
    %p160 = scmp.ne.s32.totalorder %s152, %s154
    %p161 = scmp.eq.s32.totalorder %s18, 1
    %p162 = por %p160, %p161
    %p163 = scmp.ne.s32.totalorder %s154, %s155
    %p164 = scmp.eq.s32.totalorder %s18, 0
    %p165 = por %p163, %p164
    %p166 = scmp.ne.s32.totalorder %s154, %s155
    %p167 = scmp.eq.s32.totalorder %s19, 1
    %p168 = por %p166, %p167
    %p170 = scmp.ne.s32.totalorder %s155, %s169
    %p171 = scmp.eq.s32.totalorder %s19, 0
    %p172 = por %p170, %p171
    %s173 = ssub.s32 %s13, %s20
    %p174 = scmp.eq.s32.totalorder %s173, 0
    %s176 = sadd.s32 %s175, 1
    %s177 = scalar_select %p174, %s175, %s176
    %p180 = pneg %p174
    %p181 = scmp.eq.s32.totalorder %s13, 1
    %p182 = por %p180, %p181
    %p183 = scmp.ne.s32.totalorder %s175, %s178
    %p184 = scmp.eq.s32.totalorder %s13, 0
    %p185 = por %p183, %p184
    %p186 = scmp.ne.s32.totalorder %s175, %s178
    %p187 = scmp.eq.s32.totalorder %s18, 1
    %p188 = por %p186, %p187
    %p189 = scmp.ne.s32.totalorder %s178, %s179
    %p190 = scmp.eq.s32.totalorder %s18, 0
    %p191 = por %p189, %p190
    %p192 = scmp.ne.s32.totalorder %s178, %s179
    %p193 = scmp.eq.s32.totalorder %s19, 1
    %p194 = por %p192, %p193
    %p196 = scmp.ne.s32.totalorder %s179, %s195
    %p197 = scmp.eq.s32.totalorder %s19, 0
    %p198 = por %p196, %p197
    %p199 = scmp.le.s32.totalorder 1, %s13
    %p200 = scmp.lt.s32.totalorder %s13, 3
    %p201 = pnand %p199, %p200
    %p202 = pneg %p201
    // Predicated region
    $region9: #{_lambda_.2} parent=5 // pred_check
      _
    $region10: #{_lambda_.2} parent=5 // pred_check_branch
      %204 = sbr.rel (%p201) target = $region12
    $region11: #{_lambda_.2} parent=5 // pred_region
      %s205 = ssub.s32 %s13, 1
      // Predicated region
      $region13: #{_lambda_.2} parent=11 // pred_check
        %p206 = pneg %p60
      $region14: #{_lambda_.2} parent=11 // pred_check_branch
        %208 = sbr.rel (%p206) target = $region16
      $region15: #{_lambda_.2} parent=11 // pred_region
        _
      $region16: #{_lambda_.2} parent=11 // pred_fallthru
        _
      // Predicated region
      $region17: #{_lambda_.2} parent=11 // pred_check
        %p209 = pneg %p81
      $region18: #{_lambda_.2} parent=11 // pred_check_branch
        %211 = sbr.rel (%p209) target = $region20
      $region19: #{_lambda_.2} parent=11 // pred_region
        _
      $region20: #{_lambda_.2} parent=11 // pred_fallthru
        _
      // Predicated region
      $region21: #{_lambda_.2} parent=11 // pred_check
        %p212 = pneg %p102
      $region22: #{_lambda_.2} parent=11 // pred_check_branch
        %214 = sbr.rel (%p212) target = $region24
      $region23: #{_lambda_.2} parent=11 // pred_region
        _
      $region24: #{_lambda_.2} parent=11 // pred_fallthru
        _
      // Predicated region
      $region25: #{_lambda_.2} parent=11 // pred_check
        %p215 = pneg %p123
      $region26: #{_lambda_.2} parent=11 // pred_check_branch
        %217 = sbr.rel (%p215) target = $region28
      $region27: #{_lambda_.2} parent=11 // pred_region
        _
      $region28: #{_lambda_.2} parent=11 // pred_fallthru
        _
      // Predicated region
      $region29: #{_lambda_.2} parent=11 // pred_check
        %p218 = pneg %p144
      $region30: #{_lambda_.2} parent=11 // pred_check_branch
        %220 = sbr.rel (%p218) target = $region32
      $region31: #{_lambda_.2} parent=11 // pred_region
        _
      $region32: #{_lambda_.2} parent=11 // pred_fallthru
        _
      // Predicated region
      $region33: #{_lambda_.2} parent=11 // pred_check
        %p221 = pneg %p165
      $region34: #{_lambda_.2} parent=11 // pred_check_branch
        %223 = sbr.rel (%p221) target = $region36
      $region35: #{_lambda_.2} parent=11 // pred_region
        _
      $region36: #{_lambda_.2} parent=11 // pred_fallthru
        _
    $region12: #{_lambda_.2} parent=5 // pred_fallthru
      _
    %p224 = scmp.lt.s32.totalorder %s13, 2
    // Predicated region
    $region37: #{_lambda_.2} parent=5 // pred_check
      %p225 = pneg %p224
    $region38: #{_lambda_.2} parent=5 // pred_check_branch
      %227 = sbr.rel (%p225) target = $region40
    $region39: #{_lambda_.2} parent=5 // pred_region
      // Predicated region
      $region41: #{_lambda_.2} parent=39 // pred_check
        %p228 = pneg %p33
      $region42: #{_lambda_.2} parent=39 // pred_check_branch
        %230 = sbr.rel (%p228) target = $region44
      $region43: #{_lambda_.2} parent=39 // pred_region
        %p231 = scmp.lt.s32.totalorder %s13, 1
        %s232 = scalar_select %p231, %s13, 1
        %s233 = smul.addr %s232, 32
        %s234 = smul.addr %s233, 8
        %s235 = scalar_lea.vmem %s0, %s234
      $region44: #{_lambda_.2} parent=39 // pred_fallthru
        _
    $region40: #{_lambda_.2} parent=5 // pred_fallthru
      _
    %p236 = scmp.le.s32.totalorder 1, %s13
    %p237 = scmp.lt.s32.totalorder %s13, 3
    %p238 = pnand %p236, %p237
    %p239 = pneg %p238
    // Predicated region
    $region45: #{_lambda_.2} parent=5 // pred_check
      _
    $region46: #{_lambda_.2} parent=5 // pred_check_branch
      %241 = sbr.rel (%p238) target = $region48
    $region47: #{_lambda_.2} parent=5 // pred_region
      %s242 = ssub.s32 %s13, 1
      %p243 = scmp.lt.s32.totalorder %s18, 1
      %s244 = scalar_select %p243, %s18, 1
      %s245 = smul.addr %s244, 32
      %s246 = smul.addr %s245, 8
      %s247 = scalar_lea.vmem %s0, %s246
      %p248 = pneg %p39
      %p249 = pneg %p36
      %p250 = pneg %p60
      %p251 = pneg %p57
      %p252 = pneg %p81
      %p253 = pneg %p78
      %p254 = pneg %p102
      %p255 = pneg %p99
      %p256 = pneg %p123
      %p257 = pneg %p120
      %p258 = pneg %p144
      %p259 = pneg %p141
      %p260 = pneg %p165
      %p261 = pneg %p162
      %p262 = pneg %p191
      %p263 = pneg %p188
      %p264 = scmp.lt.s32.totalorder %s18, 1
      %s265 = scalar_select %p264, %s18, 1
      %s266 = smul.addr %s265, 32
      %s267 = smul.addr %s266, 8
      %s268 = scalar_lea.vmem %s7, %s267
      %p269 = scmp.lt.s32.totalorder %s18, 1
      %s270 = scalar_select %p269, %s18, 1
      %s271 = smul.addr %s270, 32
      %s272 = smul.addr %s271, 8
      %s273 = scalar_lea.vmem %s0, %s272
      %p274 = scmp.lt.s32.totalorder %s18, 1
      %s275 = scalar_select %p274, %s18, 1
      %s276 = smul.addr %s275, 32
      %s277 = smul.addr %s276, 8
      %s278 = scalar_lea.vmem %s7, %s277
      %v279 = vld [vmem:[%s273] sm:$0xff]
      %v280 = vld [vmem:[%s273 + $0x8] sm:$0xff]
      %v281 = vld [vmem:[%s273 + $0x10] sm:$0xff]
      %v282 = vld [vmem:[%s273 + $0x18] sm:$0xff]
      %v283 = vld [vmem:[%s273 + $0x20] sm:$0xff]
      %v284 = vld [vmem:[%s273 + $0x28] sm:$0xff]
      %v285 = vld [vmem:[%s273 + $0x30] sm:$0xff]
      %v286 = vld [vmem:[%s273 + $0x38] sm:$0xff]
      %v287 = vld [vmem:[%s273 + $0x40] sm:$0xff]
      %v288 = vld [vmem:[%s273 + $0x48] sm:$0xff]
      %v289 = vld [vmem:[%s273 + $0x50] sm:$0xff]
      %v290 = vld [vmem:[%s273 + $0x58] sm:$0xff]
      %v291 = vld [vmem:[%s273 + $0x60] sm:$0xff]
      %v292 = vld [vmem:[%s273 + $0x68] sm:$0xff]
      %v293 = vld [vmem:[%s273 + $0x70] sm:$0xff]
      %v294 = vld [vmem:[%s273 + $0x78] sm:$0xff]
      %v295 = vld [vmem:[%s273 + $0x80] sm:$0xff]
      %v296 = vld [vmem:[%s273 + $0x88] sm:$0xff]
      %v297 = vld [vmem:[%s273 + $0x90] sm:$0xff]
      %v298 = vld [vmem:[%s273 + $0x98] sm:$0xff]
      %v299 = vld [vmem:[%s273 + $0xa0] sm:$0xff]
      %v300 = vld [vmem:[%s273 + $0xa8] sm:$0xff]
      %v301 = vld [vmem:[%s273 + $0xb0] sm:$0xff]
      %v302 = vld [vmem:[%s273 + $0xb8] sm:$0xff]
      %v303 = vld [vmem:[%s273 + $0xc0] sm:$0xff]
      %v304 = vld [vmem:[%s273 + $0xc8] sm:$0xff]
      %v305 = vld [vmem:[%s273 + $0xd0] sm:$0xff]
      %v306 = vld [vmem:[%s273 + $0xd8] sm:$0xff]
      %v307 = vld [vmem:[%s273 + $0xe0] sm:$0xff]
      %v308 = vld [vmem:[%s273 + $0xe8] sm:$0xff]
      %v309 = vld [vmem:[%s273 + $0xf0] sm:$0xff]
      %v310 = vld [vmem:[%s273 + $0xf8] sm:$0xff]
      %v311 = vld [vmem:[%s1] sm:$0xf]
      %v312 = vld [vmem:[%s2] sm:$0x1]
      %v314 = vlaneseq
      %v315 = vshrl.u32 %v314, 7
      %v316 = vsub.s32 0, %v315
      %v317 = vrot.slane %v312, %v316
      %vm319 = vcmask 31744
      %v321 = vsel %vm319, %v279, 0
      %v324 = vsel %vm319, %v280, 0
      %v327 = vsel %vm319, %v281, 0
      %v330 = vsel %vm319, %v282, 0
      %v333 = vsel %vm319, %v283, 0
      %v336 = vsel %vm319, %v284, 0
      %v339 = vsel %vm319, %v285, 0
      %v342 = vsel %vm319, %v286, 0
      %v345 = vsel %vm319, %v287, 0
      %v348 = vsel %vm319, %v288, 0
      %v351 = vsel %vm319, %v289, 0
      %v354 = vsel %vm319, %v290, 0
      %v357 = vsel %vm319, %v291, 0
      %v360 = vsel %vm319, %v292, 0
      %v363 = vsel %vm319, %v293, 0
      %v366 = vsel %vm319, %v294, 0
      %v369 = vsel %vm319, %v295, 0
      %v372 = vsel %vm319, %v296, 0
      %v375 = vsel %vm319, %v297, 0
      %v378 = vsel %vm319, %v298, 0
      %v381 = vsel %vm319, %v299, 0
      %v384 = vsel %vm319, %v300, 0
      %v387 = vsel %vm319, %v301, 0
      %v390 = vsel %vm319, %v302, 0
      %v393 = vsel %vm319, %v303, 0
      %v396 = vsel %vm319, %v304, 0
      %v399 = vsel %vm319, %v305, 0
      %v402 = vsel %vm319, %v306, 0
      %v405 = vsel %vm319, %v307, 0
      %v408 = vsel %vm319, %v308, 0
      %v411 = vsel %vm319, %v309, 0
      %v414 = vsel %vm319, %v310, 0
      %vm416 = vcmask 1043456
      %v418 = vsel %vm416, %v311, 0
      %420 = vmatprep.subr.mxu0 0.0
      %421 = vmatpush1.msra.mxu0 0.0
      %422 = vmatprep.subr.mxu0 0.0
      %423 = vmatpush1.msra.mxu0 0.0
      %424 = vmatprep.subr.mxu0 0.0
      %425 = vmatpush1.msra.mxu0 0.0
      %426 = vmatprep.subr.mxu0 0.0
      %427 = vmatpush1.msra.mxu0 0.0
      %428 = vmatprep.subr.mxu0 0.0
      %429 = vmatpush1.msra.mxu0 0.0
      %430 = vmatprep.subr.mxu0 0.0
      %431 = vmatpush1.msra.mxu0 0.0
      %432 = vmatprep.subr.mxu0 0.0
      %433 = vmatpush1.msra.mxu0 0.0
      %434 = vmatprep.subr.mxu0 0.0
      %435 = vmatpush1.msra.mxu0 0.0
      %436 = vmatprep.subr.mxu0 0.0
      %437 = vmatpush1.msra.mxu0 0.0
      %438 = vmatprep.subr.mxu0 0.0
      %439 = vmatpush1.msra.mxu0 0.0
      %440 = vmatprep.subr.mxu0 0.0
      %441 = vmatpush1.msra.mxu0 0.0
      %442 = vmatprep.subr.mxu0 0.0
      %443 = vmatpush1.msra.mxu0 0.0
      %444 = vmatprep.subr.mxu0 0.0
      %445 = vmatpush1.msra.mxu0 0.0
      %446 = vmatprep.subr.mxu0 0.0
      %447 = vmatpush1.msra.mxu0 0.0
      %448 = vmatprep.subr.mxu0 0.0
      %449 = vmatpush1.msra.mxu0 0.0
      %450 = vmatprep.subr.mxu0 0.0
      %451 = vmatpush1.msra.mxu0 %v418
      %452 = vmatprep.subr.mxu0 0.0
      %453 = vmatpush2.msra.mxu0 0.0
      %454 = vmatprep.subr.mxu0 0.0
      %455 = vmatpush2.msra.mxu0 0.0
      %456 = vmatprep.subr.mxu0 0.0
      %457 = vmatpush2.msra.mxu0 0.0
      %458 = vmatprep.subr.mxu0 0.0
      %459 = vmatpush2.msra.mxu0 0.0
      %460 = vmatprep.subr.mxu0 0.0
      %461 = vmatpush2.msra.mxu0 0.0
      %462 = vmatprep.subr.mxu0 0.0
      %463 = vmatpush2.msra.mxu0 0.0
      %464 = vmatprep.subr.mxu0 0.0
      %465 = vmatpush2.msra.mxu0 0.0
      %466 = vmatprep.subr.mxu0 0.0
      %467 = vmatpush2.msra.mxu0 0.0
      %468 = vmatprep.subr.mxu0 0.0
      %469 = vmatpush2.msra.mxu0 0.0
      %470 = vmatprep.subr.mxu0 0.0
      %471 = vmatpush2.msra.mxu0 0.0
      %472 = vmatprep.subr.mxu0 0.0
      %473 = vmatpush2.msra.mxu0 0.0
      %474 = vmatprep.subr.mxu0 0.0
      %475 = vmatpush2.msra.mxu0 0.0
      %476 = vmatprep.subr.mxu0 0.0
      %477 = vmatpush2.msra.mxu0 0.0
      %478 = vmatprep.subr.mxu0 0.0
      %479 = vmatpush2.msra.mxu0 0.0
      %480 = vmatprep.subr.mxu0 0.0
      %481 = vmatpush2.msra.mxu0 0.0
      %482 = vmatprep.subr.mxu0 0.0
      %483 = vmatpush2.msra.mxu0 0.0
      %484 = vmatprep.mubr.f32.mxu0 0.0
      %485 = vmatmul.mubr.f32.gmra.mxu0 %v321
      %v486 = vpop.f32.mrf.mxu0
      %v487 = vadd.f32 %v317, %v486
      %v488 = vpop.f32.mrf.mxu0
      %489 = vmatprep.mubr.f32.mxu0 0.0
      %490 = vmatmul.mubr.f32.gmra.mxu0 %v324
      %v491 = vpop.f32.mrf.mxu0
      %v492 = vadd.f32 %v317, %v491
      %v493 = vpop.f32.mrf.mxu0
      %494 = vmatprep.mubr.f32.mxu0 0.0
      %495 = vmatmul.mubr.f32.gmra.mxu0 %v327
      %v496 = vpop.f32.mrf.mxu0
      %v497 = vadd.f32 %v317, %v496
      %v498 = vpop.f32.mrf.mxu0
      %499 = vmatprep.mubr.f32.mxu0 0.0
      %500 = vmatmul.mubr.f32.gmra.mxu0 %v330
      %v501 = vpop.f32.mrf.mxu0
      %v502 = vadd.f32 %v317, %v501
      %v503 = vpop.f32.mrf.mxu0
      %504 = vmatprep.mubr.f32.mxu0 0.0
      %505 = vmatmul.mubr.f32.gmra.mxu0 %v333
      %v506 = vpop.f32.mrf.mxu0
      %v507 = vadd.f32 %v317, %v506
      %v508 = vpop.f32.mrf.mxu0
      %509 = vmatprep.mubr.f32.mxu0 0.0
      %510 = vmatmul.mubr.f32.gmra.mxu0 %v336
      %v511 = vpop.f32.mrf.mxu0
      %v512 = vadd.f32 %v317, %v511
      %v513 = vpop.f32.mrf.mxu0
      %514 = vmatprep.mubr.f32.mxu0 0.0
      %515 = vmatmul.mubr.f32.gmra.mxu0 %v339
      %v516 = vpop.f32.mrf.mxu0
      %v517 = vadd.f32 %v317, %v516
      %v518 = vpop.f32.mrf.mxu0
      %519 = vmatprep.mubr.f32.mxu0 0.0
      %520 = vmatmul.mubr.f32.gmra.mxu0 %v342
      %v521 = vpop.f32.mrf.mxu0
      %v522 = vadd.f32 %v317, %v521
      %v523 = vpop.f32.mrf.mxu0
      %524 = vmatprep.mubr.f32.mxu0 0.0
      %525 = vmatmul.mubr.f32.gmra.mxu0 %v345
      %v526 = vpop.f32.mrf.mxu0
      %v527 = vadd.f32 %v317, %v526
      %v528 = vpop.f32.mrf.mxu0
      %529 = vmatprep.mubr.f32.mxu0 0.0
      %530 = vmatmul.mubr.f32.gmra.mxu0 %v348
      %v531 = vpop.f32.mrf.mxu0
      %v532 = vadd.f32 %v317, %v531
      %v533 = vpop.f32.mrf.mxu0
      %534 = vmatprep.mubr.f32.mxu0 0.0
      %535 = vmatmul.mubr.f32.gmra.mxu0 %v351
      %v536 = vpop.f32.mrf.mxu0
      %v537 = vadd.f32 %v317, %v536
      %v538 = vpop.f32.mrf.mxu0
      %539 = vmatprep.mubr.f32.mxu0 0.0
      %540 = vmatmul.mubr.f32.gmra.mxu0 %v354
      %v541 = vpop.f32.mrf.mxu0
      %v542 = vadd.f32 %v317, %v541
      %v543 = vpop.f32.mrf.mxu0
      %544 = vmatprep.mubr.f32.mxu0 0.0
      %545 = vmatmul.mubr.f32.gmra.mxu0 %v357
      %v546 = vpop.f32.mrf.mxu0
      %v547 = vadd.f32 %v317, %v546
      %v548 = vpop.f32.mrf.mxu0
      %549 = vmatprep.mubr.f32.mxu0 0.0
      %550 = vmatmul.mubr.f32.gmra.mxu0 %v360
      %v551 = vpop.f32.mrf.mxu0
      %v552 = vadd.f32 %v317, %v551
      %v553 = vpop.f32.mrf.mxu0
      %554 = vmatprep.mubr.f32.mxu0 0.0
      %555 = vmatmul.mubr.f32.gmra.mxu0 %v363
      %v556 = vpop.f32.mrf.mxu0
      %v557 = vadd.f32 %v317, %v556
      %v558 = vpop.f32.mrf.mxu0
      %559 = vmatprep.mubr.f32.mxu0 0.0
      %560 = vmatmul.mubr.f32.gmra.mxu0 %v366
      %v561 = vpop.f32.mrf.mxu0
      %v562 = vadd.f32 %v317, %v561
      %v563 = vpop.f32.mrf.mxu0
      %564 = vmatprep.mubr.f32.mxu0 0.0
      %565 = vmatmul.mubr.f32.gmra.mxu0 %v369
      %v566 = vpop.f32.mrf.mxu0
      %v567 = vadd.f32 %v317, %v566
      %v568 = vpop.f32.mrf.mxu0
      %569 = vmatprep.mubr.f32.mxu0 0.0
      %570 = vmatmul.mubr.f32.gmra.mxu0 %v372
      %v571 = vpop.f32.mrf.mxu0
      %v572 = vadd.f32 %v317, %v571
      %v573 = vpop.f32.mrf.mxu0
      %574 = vmatprep.mubr.f32.mxu0 0.0
      %575 = vmatmul.mubr.f32.gmra.mxu0 %v375
      %v576 = vpop.f32.mrf.mxu0
      %v577 = vadd.f32 %v317, %v576
      %v578 = vpop.f32.mrf.mxu0
      %579 = vmatprep.mubr.f32.mxu0 0.0
      %580 = vmatmul.mubr.f32.gmra.mxu0 %v378
      %v581 = vpop.f32.mrf.mxu0
      %v582 = vadd.f32 %v317, %v581
      %v583 = vpop.f32.mrf.mxu0
      %584 = vmatprep.mubr.f32.mxu0 0.0
      %585 = vmatmul.mubr.f32.gmra.mxu0 %v381
      %v586 = vpop.f32.mrf.mxu0
      %v587 = vadd.f32 %v317, %v586
      %v588 = vpop.f32.mrf.mxu0
      %589 = vmatprep.mubr.f32.mxu0 0.0
      %590 = vmatmul.mubr.f32.gmra.mxu0 %v384
      %v591 = vpop.f32.mrf.mxu0
      %v592 = vadd.f32 %v317, %v591
      %v593 = vpop.f32.mrf.mxu0
      %594 = vmatprep.mubr.f32.mxu0 0.0
      %595 = vmatmul.mubr.f32.gmra.mxu0 %v387
      %v596 = vpop.f32.mrf.mxu0
      %v597 = vadd.f32 %v317, %v596
      %v598 = vpop.f32.mrf.mxu0
      %599 = vmatprep.mubr.f32.mxu0 0.0
      %600 = vmatmul.mubr.f32.gmra.mxu0 %v390
      %v601 = vpop.f32.mrf.mxu0
      %v602 = vadd.f32 %v317, %v601
      %v603 = vpop.f32.mrf.mxu0
      %604 = vmatprep.mubr.f32.mxu0 0.0
      %605 = vmatmul.mubr.f32.gmra.mxu0 %v393
      %v606 = vpop.f32.mrf.mxu0
      %v607 = vadd.f32 %v317, %v606
      %v608 = vpop.f32.mrf.mxu0
      %609 = vmatprep.mubr.f32.mxu0 0.0
      %610 = vmatmul.mubr.f32.gmra.mxu0 %v396
      %v611 = vpop.f32.mrf.mxu0
      %v612 = vadd.f32 %v317, %v611
      %v613 = vpop.f32.mrf.mxu0
      %614 = vmatprep.mubr.f32.mxu0 0.0
      %615 = vmatmul.mubr.f32.gmra.mxu0 %v399
      %v616 = vpop.f32.mrf.mxu0
      %v617 = vadd.f32 %v317, %v616
      %v618 = vpop.f32.mrf.mxu0
      %619 = vmatprep.mubr.f32.mxu0 0.0
      %620 = vmatmul.mubr.f32.gmra.mxu0 %v402
      %v621 = vpop.f32.mrf.mxu0
      %v622 = vadd.f32 %v317, %v621
      %v623 = vpop.f32.mrf.mxu0
      %624 = vmatprep.mubr.f32.mxu0 0.0
      %625 = vmatmul.mubr.f32.gmra.mxu0 %v405
      %v626 = vpop.f32.mrf.mxu0
      %v627 = vadd.f32 %v317, %v626
      %v628 = vpop.f32.mrf.mxu0
      %629 = vmatprep.mubr.f32.mxu0 0.0
      %630 = vmatmul.mubr.f32.gmra.mxu0 %v408
      %v631 = vpop.f32.mrf.mxu0
      %v632 = vadd.f32 %v317, %v631
      %v633 = vpop.f32.mrf.mxu0
      %634 = vmatprep.mubr.f32.mxu0 0.0
      %635 = vmatmul.mubr.f32.gmra.mxu0 %v411
      %v636 = vpop.f32.mrf.mxu0
      %v637 = vadd.f32 %v317, %v636
      %v638 = vpop.f32.mrf.mxu0
      %639 = vmatprep.mubr.f32.mxu0 0.0
      %640 = vmatmul.mubr.f32.gmra.mxu0 %v414
      %v641 = vpop.f32.mrf.mxu0
      %v642 = vadd.f32 %v317, %v641
      %v643 = vpop.f32.mrf.mxu0
      %644 = vdwg.mxu0
      %v645 = vmax.f32 %v487, 0.0
      %v646 = vmax.f32 %v492, 0.0
      %v647 = vmax.f32 %v497, 0.0
      %v648 = vmax.f32 %v502, 0.0
      %v649 = vmax.f32 %v507, 0.0
      %v650 = vmax.f32 %v512, 0.0
      %v651 = vmax.f32 %v517, 0.0
      %v652 = vmax.f32 %v522, 0.0
      %v653 = vmax.f32 %v527, 0.0
      %v654 = vmax.f32 %v532, 0.0
      %v655 = vmax.f32 %v537, 0.0
      %v656 = vmax.f32 %v542, 0.0
      %v657 = vmax.f32 %v547, 0.0
      %v658 = vmax.f32 %v552, 0.0
      %v659 = vmax.f32 %v557, 0.0
      %v660 = vmax.f32 %v562, 0.0
      %v661 = vmax.f32 %v567, 0.0
      %v662 = vmax.f32 %v572, 0.0
      %v663 = vmax.f32 %v577, 0.0
      %v664 = vmax.f32 %v582, 0.0
      %v665 = vmax.f32 %v587, 0.0
      %v666 = vmax.f32 %v592, 0.0
      %v667 = vmax.f32 %v597, 0.0
      %v668 = vmax.f32 %v602, 0.0
      %v669 = vmax.f32 %v607, 0.0
      %v670 = vmax.f32 %v612, 0.0
      %v671 = vmax.f32 %v617, 0.0
      %v672 = vmax.f32 %v622, 0.0
      %v673 = vmax.f32 %v627, 0.0
      %v674 = vmax.f32 %v632, 0.0
      %v675 = vmax.f32 %v637, 0.0
      %v676 = vmax.f32 %v642, 0.0
      %v677 = vmin.f32 %v645, 6.0
      %v678 = vmin.f32 %v646, 6.0
      %v679 = vmin.f32 %v647, 6.0
      %v680 = vmin.f32 %v648, 6.0
      %v681 = vmin.f32 %v649, 6.0
      %v682 = vmin.f32 %v650, 6.0
      %v683 = vmin.f32 %v651, 6.0
      %v684 = vmin.f32 %v652, 6.0
      %v685 = vmin.f32 %v653, 6.0
      %v686 = vmin.f32 %v654, 6.0
      %v687 = vmin.f32 %v655, 6.0
      %v688 = vmin.f32 %v656, 6.0
      %v689 = vmin.f32 %v657, 6.0
      %v690 = vmin.f32 %v658, 6.0
      %v691 = vmin.f32 %v659, 6.0
      %v692 = vmin.f32 %v660, 6.0
      %v693 = vmin.f32 %v661, 6.0
      %v694 = vmin.f32 %v662, 6.0
      %v695 = vmin.f32 %v663, 6.0
      %v696 = vmin.f32 %v664, 6.0
      %v697 = vmin.f32 %v665, 6.0
      %v698 = vmin.f32 %v666, 6.0
      %v699 = vmin.f32 %v667, 6.0
      %v700 = vmin.f32 %v668, 6.0
      %v701 = vmin.f32 %v669, 6.0
      %v702 = vmin.f32 %v670, 6.0
      %v703 = vmin.f32 %v671, 6.0
      %v704 = vmin.f32 %v672, 6.0
      %v705 = vmin.f32 %v673, 6.0
      %v706 = vmin.f32 %v674, 6.0
      %v707 = vmin.f32 %v675, 6.0
      %v708 = vmin.f32 %v676, 6.0
      %vm709 = vcmask 64512
      %710 = vst.msk [vmem:[#allocation2] sm:$0xff] %vm709, 0.0
      %711 = vst.msk [vmem:[#allocation2 + $0x8] sm:$0xff] %vm709, 0.0
      %vm712 = vcmask 58368
      %713 = vst.msk [vmem:[#allocation2 + $0x10] sm:$0x3] %vm712, 0.0
      %714 = vst.msk [vmem:[#allocation2 + $0x18] sm:$0xff] %vm709, 0.0
      %715 = vst.msk [vmem:[#allocation2 + $0x20] sm:$0xff] %vm709, 0.0
      %716 = vst.msk [vmem:[#allocation2 + $0x28] sm:$0x3] %vm712, 0.0
      %717 = vst.msk [vmem:[#allocation2 + $0x30] sm:$0xff] %vm709, 0.0
      %718 = vst.msk [vmem:[#allocation2 + $0x38] sm:$0xff] %vm709, 0.0
      %719 = vst.msk [vmem:[#allocation2 + $0x40] sm:$0x3] %vm712, 0.0
      %720 = vst.msk [vmem:[#allocation2 + $0x48] sm:$0xff] %vm709, 0.0
      %721 = vst.msk [vmem:[#allocation2 + $0x50] sm:$0xff] %vm709, 0.0
      %722 = vst.msk [vmem:[#allocation2 + $0x58] sm:$0x3] %vm712, 0.0
      %723 = vst.msk [vmem:[#allocation2 + $0x60] sm:$0xff] %vm709, 0.0
      %724 = vst.msk [vmem:[#allocation2 + $0x68] sm:$0xff] %vm709, 0.0
      %725 = vst.msk [vmem:[#allocation2 + $0x70] sm:$0x3] %vm712, 0.0
      %726 = vst.msk [vmem:[#allocation2 + $0x78] sm:$0xff] %vm709, 0.0
      %727 = vst.msk [vmem:[#allocation2 + $0x80] sm:$0xff] %vm709, 0.0
      %728 = vst.msk [vmem:[#allocation2 + $0x88] sm:$0x3] %vm712, 0.0
      %729 = vst.msk [vmem:[#allocation2 + $0x90] sm:$0xff] %vm709, 0.0
      %730 = vst.msk [vmem:[#allocation2 + $0x98] sm:$0xff] %vm709, 0.0
      %731 = vst.msk [vmem:[#allocation2 + $0xa0] sm:$0x3] %vm712, 0.0
      %732 = vst.msk [vmem:[#allocation2 + $0xa8] sm:$0xff] %vm709, 0.0
      %733 = vst.msk [vmem:[#allocation2 + $0xb0] sm:$0xff] %vm709, 0.0
      %734 = vst.msk [vmem:[#allocation2 + $0xb8] sm:$0x3] %vm712, 0.0
      %735 = vst.msk [vmem:[#allocation2 + $0xc0] sm:$0xff] %vm709, 0.0
      %736 = vst.msk [vmem:[#allocation2 + $0xc8] sm:$0xff] %vm709, 0.0
      %737 = vst.msk [vmem:[#allocation2 + $0xd0] sm:$0x3] %vm712, 0.0
      %738 = vst.msk [vmem:[#allocation2 + $0xd8] sm:$0xff] %vm709, 0.0
      %739 = vst.msk [vmem:[#allocation2 + $0xe0] sm:$0xff] %vm709, 0.0
      %740 = vst.msk [vmem:[#allocation2 + $0xe8] sm:$0x3] %vm712, 0.0
      %741 = vst.msk [vmem:[#allocation2 + $0xf0] sm:$0xff] %vm709, 0.0
      %742 = vst.msk [vmem:[#allocation2 + $0xf8] sm:$0xff] %vm709, 0.0
      %743 = vst.msk [vmem:[#allocation2 + $0x100] sm:$0x3] %vm712, 0.0
      %744 = vst.msk [vmem:[#allocation2 + $0x108] sm:$0xff] %vm709, 0.0
      %745 = vst.msk [vmem:[#allocation2 + $0x110] sm:$0xff] %vm709, 0.0
      %746 = vst.msk [vmem:[#allocation2 + $0x118] sm:$0x3] %vm712, 0.0
      %747 = vst.msk [vmem:[#allocation2 + $0x120] sm:$0xff] %vm709, 0.0
      %748 = vst.msk [vmem:[#allocation2 + $0x128] sm:$0xff] %vm709, 0.0
      %749 = vst.msk [vmem:[#allocation2 + $0x130] sm:$0x3] %vm712, 0.0
      %750 = vst.msk [vmem:[#allocation2 + $0x138] sm:$0xff] %vm709, 0.0
      %751 = vst.msk [vmem:[#allocation2 + $0x140] sm:$0xff] %vm709, 0.0
      %752 = vst.msk [vmem:[#allocation2 + $0x148] sm:$0x3] %vm712, 0.0
      %753 = vst.msk [vmem:[#allocation2 + $0x150] sm:$0xff] %vm709, 0.0
      %754 = vst.msk [vmem:[#allocation2 + $0x158] sm:$0xff] %vm709, 0.0
      %755 = vst.msk [vmem:[#allocation2 + $0x160] sm:$0x3] %vm712, 0.0
      %756 = vst.msk [vmem:[#allocation2 + $0x168] sm:$0xff] %vm709, 0.0
      %757 = vst.msk [vmem:[#allocation2 + $0x170] sm:$0xff] %vm709, 0.0
      %758 = vst.msk [vmem:[#allocation2 + $0x178] sm:$0x3] %vm712, 0.0
      %759 = vst.msk [vmem:[#allocation2 + $0x180] sm:$0xff] %vm709, 0.0
      %760 = vst.msk [vmem:[#allocation2 + $0x188] sm:$0xff] %vm709, 0.0
      %761 = vst.msk [vmem:[#allocation2 + $0x190] sm:$0x3] %vm712, 0.0
      %762 = vst.msk [vmem:[#allocation2 + $0x198] sm:$0xff] %vm709, 0.0
      %763 = vst.msk [vmem:[#allocation2 + $0x1a0] sm:$0xff] %vm709, 0.0
      %764 = vst.msk [vmem:[#allocation2 + $0x1a8] sm:$0x3] %vm712, 0.0
      %s765 = scalar_lea.vmem [#allocation2], 24
      %766 = vst.msk [vmem:[%s765 + $0x1] sm:$0xff] %vm709, %v677
      %767 = vst.msk [vmem:[%s765 + $0x9] sm:$0xff] %vm709, %v678
      %768 = vst.msk [vmem:[%s765 + $0x19] sm:$0xff] %vm709, %v679
      %769 = vst.msk [vmem:[%s765 + $0x21] sm:$0xff] %vm709, %v680
      %770 = vst.msk [vmem:[%s765 + $0x31] sm:$0xff] %vm709, %v681
      %771 = vst.msk [vmem:[%s765 + $0x39] sm:$0xff] %vm709, %v682
      %772 = vst.msk [vmem:[%s765 + $0x49] sm:$0xff] %vm709, %v683
      %773 = vst.msk [vmem:[%s765 + $0x51] sm:$0xff] %vm709, %v684
      %774 = vst.msk [vmem:[%s765 + $0x61] sm:$0xff] %vm709, %v685
      %775 = vst.msk [vmem:[%s765 + $0x69] sm:$0xff] %vm709, %v686
      %776 = vst.msk [vmem:[%s765 + $0x79] sm:$0xff] %vm709, %v687
      %777 = vst.msk [vmem:[%s765 + $0x81] sm:$0xff] %vm709, %v688
      %778 = vst.msk [vmem:[%s765 + $0x91] sm:$0xff] %vm709, %v689
      %779 = vst.msk [vmem:[%s765 + $0x99] sm:$0xff] %vm709, %v690
      %780 = vst.msk [vmem:[%s765 + $0xa9] sm:$0xff] %vm709, %v691
      %781 = vst.msk [vmem:[%s765 + $0xb1] sm:$0xff] %vm709, %v692
      %782 = vst.msk [vmem:[%s765 + $0xc1] sm:$0xff] %vm709, %v693
      %783 = vst.msk [vmem:[%s765 + $0xc9] sm:$0xff] %vm709, %v694
      %784 = vst.msk [vmem:[%s765 + $0xd9] sm:$0xff] %vm709, %v695
      %785 = vst.msk [vmem:[%s765 + $0xe1] sm:$0xff] %vm709, %v696
      %786 = vst.msk [vmem:[%s765 + $0xf1] sm:$0xff] %vm709, %v697
      %787 = vst.msk [vmem:[%s765 + $0xf9] sm:$0xff] %vm709, %v698
      %788 = vst.msk [vmem:[%s765 + $0x109] sm:$0xff] %vm709, %v699
      %789 = vst.msk [vmem:[%s765 + $0x111] sm:$0xff] %vm709, %v700
      %790 = vst.msk [vmem:[%s765 + $0x121] sm:$0xff] %vm709, %v701
      %791 = vst.msk [vmem:[%s765 + $0x129] sm:$0xff] %vm709, %v702
      %792 = vst.msk [vmem:[%s765 + $0x139] sm:$0xff] %vm709, %v703
      %793 = vst.msk [vmem:[%s765 + $0x141] sm:$0xff] %vm709, %v704
      %794 = vst.msk [vmem:[%s765 + $0x151] sm:$0xff] %vm709, %v705
      %795 = vst.msk [vmem:[%s765 + $0x159] sm:$0xff] %vm709, %v706
      %796 = vst.msk [vmem:[%s765 + $0x169] sm:$0xff] %vm709, %v707
      %797 = vst.msk [vmem:[%s765 + $0x171] sm:$0xff] %vm709, %v708
      %v798 = vld [vmem:[%s3] sm:$0x7]
      %v799 = vld [vmem:[%s3 + $0x4] sm:$0x7]
      %v800 = vld [vmem:[%s3 + $0x8] sm:$0x7]
      %v801 = vld [vmem:[#allocation2] sm:$0xff]
      %v802 = vld [vmem:[#allocation2 + $0x8] sm:$0xff]
      %v803 = vld [vmem:[#allocation2 + $0x18] sm:$0xff]
      %v804 = vld [vmem:[#allocation2 + $0x20] sm:$0xff]
      %v805 = vld [vmem:[#allocation2 + $0x30] sm:$0xff]
      %v806 = vld [vmem:[#allocation2 + $0x38] sm:$0xff]
      %v807 = vld [vmem:[#allocation2 + $0x48] sm:$0xff]
      %v808 = vld [vmem:[#allocation2 + $0x50] sm:$0xff]
      %v809 = vld [vmem:[#allocation2 + $0x60] sm:$0xff]
      %v810 = vld [vmem:[#allocation2 + $0x68] sm:$0xff]
      %v811 = vld [vmem:[#allocation2 + $0x78] sm:$0xff]
      %v812 = vld [vmem:[#allocation2 + $0x80] sm:$0xff]
      %v813 = vld [vmem:[#allocation2 + $0x90] sm:$0xff]
      %v814 = vld [vmem:[#allocation2 + $0x98] sm:$0xff]
      %v815 = vld [vmem:[#allocation2 + $0xa8] sm:$0xff]
      %v816 = vld [vmem:[#allocation2 + $0xb0] sm:$0xff]
      %v817 = vld [vmem:[#allocation2 + $0xc0] sm:$0xff]
      %v818 = vld [vmem:[#allocation2 + $0xc8] sm:$0xff]
      %v819 = vld [vmem:[#allocation2 + $0xd8] sm:$0xff]
      %v820 = vld [vmem:[#allocation2 + $0xe0] sm:$0xff]
      %v821 = vld [vmem:[#allocation2 + $0xf0] sm:$0xff]
      %v822 = vld [vmem:[#allocation2 + $0xf8] sm:$0xff]
      %v823 = vld [vmem:[#allocation2 + $0x108] sm:$0xff]
      %v824 = vld [vmem:[#allocation2 + $0x110] sm:$0xff]
      %v825 = vld [vmem:[#allocation2 + $0x120] sm:$0xff]
      %v826 = vld [vmem:[#allocation2 + $0x128] sm:$0xff]
      %v827 = vld [vmem:[#allocation2 + $0x138] sm:$0xff]
      %v828 = vld [vmem:[#allocation2 + $0x140] sm:$0xff]
      %v829 = vld [vmem:[#allocation2 + $0x150] sm:$0xff]
      %v830 = vld [vmem:[#allocation2 + $0x158] sm:$0xff]
      %v831 = vld [vmem:[#allocation2 + $0x168] sm:$0xff]
      %v832 = vld [vmem:[#allocation2 + $0x170] sm:$0xff]
      %v833 = vlaneseq
      %v834 = vshrl.u32 %v833, 7
      %v835 = vsub.s32 0, %v834
      %v836 = vrot.slane %v798, %v835
      %v837 = vmul.f32 %v801, %v836
      %v838 = vmul.f32 %v802, %v836
      %v839 = vmul.f32 %v803, %v836
      %v840 = vmul.f32 %v804, %v836
      %v841 = vmul.f32 %v805, %v836
      %v842 = vmul.f32 %v806, %v836
      %v843 = vmul.f32 %v807, %v836
      %v844 = vmul.f32 %v808, %v836
      %v845 = vmul.f32 %v809, %v836
      %v846 = vmul.f32 %v810, %v836
      %v847 = vmul.f32 %v811, %v836
      %v848 = vmul.f32 %v812, %v836
      %v849 = vmul.f32 %v813, %v836
      %v850 = vmul.f32 %v814, %v836
      %v851 = vmul.f32 %v815, %v836
      %v852 = vmul.f32 %v816, %v836
      %v853 = vmul.f32 %v817, %v836
      %v854 = vmul.f32 %v818, %v836
      %v855 = vmul.f32 %v819, %v836
      %v856 = vmul.f32 %v820, %v836
      %v857 = vmul.f32 %v821, %v836
      %v858 = vmul.f32 %v822, %v836
      %v859 = vmul.f32 %v823, %v836
      %v860 = vmul.f32 %v824, %v836
      %v861 = vmul.f32 %v825, %v836
      %v862 = vmul.f32 %v826, %v836
      %v863 = vmul.f32 %v827, %v836
      %v864 = vmul.f32 %v828, %v836
      %v865 = vmul.f32 %v829, %v836
      %v866 = vmul.f32 %v830, %v836
      %v867 = vmul.f32 %v831, %v836
      %v868 = vmul.f32 %v832, %v836
      %v869 = vadd.f32 %v837, 0.0
      %v870 = vadd.f32 %v838, 0.0
      %v871 = vadd.f32 %v839, 0.0
      %v872 = vadd.f32 %v840, 0.0
      %v873 = vadd.f32 %v841, 0.0
      %v874 = vadd.f32 %v842, 0.0
      %v875 = vadd.f32 %v843, 0.0
      %v876 = vadd.f32 %v844, 0.0
      %v877 = vadd.f32 %v845, 0.0
      %v878 = vadd.f32 %v846, 0.0
      %v879 = vadd.f32 %v847, 0.0
      %v880 = vadd.f32 %v848, 0.0
      %v881 = vadd.f32 %v849, 0.0
      %v882 = vadd.f32 %v850, 0.0
      %v883 = vadd.f32 %v851, 0.0
      %v884 = vadd.f32 %v852, 0.0
      %v885 = vadd.f32 %v853, 0.0
      %v886 = vadd.f32 %v854, 0.0
      %v887 = vadd.f32 %v855, 0.0
      %v888 = vadd.f32 %v856, 0.0
      %v889 = vadd.f32 %v857, 0.0
      %v890 = vadd.f32 %v858, 0.0
      %v891 = vadd.f32 %v859, 0.0
      %v892 = vadd.f32 %v860, 0.0
      %v893 = vadd.f32 %v861, 0.0
      %v894 = vadd.f32 %v862, 0.0
      %v895 = vadd.f32 %v863, 0.0
      %v896 = vadd.f32 %v864, 0.0
      %v897 = vadd.f32 %v865, 0.0
      %v898 = vadd.f32 %v866, 0.0
      %v899 = vadd.f32 %v867, 0.0
      %v900 = vadd.f32 %v868, 0.0
      %v901 = vld [vmem:[#allocation2 + $0x1] sm:$0xff]
      %v902 = vld [vmem:[#allocation2 + $0x9] sm:$0xff]
      %v903 = vld [vmem:[#allocation2 + $0x19] sm:$0xff]
      %v904 = vld [vmem:[#allocation2 + $0x21] sm:$0xff]
      %v905 = vld [vmem:[#allocation2 + $0x31] sm:$0xff]
      %v906 = vld [vmem:[#allocation2 + $0x39] sm:$0xff]
      %v907 = vld [vmem:[#allocation2 + $0x49] sm:$0xff]
      %v908 = vld [vmem:[#allocation2 + $0x51] sm:$0xff]
      %v909 = vld [vmem:[#allocation2 + $0x61] sm:$0xff]
      %v910 = vld [vmem:[#allocation2 + $0x69] sm:$0xff]
      %v911 = vld [vmem:[#allocation2 + $0x79] sm:$0xff]
      %v912 = vld [vmem:[#allocation2 + $0x81] sm:$0xff]
      %v913 = vld [vmem:[#allocation2 + $0x91] sm:$0xff]
      %v914 = vld [vmem:[#allocation2 + $0x99] sm:$0xff]
      %v915 = vld [vmem:[#allocation2 + $0xa9] sm:$0xff]
      %v916 = vld [vmem:[#allocation2 + $0xb1] sm:$0xff]
      %v917 = vld [vmem:[#allocation2 + $0xc1] sm:$0xff]
      %v918 = vld [vmem:[#allocation2 + $0xc9] sm:$0xff]
      %v919 = vld [vmem:[#allocation2 + $0xd9] sm:$0xff]
      %v920 = vld [vmem:[#allocation2 + $0xe1] sm:$0xff]
      %v921 = vld [vmem:[#allocation2 + $0xf1] sm:$0xff]
      %v922 = vld [vmem:[#allocation2 + $0xf9] sm:$0xff]
      %v923 = vld [vmem:[#allocation2 + $0x109] sm:$0xff]
      %v924 = vld [vmem:[#allocation2 + $0x111] sm:$0xff]
      %v925 = vld [vmem:[#allocation2 + $0x121] sm:$0xff]
      %v926 = vld [vmem:[#allocation2 + $0x129] sm:$0xff]
      %v927 = vld [vmem:[#allocation2 + $0x139] sm:$0xff]
      %v928 = vld [vmem:[#allocation2 + $0x141] sm:$0xff]
      %v929 = vld [vmem:[#allocation2 + $0x151] sm:$0xff]
      %v930 = vld [vmem:[#allocation2 + $0x159] sm:$0xff]
      %v931 = vld [vmem:[#allocation2 + $0x169] sm:$0xff]
      %v932 = vld [vmem:[#allocation2 + $0x171] sm:$0xff]
      %v933 = vlaneseq
      %v934 = vshrl.u32 %v933, 7
      %v935 = vsub.s32 1, %v934
      %v936 = vrot.slane %v798, %v935
      %v937 = vmul.f32 %v901, %v936
      %v938 = vmul.f32 %v902, %v936
      %v939 = vmul.f32 %v903, %v936
      %v940 = vmul.f32 %v904, %v936
      %v941 = vmul.f32 %v905, %v936
      %v942 = vmul.f32 %v906, %v936
      %v943 = vmul.f32 %v907, %v936
      %v944 = vmul.f32 %v908, %v936
      %v945 = vmul.f32 %v909, %v936
      %v946 = vmul.f32 %v910, %v936
      %v947 = vmul.f32 %v911, %v936
      %v948 = vmul.f32 %v912, %v936
      %v949 = vmul.f32 %v913, %v936
      %v950 = vmul.f32 %v914, %v936
      %v951 = vmul.f32 %v915, %v936
      %v952 = vmul.f32 %v916, %v936
      %v953 = vmul.f32 %v917, %v936
      %v954 = vmul.f32 %v918, %v936
      %v955 = vmul.f32 %v919, %v936
      %v956 = vmul.f32 %v920, %v936
      %v957 = vmul.f32 %v921, %v936
      %v958 = vmul.f32 %v922, %v936
      %v959 = vmul.f32 %v923, %v936
      %v960 = vmul.f32 %v924, %v936
      %v961 = vmul.f32 %v925, %v936
      %v962 = vmul.f32 %v926, %v936
      %v963 = vmul.f32 %v927, %v936
      %v964 = vmul.f32 %v928, %v936
      %v965 = vmul.f32 %v929, %v936
      %v966 = vmul.f32 %v930, %v936
      %v967 = vmul.f32 %v931, %v936
      %v968 = vmul.f32 %v932, %v936
      %v969 = vadd.f32 %v869, %v937
      %v970 = vadd.f32 %v870, %v938
      %v971 = vadd.f32 %v871, %v939
      %v972 = vadd.f32 %v872, %v940
      %v973 = vadd.f32 %v873, %v941
      %v974 = vadd.f32 %v874, %v942
      %v975 = vadd.f32 %v875, %v943
      %v976 = vadd.f32 %v876, %v944
      %v977 = vadd.f32 %v877, %v945
      %v978 = vadd.f32 %v878, %v946
      %v979 = vadd.f32 %v879, %v947
      %v980 = vadd.f32 %v880, %v948
      %v981 = vadd.f32 %v881, %v949
      %v982 = vadd.f32 %v882, %v950
      %v983 = vadd.f32 %v883, %v951
      %v984 = vadd.f32 %v884, %v952
      %v985 = vadd.f32 %v885, %v953
      %v986 = vadd.f32 %v886, %v954
      %v987 = vadd.f32 %v887, %v955
      %v988 = vadd.f32 %v888, %v956
      %v989 = vadd.f32 %v889, %v957
      %v990 = vadd.f32 %v890, %v958
      %v991 = vadd.f32 %v891, %v959
      %v992 = vadd.f32 %v892, %v960
      %v993 = vadd.f32 %v893, %v961
      %v994 = vadd.f32 %v894, %v962
      %v995 = vadd.f32 %v895, %v963
      %v996 = vadd.f32 %v896, %v964
      %v997 = vadd.f32 %v897, %v965
      %v998 = vadd.f32 %v898, %v966
      %v999 = vadd.f32 %v899, %v967
      %v1000 = vadd.f32 %v900, %v968
      %v1001 = vld [vmem:[#allocation2 + $0x2] sm:$0xff]
      %v1002 = vld [vmem:[#allocation2 + $0xa] sm:$0xff]
      %v1003 = vld [vmem:[#allocation2 + $0x1a] sm:$0xff]
      %v1004 = vld [vmem:[#allocation2 + $0x22] sm:$0xff]
      %v1005 = vld [vmem:[#allocation2 + $0x32] sm:$0xff]
      %v1006 = vld [vmem:[#allocation2 + $0x3a] sm:$0xff]
      %v1007 = vld [vmem:[#allocation2 + $0x4a] sm:$0xff]
      %v1008 = vld [vmem:[#allocation2 + $0x52] sm:$0xff]
      %v1009 = vld [vmem:[#allocation2 + $0x62] sm:$0xff]
      %v1010 = vld [vmem:[#allocation2 + $0x6a] sm:$0xff]
      %v1011 = vld [vmem:[#allocation2 + $0x7a] sm:$0xff]
      %v1012 = vld [vmem:[#allocation2 + $0x82] sm:$0xff]
      %v1013 = vld [vmem:[#allocation2 + $0x92] sm:$0xff]
      %v1014 = vld [vmem:[#allocation2 + $0x9a] sm:$0xff]
      %v1015 = vld [vmem:[#allocation2 + $0xaa] sm:$0xff]
      %v1016 = vld [vmem:[#allocation2 + $0xb2] sm:$0xff]
      %v1017 = vld [vmem:[#allocation2 + $0xc2] sm:$0xff]
      %v1018 = vld [vmem:[#allocation2 + $0xca] sm:$0xff]
      %v1019 = vld [vmem:[#allocation2 + $0xda] sm:$0xff]
      %v1020 = vld [vmem:[#allocation2 + $0xe2] sm:$0xff]
      %v1021 = vld [vmem:[#allocation2 + $0xf2] sm:$0xff]
      %v1022 = vld [vmem:[#allocation2 + $0xfa] sm:$0xff]
      %v1023 = vld [vmem:[#allocation2 + $0x10a] sm:$0xff]
      %v1024 = vld [vmem:[#allocation2 + $0x112] sm:$0xff]
      %v1025 = vld [vmem:[#allocation2 + $0x122] sm:$0xff]
      %v1026 = vld [vmem:[#allocation2 + $0x12a] sm:$0xff]
      %v1027 = vld [vmem:[#allocation2 + $0x13a] sm:$0xff]
      %v1028 = vld [vmem:[#allocation2 + $0x142] sm:$0xff]
      %v1029 = vld [vmem:[#allocation2 + $0x152] sm:$0xff]
      %v1030 = vld [vmem:[#allocation2 + $0x15a] sm:$0xff]
      %v1031 = vld [vmem:[#allocation2 + $0x16a] sm:$0xff]
      %v1032 = vld [vmem:[#allocation2 + $0x172] sm:$0xff]
      %v1033 = vlaneseq
      %v1034 = vshrl.u32 %v1033, 7
      %v1035 = vsub.s32 2, %v1034
      %v1036 = vrot.slane %v798, %v1035
      %v1037 = vmul.f32 %v1001, %v1036
      %v1038 = vmul.f32 %v1002, %v1036
      %v1039 = vmul.f32 %v1003, %v1036
      %v1040 = vmul.f32 %v1004, %v1036
      %v1041 = vmul.f32 %v1005, %v1036
      %v1042 = vmul.f32 %v1006, %v1036
      %v1043 = vmul.f32 %v1007, %v1036
      %v1044 = vmul.f32 %v1008, %v1036
      %v1045 = vmul.f32 %v1009, %v1036
      %v1046 = vmul.f32 %v1010, %v1036
      %v1047 = vmul.f32 %v1011, %v1036
      %v1048 = vmul.f32 %v1012, %v1036
      %v1049 = vmul.f32 %v1013, %v1036
      %v1050 = vmul.f32 %v1014, %v1036
      %v1051 = vmul.f32 %v1015, %v1036
      %v1052 = vmul.f32 %v1016, %v1036
      %v1053 = vmul.f32 %v1017, %v1036
      %v1054 = vmul.f32 %v1018, %v1036
      %v1055 = vmul.f32 %v1019, %v1036
      %v1056 = vmul.f32 %v1020, %v1036
      %v1057 = vmul.f32 %v1021, %v1036
      %v1058 = vmul.f32 %v1022, %v1036
      %v1059 = vmul.f32 %v1023, %v1036
      %v1060 = vmul.f32 %v1024, %v1036
      %v1061 = vmul.f32 %v1025, %v1036
      %v1062 = vmul.f32 %v1026, %v1036
      %v1063 = vmul.f32 %v1027, %v1036
      %v1064 = vmul.f32 %v1028, %v1036
      %v1065 = vmul.f32 %v1029, %v1036
      %v1066 = vmul.f32 %v1030, %v1036
      %v1067 = vmul.f32 %v1031, %v1036
      %v1068 = vmul.f32 %v1032, %v1036
      %v1069 = vadd.f32 %v969, %v1037
      %v1070 = vadd.f32 %v970, %v1038
      %v1071 = vadd.f32 %v971, %v1039
      %v1072 = vadd.f32 %v972, %v1040
      %v1073 = vadd.f32 %v973, %v1041
      %v1074 = vadd.f32 %v974, %v1042
      %v1075 = vadd.f32 %v975, %v1043
      %v1076 = vadd.f32 %v976, %v1044
      %v1077 = vadd.f32 %v977, %v1045
      %v1078 = vadd.f32 %v978, %v1046
      %v1079 = vadd.f32 %v979, %v1047
      %v1080 = vadd.f32 %v980, %v1048
      %v1081 = vadd.f32 %v981, %v1049
      %v1082 = vadd.f32 %v982, %v1050
      %v1083 = vadd.f32 %v983, %v1051
      %v1084 = vadd.f32 %v984, %v1052
      %v1085 = vadd.f32 %v985, %v1053
      %v1086 = vadd.f32 %v986, %v1054
      %v1087 = vadd.f32 %v987, %v1055
      %v1088 = vadd.f32 %v988, %v1056
      %v1089 = vadd.f32 %v989, %v1057
      %v1090 = vadd.f32 %v990, %v1058
      %v1091 = vadd.f32 %v991, %v1059
      %v1092 = vadd.f32 %v992, %v1060
      %v1093 = vadd.f32 %v993, %v1061
      %v1094 = vadd.f32 %v994, %v1062
      %v1095 = vadd.f32 %v995, %v1063
      %v1096 = vadd.f32 %v996, %v1064
      %v1097 = vadd.f32 %v997, %v1065
      %v1098 = vadd.f32 %v998, %v1066
      %v1099 = vadd.f32 %v999, %v1067
      %v1100 = vadd.f32 %v1000, %v1068
      %v1101 = vld [vmem:[%s765] sm:$0xff]
      %v1102 = vld [vmem:[%s765 + $0x8] sm:$0xff]
      %v1103 = vld [vmem:[%s765 + $0x18] sm:$0xff]
      %v1104 = vld [vmem:[%s765 + $0x20] sm:$0xff]
      %v1105 = vld [vmem:[%s765 + $0x30] sm:$0xff]
      %v1106 = vld [vmem:[%s765 + $0x38] sm:$0xff]
      %v1107 = vld [vmem:[%s765 + $0x48] sm:$0xff]
      %v1108 = vld [vmem:[%s765 + $0x50] sm:$0xff]
      %v1109 = vld [vmem:[%s765 + $0x60] sm:$0xff]
      %v1110 = vld [vmem:[%s765 + $0x68] sm:$0xff]
      %v1111 = vld [vmem:[%s765 + $0x78] sm:$0xff]
      %v1112 = vld [vmem:[%s765 + $0x80] sm:$0xff]
      %v1113 = vld [vmem:[%s765 + $0x90] sm:$0xff]
      %v1114 = vld [vmem:[%s765 + $0x98] sm:$0xff]
      %v1115 = vld [vmem:[%s765 + $0xa8] sm:$0xff]
      %v1116 = vld [vmem:[%s765 + $0xb0] sm:$0xff]
      %v1117 = vld [vmem:[%s765 + $0xc0] sm:$0xff]
      %v1118 = vld [vmem:[%s765 + $0xc8] sm:$0xff]
      %v1119 = vld [vmem:[%s765 + $0xd8] sm:$0xff]
      %v1120 = vld [vmem:[%s765 + $0xe0] sm:$0xff]
      %v1121 = vld [vmem:[%s765 + $0xf0] sm:$0xff]
      %v1122 = vld [vmem:[%s765 + $0xf8] sm:$0xff]
      %v1123 = vld [vmem:[%s765 + $0x108] sm:$0xff]
      %v1124 = vld [vmem:[%s765 + $0x110] sm:$0xff]
      %v1125 = vld [vmem:[%s765 + $0x120] sm:$0xff]
      %v1126 = vld [vmem:[%s765 + $0x128] sm:$0xff]
      %v1127 = vld [vmem:[%s765 + $0x138] sm:$0xff]
      %v1128 = vld [vmem:[%s765 + $0x140] sm:$0xff]
      %v1129 = vld [vmem:[%s765 + $0x150] sm:$0xff]
      %v1130 = vld [vmem:[%s765 + $0x158] sm:$0xff]
      %v1131 = vld [vmem:[%s765 + $0x168] sm:$0xff]
      %v1132 = vld [vmem:[%s765 + $0x170] sm:$0xff]
      %v1133 = vlaneseq
      %v1134 = vshrl.u32 %v1133, 7
      %v1135 = vsub.s32 0, %v1134
      %v1136 = vrot.slane %v799, %v1135
      %v1137 = vmul.f32 %v1101, %v1136
      %v1138 = vmul.f32 %v1102, %v1136
      %v1139 = vmul.f32 %v1103, %v1136
      %v1140 = vmul.f32 %v1104, %v1136
      %v1141 = vmul.f32 %v1105, %v1136
      %v1142 = vmul.f32 %v1106, %v1136
      %v1143 = vmul.f32 %v1107, %v1136
      %v1144 = vmul.f32 %v1108, %v1136
      %v1145 = vmul.f32 %v1109, %v1136
      %v1146 = vmul.f32 %v1110, %v1136
      %v1147 = vmul.f32 %v1111, %v1136
      %v1148 = vmul.f32 %v1112, %v1136
      %v1149 = vmul.f32 %v1113, %v1136
      %v1150 = vmul.f32 %v1114, %v1136
      %v1151 = vmul.f32 %v1115, %v1136
      %v1152 = vmul.f32 %v1116, %v1136
      %v1153 = vmul.f32 %v1117, %v1136
      %v1154 = vmul.f32 %v1118, %v1136
      %v1155 = vmul.f32 %v1119, %v1136
      %v1156 = vmul.f32 %v1120, %v1136
      %v1157 = vmul.f32 %v1121, %v1136
      %v1158 = vmul.f32 %v1122, %v1136
      %v1159 = vmul.f32 %v1123, %v1136
      %v1160 = vmul.f32 %v1124, %v1136
      %v1161 = vmul.f32 %v1125, %v1136
      %v1162 = vmul.f32 %v1126, %v1136
      %v1163 = vmul.f32 %v1127, %v1136
      %v1164 = vmul.f32 %v1128, %v1136
      %v1165 = vmul.f32 %v1129, %v1136
      %v1166 = vmul.f32 %v1130, %v1136
      %v1167 = vmul.f32 %v1131, %v1136
      %v1168 = vmul.f32 %v1132, %v1136
      %v1169 = vadd.f32 %v1069, %v1137
      %v1170 = vadd.f32 %v1070, %v1138
      %v1171 = vadd.f32 %v1071, %v1139
      %v1172 = vadd.f32 %v1072, %v1140
      %v1173 = vadd.f32 %v1073, %v1141
      %v1174 = vadd.f32 %v1074, %v1142
      %v1175 = vadd.f32 %v1075, %v1143
      %v1176 = vadd.f32 %v1076, %v1144
      %v1177 = vadd.f32 %v1077, %v1145
      %v1178 = vadd.f32 %v1078, %v1146
      %v1179 = vadd.f32 %v1079, %v1147
      %v1180 = vadd.f32 %v1080, %v1148
      %v1181 = vadd.f32 %v1081, %v1149
      %v1182 = vadd.f32 %v1082, %v1150
      %v1183 = vadd.f32 %v1083, %v1151
      %v1184 = vadd.f32 %v1084, %v1152
      %v1185 = vadd.f32 %v1085, %v1153
      %v1186 = vadd.f32 %v1086, %v1154
      %v1187 = vadd.f32 %v1087, %v1155
      %v1188 = vadd.f32 %v1088, %v1156
      %v1189 = vadd.f32 %v1089, %v1157
      %v1190 = vadd.f32 %v1090, %v1158
      %v1191 = vadd.f32 %v1091, %v1159
      %v1192 = vadd.f32 %v1092, %v1160
      %v1193 = vadd.f32 %v1093, %v1161
      %v1194 = vadd.f32 %v1094, %v1162
      %v1195 = vadd.f32 %v1095, %v1163
      %v1196 = vadd.f32 %v1096, %v1164
      %v1197 = vadd.f32 %v1097, %v1165
      %v1198 = vadd.f32 %v1098, %v1166
      %v1199 = vadd.f32 %v1099, %v1167
      %v1200 = vadd.f32 %v1100, %v1168
      %v1201 = vld [vmem:[%s765 + $0x1] sm:$0xff]
      %v1202 = vld [vmem:[%s765 + $0x9] sm:$0xff]
      %v1203 = vld [vmem:[%s765 + $0x19] sm:$0xff]
      %v1204 = vld [vmem:[%s765 + $0x21] sm:$0xff]
      %v1205 = vld [vmem:[%s765 + $0x31] sm:$0xff]
      %v1206 = vld [vmem:[%s765 + $0x39] sm:$0xff]
      %v1207 = vld [vmem:[%s765 + $0x49] sm:$0xff]
      %v1208 = vld [vmem:[%s765 + $0x51] sm:$0xff]
      %v1209 = vld [vmem:[%s765 + $0x61] sm:$0xff]
      %v1210 = vld [vmem:[%s765 + $0x69] sm:$0xff]
      %v1211 = vld [vmem:[%s765 + $0x79] sm:$0xff]
      %v1212 = vld [vmem:[%s765 + $0x81] sm:$0xff]
      %v1213 = vld [vmem:[%s765 + $0x91] sm:$0xff]
      %v1214 = vld [vmem:[%s765 + $0x99] sm:$0xff]
      %v1215 = vld [vmem:[%s765 + $0xa9] sm:$0xff]
      %v1216 = vld [vmem:[%s765 + $0xb1] sm:$0xff]
      %v1217 = vld [vmem:[%s765 + $0xc1] sm:$0xff]
      %v1218 = vld [vmem:[%s765 + $0xc9] sm:$0xff]
      %v1219 = vld [vmem:[%s765 + $0xd9] sm:$0xff]
      %v1220 = vld [vmem:[%s765 + $0xe1] sm:$0xff]
      %v1221 = vld [vmem:[%s765 + $0xf1] sm:$0xff]
      %v1222 = vld [vmem:[%s765 + $0xf9] sm:$0xff]
      %v1223 = vld [vmem:[%s765 + $0x109] sm:$0xff]
      %v1224 = vld [vmem:[%s765 + $0x111] sm:$0xff]
      %v1225 = vld [vmem:[%s765 + $0x121] sm:$0xff]
      %v1226 = vld [vmem:[%s765 + $0x129] sm:$0xff]
      %v1227 = vld [vmem:[%s765 + $0x139] sm:$0xff]
      %v1228 = vld [vmem:[%s765 + $0x141] sm:$0xff]
      %v1229 = vld [vmem:[%s765 + $0x151] sm:$0xff]
      %v1230 = vld [vmem:[%s765 + $0x159] sm:$0xff]
      %v1231 = vld [vmem:[%s765 + $0x169] sm:$0xff]
      %v1232 = vld [vmem:[%s765 + $0x171] sm:$0xff]
      %v1233 = vlaneseq
      %v1234 = vshrl.u32 %v1233, 7
      %v1235 = vsub.s32 1, %v1234
      %v1236 = vrot.slane %v799, %v1235
      %v1237 = vmul.f32 %v1201, %v1236
      %v1238 = vmul.f32 %v1202, %v1236
      %v1239 = vmul.f32 %v1203, %v1236
      %v1240 = vmul.f32 %v1204, %v1236
      %v1241 = vmul.f32 %v1205, %v1236
      %v1242 = vmul.f32 %v1206, %v1236
      %v1243 = vmul.f32 %v1207, %v1236
      %v1244 = vmul.f32 %v1208, %v1236
      %v1245 = vmul.f32 %v1209, %v1236
      %v1246 = vmul.f32 %v1210, %v1236
      %v1247 = vmul.f32 %v1211, %v1236
      %v1248 = vmul.f32 %v1212, %v1236
      %v1249 = vmul.f32 %v1213, %v1236
      %v1250 = vmul.f32 %v1214, %v1236
      %v1251 = vmul.f32 %v1215, %v1236
      %v1252 = vmul.f32 %v1216, %v1236
      %v1253 = vmul.f32 %v1217, %v1236
      %v1254 = vmul.f32 %v1218, %v1236
      %v1255 = vmul.f32 %v1219, %v1236
      %v1256 = vmul.f32 %v1220, %v1236
      %v1257 = vmul.f32 %v1221, %v1236
      %v1258 = vmul.f32 %v1222, %v1236
      %v1259 = vmul.f32 %v1223, %v1236
      %v1260 = vmul.f32 %v1224, %v1236
      %v1261 = vmul.f32 %v1225, %v1236
      %v1262 = vmul.f32 %v1226, %v1236
      %v1263 = vmul.f32 %v1227, %v1236
      %v1264 = vmul.f32 %v1228, %v1236
      %v1265 = vmul.f32 %v1229, %v1236
      %v1266 = vmul.f32 %v1230, %v1236
      %v1267 = vmul.f32 %v1231, %v1236
      %v1268 = vmul.f32 %v1232, %v1236
      %v1269 = vadd.f32 %v1169, %v1237
      %v1270 = vadd.f32 %v1170, %v1238
      %v1271 = vadd.f32 %v1171, %v1239
      %v1272 = vadd.f32 %v1172, %v1240
      %v1273 = vadd.f32 %v1173, %v1241
      %v1274 = vadd.f32 %v1174, %v1242
      %v1275 = vadd.f32 %v1175, %v1243
      %v1276 = vadd.f32 %v1176, %v1244
      %v1277 = vadd.f32 %v1177, %v1245
      %v1278 = vadd.f32 %v1178, %v1246
      %v1279 = vadd.f32 %v1179, %v1247
      %v1280 = vadd.f32 %v1180, %v1248
      %v1281 = vadd.f32 %v1181, %v1249
      %v1282 = vadd.f32 %v1182, %v1250
      %v1283 = vadd.f32 %v1183, %v1251
      %v1284 = vadd.f32 %v1184, %v1252
      %v1285 = vadd.f32 %v1185, %v1253
      %v1286 = vadd.f32 %v1186, %v1254
      %v1287 = vadd.f32 %v1187, %v1255
      %v1288 = vadd.f32 %v1188, %v1256
      %v1289 = vadd.f32 %v1189, %v1257
      %v1290 = vadd.f32 %v1190, %v1258
      %v1291 = vadd.f32 %v1191, %v1259
      %v1292 = vadd.f32 %v1192, %v1260
      %v1293 = vadd.f32 %v1193, %v1261
      %v1294 = vadd.f32 %v1194, %v1262
      %v1295 = vadd.f32 %v1195, %v1263
      %v1296 = vadd.f32 %v1196, %v1264
      %v1297 = vadd.f32 %v1197, %v1265
      %v1298 = vadd.f32 %v1198, %v1266
      %v1299 = vadd.f32 %v1199, %v1267
      %v1300 = vadd.f32 %v1200, %v1268
      %v1301 = vld [vmem:[%s765 + $0x2] sm:$0xff]
      %v1302 = vld [vmem:[%s765 + $0xa] sm:$0xff]
      %v1303 = vld [vmem:[%s765 + $0x1a] sm:$0xff]
      %v1304 = vld [vmem:[%s765 + $0x22] sm:$0xff]
      %v1305 = vld [vmem:[%s765 + $0x32] sm:$0xff]
      %v1306 = vld [vmem:[%s765 + $0x3a] sm:$0xff]
      %v1307 = vld [vmem:[%s765 + $0x4a] sm:$0xff]
      %v1308 = vld [vmem:[%s765 + $0x52] sm:$0xff]
      %v1309 = vld [vmem:[%s765 + $0x62] sm:$0xff]
      %v1310 = vld [vmem:[%s765 + $0x6a] sm:$0xff]
      %v1311 = vld [vmem:[%s765 + $0x7a] sm:$0xff]
      %v1312 = vld [vmem:[%s765 + $0x82] sm:$0xff]
      %v1313 = vld [vmem:[%s765 + $0x92] sm:$0xff]
      %v1314 = vld [vmem:[%s765 + $0x9a] sm:$0xff]
      %v1315 = vld [vmem:[%s765 + $0xaa] sm:$0xff]
      %v1316 = vld [vmem:[%s765 + $0xb2] sm:$0xff]
      %v1317 = vld [vmem:[%s765 + $0xc2] sm:$0xff]
      %v1318 = vld [vmem:[%s765 + $0xca] sm:$0xff]
      %v1319 = vld [vmem:[%s765 + $0xda] sm:$0xff]
      %v1320 = vld [vmem:[%s765 + $0xe2] sm:$0xff]
      %v1321 = vld [vmem:[%s765 + $0xf2] sm:$0xff]
      %v1322 = vld [vmem:[%s765 + $0xfa] sm:$0xff]
      %v1323 = vld [vmem:[%s765 + $0x10a] sm:$0xff]
      %v1324 = vld [vmem:[%s765 + $0x112] sm:$0xff]
      %v1325 = vld [vmem:[%s765 + $0x122] sm:$0xff]
      %v1326 = vld [vmem:[%s765 + $0x12a] sm:$0xff]
      %v1327 = vld [vmem:[%s765 + $0x13a] sm:$0xff]
      %v1328 = vld [vmem:[%s765 + $0x142] sm:$0xff]
      %v1329 = vld [vmem:[%s765 + $0x152] sm:$0xff]
      %v1330 = vld [vmem:[%s765 + $0x15a] sm:$0xff]
      %v1331 = vld [vmem:[%s765 + $0x16a] sm:$0xff]
      %v1332 = vld [vmem:[%s765 + $0x172] sm:$0xff]
      %v1333 = vlaneseq
      %v1334 = vshrl.u32 %v1333, 7
      %v1335 = vsub.s32 2, %v1334
      %v1336 = vrot.slane %v799, %v1335
      %v1337 = vmul.f32 %v1301, %v1336
      %v1338 = vmul.f32 %v1302, %v1336
      %v1339 = vmul.f32 %v1303, %v1336
      %v1340 = vmul.f32 %v1304, %v1336
      %v1341 = vmul.f32 %v1305, %v1336
      %v1342 = vmul.f32 %v1306, %v1336
      %v1343 = vmul.f32 %v1307, %v1336
      %v1344 = vmul.f32 %v1308, %v1336
      %v1345 = vmul.f32 %v1309, %v1336
      %v1346 = vmul.f32 %v1310, %v1336
      %v1347 = vmul.f32 %v1311, %v1336
      %v1348 = vmul.f32 %v1312, %v1336
      %v1349 = vmul.f32 %v1313, %v1336
      %v1350 = vmul.f32 %v1314, %v1336
      %v1351 = vmul.f32 %v1315, %v1336
      %v1352 = vmul.f32 %v1316, %v1336
      %v1353 = vmul.f32 %v1317, %v1336
      %v1354 = vmul.f32 %v1318, %v1336
      %v1355 = vmul.f32 %v1319, %v1336
      %v1356 = vmul.f32 %v1320, %v1336
      %v1357 = vmul.f32 %v1321, %v1336
      %v1358 = vmul.f32 %v1322, %v1336
      %v1359 = vmul.f32 %v1323, %v1336
      %v1360 = vmul.f32 %v1324, %v1336
      %v1361 = vmul.f32 %v1325, %v1336
      %v1362 = vmul.f32 %v1326, %v1336
      %v1363 = vmul.f32 %v1327, %v1336
      %v1364 = vmul.f32 %v1328, %v1336
      %v1365 = vmul.f32 %v1329, %v1336
      %v1366 = vmul.f32 %v1330, %v1336
      %v1367 = vmul.f32 %v1331, %v1336
      %v1368 = vmul.f32 %v1332, %v1336
      %v1369 = vadd.f32 %v1269, %v1337
      %v1370 = vadd.f32 %v1270, %v1338
      %v1371 = vadd.f32 %v1271, %v1339
      %v1372 = vadd.f32 %v1272, %v1340
      %v1373 = vadd.f32 %v1273, %v1341
      %v1374 = vadd.f32 %v1274, %v1342
      %v1375 = vadd.f32 %v1275, %v1343
      %v1376 = vadd.f32 %v1276, %v1344
      %v1377 = vadd.f32 %v1277, %v1345
      %v1378 = vadd.f32 %v1278, %v1346
      %v1379 = vadd.f32 %v1279, %v1347
      %v1380 = vadd.f32 %v1280, %v1348
      %v1381 = vadd.f32 %v1281, %v1349
      %v1382 = vadd.f32 %v1282, %v1350
      %v1383 = vadd.f32 %v1283, %v1351
      %v1384 = vadd.f32 %v1284, %v1352
      %v1385 = vadd.f32 %v1285, %v1353
      %v1386 = vadd.f32 %v1286, %v1354
      %v1387 = vadd.f32 %v1287, %v1355
      %v1388 = vadd.f32 %v1288, %v1356
      %v1389 = vadd.f32 %v1289, %v1357
      %v1390 = vadd.f32 %v1290, %v1358
      %v1391 = vadd.f32 %v1291, %v1359
      %v1392 = vadd.f32 %v1292, %v1360
      %v1393 = vadd.f32 %v1293, %v1361
      %v1394 = vadd.f32 %v1294, %v1362
      %v1395 = vadd.f32 %v1295, %v1363
      %v1396 = vadd.f32 %v1296, %v1364
      %v1397 = vadd.f32 %v1297, %v1365
      %v1398 = vadd.f32 %v1298, %v1366
      %v1399 = vadd.f32 %v1299, %v1367
      %v1400 = vadd.f32 %v1300, %v1368
      %s1401 = scalar_lea.vmem [#allocation2], 48
      %v1402 = vld [vmem:[%s1401] sm:$0xff]
      %v1403 = vld [vmem:[%s1401 + $0x8] sm:$0xff]
      %v1404 = vld [vmem:[%s1401 + $0x18] sm:$0xff]
      %v1405 = vld [vmem:[%s1401 + $0x20] sm:$0xff]
      %v1406 = vld [vmem:[%s1401 + $0x30] sm:$0xff]
      %v1407 = vld [vmem:[%s1401 + $0x38] sm:$0xff]
      %v1408 = vld [vmem:[%s1401 + $0x48] sm:$0xff]
      %v1409 = vld [vmem:[%s1401 + $0x50] sm:$0xff]
      %v1410 = vld [vmem:[%s1401 + $0x60] sm:$0xff]
      %v1411 = vld [vmem:[%s1401 + $0x68] sm:$0xff]
      %v1412 = vld [vmem:[%s1401 + $0x78] sm:$0xff]
      %v1413 = vld [vmem:[%s1401 + $0x80] sm:$0xff]
      %v1414 = vld [vmem:[%s1401 + $0x90] sm:$0xff]
      %v1415 = vld [vmem:[%s1401 + $0x98] sm:$0xff]
      %v1416 = vld [vmem:[%s1401 + $0xa8] sm:$0xff]
      %v1417 = vld [vmem:[%s1401 + $0xb0] sm:$0xff]
      %v1418 = vld [vmem:[%s1401 + $0xc0] sm:$0xff]
      %v1419 = vld [vmem:[%s1401 + $0xc8] sm:$0xff]
      %v1420 = vld [vmem:[%s1401 + $0xd8] sm:$0xff]
      %v1421 = vld [vmem:[%s1401 + $0xe0] sm:$0xff]
      %v1422 = vld [vmem:[%s1401 + $0xf0] sm:$0xff]
      %v1423 = vld [vmem:[%s1401 + $0xf8] sm:$0xff]
      %v1424 = vld [vmem:[%s1401 + $0x108] sm:$0xff]
      %v1425 = vld [vmem:[%s1401 + $0x110] sm:$0xff]
      %v1426 = vld [vmem:[%s1401 + $0x120] sm:$0xff]
      %v1427 = vld [vmem:[%s1401 + $0x128] sm:$0xff]
      %v1428 = vld [vmem:[%s1401 + $0x138] sm:$0xff]
      %v1429 = vld [vmem:[%s1401 + $0x140] sm:$0xff]
      %v1430 = vld [vmem:[%s1401 + $0x150] sm:$0xff]
      %v1431 = vld [vmem:[%s1401 + $0x158] sm:$0xff]
      %v1432 = vld [vmem:[%s1401 + $0x168] sm:$0xff]
      %v1433 = vld [vmem:[%s1401 + $0x170] sm:$0xff]
      %v1434 = vlaneseq
      %v1435 = vshrl.u32 %v1434, 7
      %v1436 = vsub.s32 0, %v1435
      %v1437 = vrot.slane %v800, %v1436
      %v1438 = vmul.f32 %v1402, %v1437
      %v1439 = vmul.f32 %v1403, %v1437
      %v1440 = vmul.f32 %v1404, %v1437
      %v1441 = vmul.f32 %v1405, %v1437
      %v1442 = vmul.f32 %v1406, %v1437
      %v1443 = vmul.f32 %v1407, %v1437
      %v1444 = vmul.f32 %v1408, %v1437
      %v1445 = vmul.f32 %v1409, %v1437
      %v1446 = vmul.f32 %v1410, %v1437
      %v1447 = vmul.f32 %v1411, %v1437
      %v1448 = vmul.f32 %v1412, %v1437
      %v1449 = vmul.f32 %v1413, %v1437
      %v1450 = vmul.f32 %v1414, %v1437
      %v1451 = vmul.f32 %v1415, %v1437
      %v1452 = vmul.f32 %v1416, %v1437
      %v1453 = vmul.f32 %v1417, %v1437
      %v1454 = vmul.f32 %v1418, %v1437
      %v1455 = vmul.f32 %v1419, %v1437
      %v1456 = vmul.f32 %v1420, %v1437
      %v1457 = vmul.f32 %v1421, %v1437
      %v1458 = vmul.f32 %v1422, %v1437
      %v1459 = vmul.f32 %v1423, %v1437
      %v1460 = vmul.f32 %v1424, %v1437
      %v1461 = vmul.f32 %v1425, %v1437
      %v1462 = vmul.f32 %v1426, %v1437
      %v1463 = vmul.f32 %v1427, %v1437
      %v1464 = vmul.f32 %v1428, %v1437
      %v1465 = vmul.f32 %v1429, %v1437
      %v1466 = vmul.f32 %v1430, %v1437
      %v1467 = vmul.f32 %v1431, %v1437
      %v1468 = vmul.f32 %v1432, %v1437
      %v1469 = vmul.f32 %v1433, %v1437
      %v1470 = vadd.f32 %v1369, %v1438
      %v1471 = vadd.f32 %v1370, %v1439
      %v1472 = vadd.f32 %v1371, %v1440
      %v1473 = vadd.f32 %v1372, %v1441
      %v1474 = vadd.f32 %v1373, %v1442
      %v1475 = vadd.f32 %v1374, %v1443
      %v1476 = vadd.f32 %v1375, %v1444
      %v1477 = vadd.f32 %v1376, %v1445
      %v1478 = vadd.f32 %v1377, %v1446
      %v1479 = vadd.f32 %v1378, %v1447
      %v1480 = vadd.f32 %v1379, %v1448
      %v1481 = vadd.f32 %v1380, %v1449
      %v1482 = vadd.f32 %v1381, %v1450
      %v1483 = vadd.f32 %v1382, %v1451
      %v1484 = vadd.f32 %v1383, %v1452
      %v1485 = vadd.f32 %v1384, %v1453
      %v1486 = vadd.f32 %v1385, %v1454
      %v1487 = vadd.f32 %v1386, %v1455
      %v1488 = vadd.f32 %v1387, %v1456
      %v1489 = vadd.f32 %v1388, %v1457
      %v1490 = vadd.f32 %v1389, %v1458
      %v1491 = vadd.f32 %v1390, %v1459
      %v1492 = vadd.f32 %v1391, %v1460
      %v1493 = vadd.f32 %v1392, %v1461
      %v1494 = vadd.f32 %v1393, %v1462
      %v1495 = vadd.f32 %v1394, %v1463
      %v1496 = vadd.f32 %v1395, %v1464
      %v1497 = vadd.f32 %v1396, %v1465
      %v1498 = vadd.f32 %v1397, %v1466
      %v1499 = vadd.f32 %v1398, %v1467
      %v1500 = vadd.f32 %v1399, %v1468
      %v1501 = vadd.f32 %v1400, %v1469
      %v1502 = vld [vmem:[%s1401 + $0x1] sm:$0xff]
      %v1503 = vld [vmem:[%s1401 + $0x9] sm:$0xff]
      %v1504 = vld [vmem:[%s1401 + $0x19] sm:$0xff]
      %v1505 = vld [vmem:[%s1401 + $0x21] sm:$0xff]
      %v1506 = vld [vmem:[%s1401 + $0x31] sm:$0xff]
      %v1507 = vld [vmem:[%s1401 + $0x39] sm:$0xff]
      %v1508 = vld [vmem:[%s1401 + $0x49] sm:$0xff]
      %v1509 = vld [vmem:[%s1401 + $0x51] sm:$0xff]
      %v1510 = vld [vmem:[%s1401 + $0x61] sm:$0xff]
      %v1511 = vld [vmem:[%s1401 + $0x69] sm:$0xff]
      %v1512 = vld [vmem:[%s1401 + $0x79] sm:$0xff]
      %v1513 = vld [vmem:[%s1401 + $0x81] sm:$0xff]
      %v1514 = vld [vmem:[%s1401 + $0x91] sm:$0xff]
      %v1515 = vld [vmem:[%s1401 + $0x99] sm:$0xff]
      %v1516 = vld [vmem:[%s1401 + $0xa9] sm:$0xff]
      %v1517 = vld [vmem:[%s1401 + $0xb1] sm:$0xff]
      %v1518 = vld [vmem:[%s1401 + $0xc1] sm:$0xff]
      %v1519 = vld [vmem:[%s1401 + $0xc9] sm:$0xff]
      %v1520 = vld [vmem:[%s1401 + $0xd9] sm:$0xff]
      %v1521 = vld [vmem:[%s1401 + $0xe1] sm:$0xff]
      %v1522 = vld [vmem:[%s1401 + $0xf1] sm:$0xff]
      %v1523 = vld [vmem:[%s1401 + $0xf9] sm:$0xff]
      %v1524 = vld [vmem:[%s1401 + $0x109] sm:$0xff]
      %v1525 = vld [vmem:[%s1401 + $0x111] sm:$0xff]
      %v1526 = vld [vmem:[%s1401 + $0x121] sm:$0xff]
      %v1527 = vld [vmem:[%s1401 + $0x129] sm:$0xff]
      %v1528 = vld [vmem:[%s1401 + $0x139] sm:$0xff]
      %v1529 = vld [vmem:[%s1401 + $0x141] sm:$0xff]
      %v1530 = vld [vmem:[%s1401 + $0x151] sm:$0xff]
      %v1531 = vld [vmem:[%s1401 + $0x159] sm:$0xff]
      %v1532 = vld [vmem:[%s1401 + $0x169] sm:$0xff]
      %v1533 = vld [vmem:[%s1401 + $0x171] sm:$0xff]
      %v1534 = vlaneseq
      %v1535 = vshrl.u32 %v1534, 7
      %v1536 = vsub.s32 1, %v1535
      %v1537 = vrot.slane %v800, %v1536
      %v1538 = vmul.f32 %v1502, %v1537
      %v1539 = vmul.f32 %v1503, %v1537
      %v1540 = vmul.f32 %v1504, %v1537
      %v1541 = vmul.f32 %v1505, %v1537
      %v1542 = vmul.f32 %v1506, %v1537
      %v1543 = vmul.f32 %v1507, %v1537
      %v1544 = vmul.f32 %v1508, %v1537
      %v1545 = vmul.f32 %v1509, %v1537
      %v1546 = vmul.f32 %v1510, %v1537
      %v1547 = vmul.f32 %v1511, %v1537
      %v1548 = vmul.f32 %v1512, %v1537
      %v1549 = vmul.f32 %v1513, %v1537
      %v1550 = vmul.f32 %v1514, %v1537
      %v1551 = vmul.f32 %v1515, %v1537
      %v1552 = vmul.f32 %v1516, %v1537
      %v1553 = vmul.f32 %v1517, %v1537
      %v1554 = vmul.f32 %v1518, %v1537
      %v1555 = vmul.f32 %v1519, %v1537
      %v1556 = vmul.f32 %v1520, %v1537
      %v1557 = vmul.f32 %v1521, %v1537
      %v1558 = vmul.f32 %v1522, %v1537
      %v1559 = vmul.f32 %v1523, %v1537
      %v1560 = vmul.f32 %v1524, %v1537
      %v1561 = vmul.f32 %v1525, %v1537
      %v1562 = vmul.f32 %v1526, %v1537
      %v1563 = vmul.f32 %v1527, %v1537
      %v1564 = vmul.f32 %v1528, %v1537
      %v1565 = vmul.f32 %v1529, %v1537
      %v1566 = vmul.f32 %v1530, %v1537
      %v1567 = vmul.f32 %v1531, %v1537
      %v1568 = vmul.f32 %v1532, %v1537
      %v1569 = vmul.f32 %v1533, %v1537
      %v1570 = vadd.f32 %v1470, %v1538
      %v1571 = vadd.f32 %v1471, %v1539
      %v1572 = vadd.f32 %v1472, %v1540
      %v1573 = vadd.f32 %v1473, %v1541
      %v1574 = vadd.f32 %v1474, %v1542
      %v1575 = vadd.f32 %v1475, %v1543
      %v1576 = vadd.f32 %v1476, %v1544
      %v1577 = vadd.f32 %v1477, %v1545
      %v1578 = vadd.f32 %v1478, %v1546
      %v1579 = vadd.f32 %v1479, %v1547
      %v1580 = vadd.f32 %v1480, %v1548
      %v1581 = vadd.f32 %v1481, %v1549
      %v1582 = vadd.f32 %v1482, %v1550
      %v1583 = vadd.f32 %v1483, %v1551
      %v1584 = vadd.f32 %v1484, %v1552
      %v1585 = vadd.f32 %v1485, %v1553
      %v1586 = vadd.f32 %v1486, %v1554
      %v1587 = vadd.f32 %v1487, %v1555
      %v1588 = vadd.f32 %v1488, %v1556
      %v1589 = vadd.f32 %v1489, %v1557
      %v1590 = vadd.f32 %v1490, %v1558
      %v1591 = vadd.f32 %v1491, %v1559
      %v1592 = vadd.f32 %v1492, %v1560
      %v1593 = vadd.f32 %v1493, %v1561
      %v1594 = vadd.f32 %v1494, %v1562
      %v1595 = vadd.f32 %v1495, %v1563
      %v1596 = vadd.f32 %v1496, %v1564
      %v1597 = vadd.f32 %v1497, %v1565
      %v1598 = vadd.f32 %v1498, %v1566
      %v1599 = vadd.f32 %v1499, %v1567
      %v1600 = vadd.f32 %v1500, %v1568
      %v1601 = vadd.f32 %v1501, %v1569
      %v1602 = vld [vmem:[%s1401 + $0x2] sm:$0xff]
      %v1603 = vld [vmem:[%s1401 + $0xa] sm:$0xff]
      %v1604 = vld [vmem:[%s1401 + $0x1a] sm:$0xff]
      %v1605 = vld [vmem:[%s1401 + $0x22] sm:$0xff]
      %v1606 = vld [vmem:[%s1401 + $0x32] sm:$0xff]
      %v1607 = vld [vmem:[%s1401 + $0x3a] sm:$0xff]
      %v1608 = vld [vmem:[%s1401 + $0x4a] sm:$0xff]
      %v1609 = vld [vmem:[%s1401 + $0x52] sm:$0xff]
      %v1610 = vld [vmem:[%s1401 + $0x62] sm:$0xff]
      %v1611 = vld [vmem:[%s1401 + $0x6a] sm:$0xff]
      %v1612 = vld [vmem:[%s1401 + $0x7a] sm:$0xff]
      %v1613 = vld [vmem:[%s1401 + $0x82] sm:$0xff]
      %v1614 = vld [vmem:[%s1401 + $0x92] sm:$0xff]
      %v1615 = vld [vmem:[%s1401 + $0x9a] sm:$0xff]
      %v1616 = vld [vmem:[%s1401 + $0xaa] sm:$0xff]
      %v1617 = vld [vmem:[%s1401 + $0xb2] sm:$0xff]
      %v1618 = vld [vmem:[%s1401 + $0xc2] sm:$0xff]
      %v1619 = vld [vmem:[%s1401 + $0xca] sm:$0xff]
      %v1620 = vld [vmem:[%s1401 + $0xda] sm:$0xff]
      %v1621 = vld [vmem:[%s1401 + $0xe2] sm:$0xff]
      %v1622 = vld [vmem:[%s1401 + $0xf2] sm:$0xff]
      %v1623 = vld [vmem:[%s1401 + $0xfa] sm:$0xff]
      %v1624 = vld [vmem:[%s1401 + $0x10a] sm:$0xff]
      %v1625 = vld [vmem:[%s1401 + $0x112] sm:$0xff]
      %v1626 = vld [vmem:[%s1401 + $0x122] sm:$0xff]
      %v1627 = vld [vmem:[%s1401 + $0x12a] sm:$0xff]
      %v1628 = vld [vmem:[%s1401 + $0x13a] sm:$0xff]
      %v1629 = vld [vmem:[%s1401 + $0x142] sm:$0xff]
      %v1630 = vld [vmem:[%s1401 + $0x152] sm:$0xff]
      %v1631 = vld [vmem:[%s1401 + $0x15a] sm:$0xff]
      %v1632 = vld [vmem:[%s1401 + $0x16a] sm:$0xff]
      %v1633 = vld [vmem:[%s1401 + $0x172] sm:$0xff]
      %v1634 = vlaneseq
      %v1635 = vshrl.u32 %v1634, 7
      %v1636 = vsub.s32 2, %v1635
      %v1637 = vrot.slane %v800, %v1636
      %v1638 = vmul.f32 %v1602, %v1637
      %v1639 = vmul.f32 %v1603, %v1637
      %v1640 = vmul.f32 %v1604, %v1637
      %v1641 = vmul.f32 %v1605, %v1637
      %v1642 = vmul.f32 %v1606, %v1637
      %v1643 = vmul.f32 %v1607, %v1637
      %v1644 = vmul.f32 %v1608, %v1637
      %v1645 = vmul.f32 %v1609, %v1637
      %v1646 = vmul.f32 %v1610, %v1637
      %v1647 = vmul.f32 %v1611, %v1637
      %v1648 = vmul.f32 %v1612, %v1637
      %v1649 = vmul.f32 %v1613, %v1637
      %v1650 = vmul.f32 %v1614, %v1637
      %v1651 = vmul.f32 %v1615, %v1637
      %v1652 = vmul.f32 %v1616, %v1637
      %v1653 = vmul.f32 %v1617, %v1637
      %v1654 = vmul.f32 %v1618, %v1637
      %v1655 = vmul.f32 %v1619, %v1637
      %v1656 = vmul.f32 %v1620, %v1637
      %v1657 = vmul.f32 %v1621, %v1637
      %v1658 = vmul.f32 %v1622, %v1637
      %v1659 = vmul.f32 %v1623, %v1637
      %v1660 = vmul.f32 %v1624, %v1637
      %v1661 = vmul.f32 %v1625, %v1637
      %v1662 = vmul.f32 %v1626, %v1637
      %v1663 = vmul.f32 %v1627, %v1637
      %v1664 = vmul.f32 %v1628, %v1637
      %v1665 = vmul.f32 %v1629, %v1637
      %v1666 = vmul.f32 %v1630, %v1637
      %v1667 = vmul.f32 %v1631, %v1637
      %v1668 = vmul.f32 %v1632, %v1637
      %v1669 = vmul.f32 %v1633, %v1637
      %v1670 = vadd.f32 %v1570, %v1638
      %v1671 = vadd.f32 %v1571, %v1639
      %v1672 = vadd.f32 %v1572, %v1640
      %v1673 = vadd.f32 %v1573, %v1641
      %v1674 = vadd.f32 %v1574, %v1642
      %v1675 = vadd.f32 %v1575, %v1643
      %v1676 = vadd.f32 %v1576, %v1644
      %v1677 = vadd.f32 %v1577, %v1645
      %v1678 = vadd.f32 %v1578, %v1646
      %v1679 = vadd.f32 %v1579, %v1647
      %v1680 = vadd.f32 %v1580, %v1648
      %v1681 = vadd.f32 %v1581, %v1649
      %v1682 = vadd.f32 %v1582, %v1650
      %v1683 = vadd.f32 %v1583, %v1651
      %v1684 = vadd.f32 %v1584, %v1652
      %v1685 = vadd.f32 %v1585, %v1653
      %v1686 = vadd.f32 %v1586, %v1654
      %v1687 = vadd.f32 %v1587, %v1655
      %v1688 = vadd.f32 %v1588, %v1656
      %v1689 = vadd.f32 %v1589, %v1657
      %v1690 = vadd.f32 %v1590, %v1658
      %v1691 = vadd.f32 %v1591, %v1659
      %v1692 = vadd.f32 %v1592, %v1660
      %v1693 = vadd.f32 %v1593, %v1661
      %v1694 = vadd.f32 %v1594, %v1662
      %v1695 = vadd.f32 %v1595, %v1663
      %v1696 = vadd.f32 %v1596, %v1664
      %v1697 = vadd.f32 %v1597, %v1665
      %v1698 = vadd.f32 %v1598, %v1666
      %v1699 = vadd.f32 %v1599, %v1667
      %v1700 = vadd.f32 %v1600, %v1668
      %v1701 = vadd.f32 %v1601, %v1669
      %v1702 = vld [vmem:[%s4] sm:$0x1]
      %v1704 = vlaneseq
      %v1705 = vshrl.u32 %v1704, 7
      %v1706 = vsub.s32 0, %v1705
      %v1707 = vrot.slane %v1702, %v1706
      %v1709 = vadd.f32 %v1670, %v1707
      %v1710 = vadd.f32 %v1671, %v1707
      %v1711 = vadd.f32 %v1672, %v1707
      %v1712 = vadd.f32 %v1673, %v1707
      %v1713 = vadd.f32 %v1674, %v1707
      %v1714 = vadd.f32 %v1675, %v1707
      %v1715 = vadd.f32 %v1676, %v1707
      %v1716 = vadd.f32 %v1677, %v1707
      %v1717 = vadd.f32 %v1678, %v1707
      %v1718 = vadd.f32 %v1679, %v1707
      %v1719 = vadd.f32 %v1680, %v1707
      %v1720 = vadd.f32 %v1681, %v1707
      %v1721 = vadd.f32 %v1682, %v1707
      %v1722 = vadd.f32 %v1683, %v1707
      %v1723 = vadd.f32 %v1684, %v1707
      %v1724 = vadd.f32 %v1685, %v1707
      %v1725 = vadd.f32 %v1686, %v1707
      %v1726 = vadd.f32 %v1687, %v1707
      %v1727 = vadd.f32 %v1688, %v1707
      %v1728 = vadd.f32 %v1689, %v1707
      %v1729 = vadd.f32 %v1690, %v1707
      %v1730 = vadd.f32 %v1691, %v1707
      %v1731 = vadd.f32 %v1692, %v1707
      %v1732 = vadd.f32 %v1693, %v1707
      %v1733 = vadd.f32 %v1694, %v1707
      %v1734 = vadd.f32 %v1695, %v1707
      %v1735 = vadd.f32 %v1696, %v1707
      %v1736 = vadd.f32 %v1697, %v1707
      %v1737 = vadd.f32 %v1698, %v1707
      %v1738 = vadd.f32 %v1699, %v1707
      %v1739 = vadd.f32 %v1700, %v1707
      %v1740 = vadd.f32 %v1701, %v1707
      %v1741 = vmax.f32 %v1709, 0.0
      %v1742 = vmax.f32 %v1710, 0.0
      %v1743 = vmax.f32 %v1711, 0.0
      %v1744 = vmax.f32 %v1712, 0.0
      %v1745 = vmax.f32 %v1713, 0.0
      %v1746 = vmax.f32 %v1714, 0.0
      %v1747 = vmax.f32 %v1715, 0.0
      %v1748 = vmax.f32 %v1716, 0.0
      %v1749 = vmax.f32 %v1717, 0.0
      %v1750 = vmax.f32 %v1718, 0.0
      %v1751 = vmax.f32 %v1719, 0.0
      %v1752 = vmax.f32 %v1720, 0.0
      %v1753 = vmax.f32 %v1721, 0.0
      %v1754 = vmax.f32 %v1722, 0.0
      %v1755 = vmax.f32 %v1723, 0.0
      %v1756 = vmax.f32 %v1724, 0.0
      %v1757 = vmax.f32 %v1725, 0.0
      %v1758 = vmax.f32 %v1726, 0.0
      %v1759 = vmax.f32 %v1727, 0.0
      %v1760 = vmax.f32 %v1728, 0.0
      %v1761 = vmax.f32 %v1729, 0.0
      %v1762 = vmax.f32 %v1730, 0.0
      %v1763 = vmax.f32 %v1731, 0.0
      %v1764 = vmax.f32 %v1732, 0.0
      %v1765 = vmax.f32 %v1733, 0.0
      %v1766 = vmax.f32 %v1734, 0.0
      %v1767 = vmax.f32 %v1735, 0.0
      %v1768 = vmax.f32 %v1736, 0.0
      %v1769 = vmax.f32 %v1737, 0.0
      %v1770 = vmax.f32 %v1738, 0.0
      %v1771 = vmax.f32 %v1739, 0.0
      %v1772 = vmax.f32 %v1740, 0.0
      %v1773 = vmin.f32 %v1741, 6.0
      %v1774 = vmin.f32 %v1742, 6.0
      %v1775 = vmin.f32 %v1743, 6.0
      %v1776 = vmin.f32 %v1744, 6.0
      %v1777 = vmin.f32 %v1745, 6.0
      %v1778 = vmin.f32 %v1746, 6.0
      %v1779 = vmin.f32 %v1747, 6.0
      %v1780 = vmin.f32 %v1748, 6.0
      %v1781 = vmin.f32 %v1749, 6.0
      %v1782 = vmin.f32 %v1750, 6.0
      %v1783 = vmin.f32 %v1751, 6.0
      %v1784 = vmin.f32 %v1752, 6.0
      %v1785 = vmin.f32 %v1753, 6.0
      %v1786 = vmin.f32 %v1754, 6.0
      %v1787 = vmin.f32 %v1755, 6.0
      %v1788 = vmin.f32 %v1756, 6.0
      %v1789 = vmin.f32 %v1757, 6.0
      %v1790 = vmin.f32 %v1758, 6.0
      %v1791 = vmin.f32 %v1759, 6.0
      %v1792 = vmin.f32 %v1760, 6.0
      %v1793 = vmin.f32 %v1761, 6.0
      %v1794 = vmin.f32 %v1762, 6.0
      %v1795 = vmin.f32 %v1763, 6.0
      %v1796 = vmin.f32 %v1764, 6.0
      %v1797 = vmin.f32 %v1765, 6.0
      %v1798 = vmin.f32 %v1766, 6.0
      %v1799 = vmin.f32 %v1767, 6.0
      %v1800 = vmin.f32 %v1768, 6.0
      %v1801 = vmin.f32 %v1769, 6.0
      %v1802 = vmin.f32 %v1770, 6.0
      %v1803 = vmin.f32 %v1771, 6.0
      %v1804 = vmin.f32 %v1772, 6.0
      %v1805 = vld [vmem:[%s5] sm:$0xff]
      %v1806 = vld [vmem:[%s6] sm:$0x1]
      %v1808 = vlaneseq
      %v1809 = vshrl.u32 %v1808, 7
      %v1810 = vsub.s32 0, %v1809
      %v1811 = vrot.slane %v1806, %v1810
      %v1814 = vsel %vm709, %v1773, 0
      %v1817 = vsel %vm709, %v1774, 0
      %v1820 = vsel %vm709, %v1775, 0
      %v1823 = vsel %vm709, %v1776, 0
      %v1826 = vsel %vm709, %v1777, 0
      %v1829 = vsel %vm709, %v1778, 0
      %v1832 = vsel %vm709, %v1779, 0
      %v1835 = vsel %vm709, %v1780, 0
      %v1838 = vsel %vm709, %v1781, 0
      %v1841 = vsel %vm709, %v1782, 0
      %v1844 = vsel %vm709, %v1783, 0
      %v1847 = vsel %vm709, %v1784, 0
      %v1850 = vsel %vm709, %v1785, 0
      %v1853 = vsel %vm709, %v1786, 0
      %v1856 = vsel %vm709, %v1787, 0
      %v1859 = vsel %vm709, %v1788, 0
      %v1862 = vsel %vm709, %v1789, 0
      %v1865 = vsel %vm709, %v1790, 0
      %v1868 = vsel %vm709, %v1791, 0
      %v1871 = vsel %vm709, %v1792, 0
      %v1874 = vsel %vm709, %v1793, 0
      %v1877 = vsel %vm709, %v1794, 0
      %v1880 = vsel %vm709, %v1795, 0
      %v1883 = vsel %vm709, %v1796, 0
      %v1886 = vsel %vm709, %v1797, 0
      %v1889 = vsel %vm709, %v1798, 0
      %v1892 = vsel %vm709, %v1799, 0
      %v1895 = vsel %vm709, %v1800, 0
      %v1898 = vsel %vm709, %v1801, 0
      %v1901 = vsel %vm709, %v1802, 0
      %v1904 = vsel %vm709, %v1803, 0
      %v1907 = vsel %vm709, %v1804, 0
      %1909 = vmatprep.subr.mxu0 0.0
      %1910 = vmatpush1.msra.mxu0 0.0
      %1911 = vmatprep.subr.mxu0 0.0
      %1912 = vmatpush1.msra.mxu0 0.0
      %1913 = vmatprep.subr.mxu0 0.0
      %1914 = vmatpush1.msra.mxu0 0.0
      %1915 = vmatprep.subr.mxu0 0.0
      %1916 = vmatpush1.msra.mxu0 0.0
      %1917 = vmatprep.subr.mxu0 0.0
      %1918 = vmatpush1.msra.mxu0 0.0
      %1919 = vmatprep.subr.mxu0 0.0
      %1920 = vmatpush1.msra.mxu0 0.0
      %1921 = vmatprep.subr.mxu0 0.0
      %1922 = vmatpush1.msra.mxu0 0.0
      %1923 = vmatprep.subr.mxu0 0.0
      %1924 = vmatpush1.msra.mxu0 0.0
      %1925 = vmatprep.subr.mxu0 0.0
      %1926 = vmatpush1.msra.mxu0 0.0
      %1927 = vmatprep.subr.mxu0 0.0
      %1928 = vmatpush1.msra.mxu0 0.0
      %1929 = vmatprep.subr.mxu0 0.0
      %1930 = vmatpush1.msra.mxu0 0.0
      %1931 = vmatprep.subr.mxu0 0.0
      %1932 = vmatpush1.msra.mxu0 0.0
      %1933 = vmatprep.subr.mxu0 0.0
      %1934 = vmatpush1.msra.mxu0 0.0
      %1935 = vmatprep.subr.mxu0 0.0
      %1936 = vmatpush1.msra.mxu0 0.0
      %1937 = vmatprep.subr.mxu0 0.0
      %1938 = vmatpush1.msra.mxu0 0.0
      %1939 = vmatprep.subr.mxu0 0.0
      %1940 = vmatpush1.msra.mxu0 %v1805
      %1941 = vmatprep.subr.mxu0 0.0
      %1942 = vmatpush2.msra.mxu0 0.0
      %1943 = vmatprep.subr.mxu0 0.0
      %1944 = vmatpush2.msra.mxu0 0.0
      %1945 = vmatprep.subr.mxu0 0.0
      %1946 = vmatpush2.msra.mxu0 0.0
      %1947 = vmatprep.subr.mxu0 0.0
      %1948 = vmatpush2.msra.mxu0 0.0
      %1949 = vmatprep.subr.mxu0 0.0
      %1950 = vmatpush2.msra.mxu0 0.0
      %1951 = vmatprep.subr.mxu0 0.0
      %1952 = vmatpush2.msra.mxu0 0.0
      %1953 = vmatprep.subr.mxu0 0.0
      %1954 = vmatpush2.msra.mxu0 0.0
      %1955 = vmatprep.subr.mxu0 0.0
      %1956 = vmatpush2.msra.mxu0 0.0
      %1957 = vmatprep.subr.mxu0 0.0
      %1958 = vmatpush2.msra.mxu0 0.0
      %1959 = vmatprep.subr.mxu0 0.0
      %1960 = vmatpush2.msra.mxu0 0.0
      %1961 = vmatprep.subr.mxu0 0.0
      %1962 = vmatpush2.msra.mxu0 0.0
      %1963 = vmatprep.subr.mxu0 0.0
      %1964 = vmatpush2.msra.mxu0 0.0
      %1965 = vmatprep.subr.mxu0 0.0
      %1966 = vmatpush2.msra.mxu0 0.0
      %1967 = vmatprep.subr.mxu0 0.0
      %1968 = vmatpush2.msra.mxu0 0.0
      %1969 = vmatprep.subr.mxu0 0.0
      %1970 = vmatpush2.msra.mxu0 0.0
      %1971 = vmatprep.subr.mxu0 0.0
      %1972 = vmatpush2.msra.mxu0 0.0
      %1973 = vmatprep.mubr.f32.mxu0 0.0
      %1974 = vmatmul.mubr.f32.gmra.mxu0 %v1814
      %v1975 = vpop.f32.mrf.mxu0
      %v1976 = vadd.f32 %v1811, %v1975
      %v1977 = vpop.f32.mrf.mxu0
      %1978 = vmatprep.mubr.f32.mxu0 0.0
      %1979 = vmatmul.mubr.f32.gmra.mxu0 %v1817
      %v1980 = vpop.f32.mrf.mxu0
      %v1981 = vadd.f32 %v1811, %v1980
      %v1982 = vpop.f32.mrf.mxu0
      %1983 = vmatprep.mubr.f32.mxu0 0.0
      %1984 = vmatmul.mubr.f32.gmra.mxu0 %v1820
      %v1985 = vpop.f32.mrf.mxu0
      %v1986 = vadd.f32 %v1811, %v1985
      %v1987 = vpop.f32.mrf.mxu0
      %1988 = vmatprep.mubr.f32.mxu0 0.0
      %1989 = vmatmul.mubr.f32.gmra.mxu0 %v1823
      %v1990 = vpop.f32.mrf.mxu0
      %v1991 = vadd.f32 %v1811, %v1990
      %v1992 = vpop.f32.mrf.mxu0
      %1993 = vmatprep.mubr.f32.mxu0 0.0
      %1994 = vmatmul.mubr.f32.gmra.mxu0 %v1826
      %v1995 = vpop.f32.mrf.mxu0
      %v1996 = vadd.f32 %v1811, %v1995
      %v1997 = vpop.f32.mrf.mxu0
      %1998 = vmatprep.mubr.f32.mxu0 0.0
      %1999 = vmatmul.mubr.f32.gmra.mxu0 %v1829
      %v2000 = vpop.f32.mrf.mxu0
      %v2001 = vadd.f32 %v1811, %v2000
      %v2002 = vpop.f32.mrf.mxu0
      %2003 = vmatprep.mubr.f32.mxu0 0.0
      %2004 = vmatmul.mubr.f32.gmra.mxu0 %v1832
      %v2005 = vpop.f32.mrf.mxu0
      %v2006 = vadd.f32 %v1811, %v2005
      %v2007 = vpop.f32.mrf.mxu0
      %2008 = vmatprep.mubr.f32.mxu0 0.0
      %2009 = vmatmul.mubr.f32.gmra.mxu0 %v1835
      %v2010 = vpop.f32.mrf.mxu0
      %v2011 = vadd.f32 %v1811, %v2010
      %v2012 = vpop.f32.mrf.mxu0
      %2013 = vmatprep.mubr.f32.mxu0 0.0
      %2014 = vmatmul.mubr.f32.gmra.mxu0 %v1838
      %v2015 = vpop.f32.mrf.mxu0
      %v2016 = vadd.f32 %v1811, %v2015
      %v2017 = vpop.f32.mrf.mxu0
      %2018 = vmatprep.mubr.f32.mxu0 0.0
      %2019 = vmatmul.mubr.f32.gmra.mxu0 %v1841
      %v2020 = vpop.f32.mrf.mxu0
      %v2021 = vadd.f32 %v1811, %v2020
      %v2022 = vpop.f32.mrf.mxu0
      %2023 = vmatprep.mubr.f32.mxu0 0.0
      %2024 = vmatmul.mubr.f32.gmra.mxu0 %v1844
      %v2025 = vpop.f32.mrf.mxu0
      %v2026 = vadd.f32 %v1811, %v2025
      %v2027 = vpop.f32.mrf.mxu0
      %2028 = vmatprep.mubr.f32.mxu0 0.0
      %2029 = vmatmul.mubr.f32.gmra.mxu0 %v1847
      %v2030 = vpop.f32.mrf.mxu0
      %v2031 = vadd.f32 %v1811, %v2030
      %v2032 = vpop.f32.mrf.mxu0
      %2033 = vmatprep.mubr.f32.mxu0 0.0
      %2034 = vmatmul.mubr.f32.gmra.mxu0 %v1850
      %v2035 = vpop.f32.mrf.mxu0
      %v2036 = vadd.f32 %v1811, %v2035
      %v2037 = vpop.f32.mrf.mxu0
      %2038 = vmatprep.mubr.f32.mxu0 0.0
      %2039 = vmatmul.mubr.f32.gmra.mxu0 %v1853
      %v2040 = vpop.f32.mrf.mxu0
      %v2041 = vadd.f32 %v1811, %v2040
      %v2042 = vpop.f32.mrf.mxu0
      %2043 = vmatprep.mubr.f32.mxu0 0.0
      %2044 = vmatmul.mubr.f32.gmra.mxu0 %v1856
      %v2045 = vpop.f32.mrf.mxu0
      %v2046 = vadd.f32 %v1811, %v2045
      %v2047 = vpop.f32.mrf.mxu0
      %2048 = vmatprep.mubr.f32.mxu0 0.0
      %2049 = vmatmul.mubr.f32.gmra.mxu0 %v1859
      %v2050 = vpop.f32.mrf.mxu0
      %v2051 = vadd.f32 %v1811, %v2050
      %v2052 = vpop.f32.mrf.mxu0
      %2053 = vmatprep.mubr.f32.mxu0 0.0
      %2054 = vmatmul.mubr.f32.gmra.mxu0 %v1862
      %v2055 = vpop.f32.mrf.mxu0
      %v2056 = vadd.f32 %v1811, %v2055
      %v2057 = vpop.f32.mrf.mxu0
      %2058 = vmatprep.mubr.f32.mxu0 0.0
      %2059 = vmatmul.mubr.f32.gmra.mxu0 %v1865
      %v2060 = vpop.f32.mrf.mxu0
      %v2061 = vadd.f32 %v1811, %v2060
      %v2062 = vpop.f32.mrf.mxu0
      %2063 = vmatprep.mubr.f32.mxu0 0.0
      %2064 = vmatmul.mubr.f32.gmra.mxu0 %v1868
      %v2065 = vpop.f32.mrf.mxu0
      %v2066 = vadd.f32 %v1811, %v2065
      %v2067 = vpop.f32.mrf.mxu0
      %2068 = vmatprep.mubr.f32.mxu0 0.0
      %2069 = vmatmul.mubr.f32.gmra.mxu0 %v1871
      %v2070 = vpop.f32.mrf.mxu0
      %v2071 = vadd.f32 %v1811, %v2070
      %v2072 = vpop.f32.mrf.mxu0
      %2073 = vmatprep.mubr.f32.mxu0 0.0
      %2074 = vmatmul.mubr.f32.gmra.mxu0 %v1874
      %v2075 = vpop.f32.mrf.mxu0
      %v2076 = vadd.f32 %v1811, %v2075
      %v2077 = vpop.f32.mrf.mxu0
      %2078 = vmatprep.mubr.f32.mxu0 0.0
      %2079 = vmatmul.mubr.f32.gmra.mxu0 %v1877
      %v2080 = vpop.f32.mrf.mxu0
      %v2081 = vadd.f32 %v1811, %v2080
      %v2082 = vpop.f32.mrf.mxu0
      %2083 = vmatprep.mubr.f32.mxu0 0.0
      %2084 = vmatmul.mubr.f32.gmra.mxu0 %v1880
      %v2085 = vpop.f32.mrf.mxu0
      %v2086 = vadd.f32 %v1811, %v2085
      %v2087 = vpop.f32.mrf.mxu0
      %2088 = vmatprep.mubr.f32.mxu0 0.0
      %2089 = vmatmul.mubr.f32.gmra.mxu0 %v1883
      %v2090 = vpop.f32.mrf.mxu0
      %v2091 = vadd.f32 %v1811, %v2090
      %v2092 = vpop.f32.mrf.mxu0
      %2093 = vmatprep.mubr.f32.mxu0 0.0
      %2094 = vmatmul.mubr.f32.gmra.mxu0 %v1886
      %v2095 = vpop.f32.mrf.mxu0
      %v2096 = vadd.f32 %v1811, %v2095
      %v2097 = vpop.f32.mrf.mxu0
      %2098 = vmatprep.mubr.f32.mxu0 0.0
      %2099 = vmatmul.mubr.f32.gmra.mxu0 %v1889
      %v2100 = vpop.f32.mrf.mxu0
      %v2101 = vadd.f32 %v1811, %v2100
      %v2102 = vpop.f32.mrf.mxu0
      %2103 = vmatprep.mubr.f32.mxu0 0.0
      %2104 = vmatmul.mubr.f32.gmra.mxu0 %v1892
      %v2105 = vpop.f32.mrf.mxu0
      %v2106 = vadd.f32 %v1811, %v2105
      %v2107 = vpop.f32.mrf.mxu0
      %2108 = vmatprep.mubr.f32.mxu0 0.0
      %2109 = vmatmul.mubr.f32.gmra.mxu0 %v1895
      %v2110 = vpop.f32.mrf.mxu0
      %v2111 = vadd.f32 %v1811, %v2110
      %v2112 = vpop.f32.mrf.mxu0
      %2113 = vmatprep.mubr.f32.mxu0 0.0
      %2114 = vmatmul.mubr.f32.gmra.mxu0 %v1898
      %v2115 = vpop.f32.mrf.mxu0
      %v2116 = vadd.f32 %v1811, %v2115
      %v2117 = vpop.f32.mrf.mxu0
      %2118 = vmatprep.mubr.f32.mxu0 0.0
      %2119 = vmatmul.mubr.f32.gmra.mxu0 %v1901
      %v2120 = vpop.f32.mrf.mxu0
      %v2121 = vadd.f32 %v1811, %v2120
      %v2122 = vpop.f32.mrf.mxu0
      %2123 = vmatprep.mubr.f32.mxu0 0.0
      %2124 = vmatmul.mubr.f32.gmra.mxu0 %v1904
      %v2125 = vpop.f32.mrf.mxu0
      %v2126 = vadd.f32 %v1811, %v2125
      %v2127 = vpop.f32.mrf.mxu0
      %2128 = vmatprep.mubr.f32.mxu0 0.0
      %2129 = vmatmul.mubr.f32.gmra.mxu0 %v1907
      %v2130 = vpop.f32.mrf.mxu0
      %v2131 = vadd.f32 %v1811, %v2130
      %v2132 = vpop.f32.mrf.mxu0
      %2133 = vdwg.mxu0
      %2134 = vst.msk [vmem:[%s278] sm:$0xff] %vm709, %v1976
      %2135 = vst.msk [vmem:[%s278 + $0x8] sm:$0xff] %vm709, %v1981
      %2136 = vst.msk [vmem:[%s278 + $0x10] sm:$0xff] %vm709, %v1986
      %2137 = vst.msk [vmem:[%s278 + $0x18] sm:$0xff] %vm709, %v1991
      %2138 = vst.msk [vmem:[%s278 + $0x20] sm:$0xff] %vm709, %v1996
      %2139 = vst.msk [vmem:[%s278 + $0x28] sm:$0xff] %vm709, %v2001
      %2140 = vst.msk [vmem:[%s278 + $0x30] sm:$0xff] %vm709, %v2006
      %2141 = vst.msk [vmem:[%s278 + $0x38] sm:$0xff] %vm709, %v2011
      %2142 = vst.msk [vmem:[%s278 + $0x40] sm:$0xff] %vm709, %v2016
      %2143 = vst.msk [vmem:[%s278 + $0x48] sm:$0xff] %vm709, %v2021
      %2144 = vst.msk [vmem:[%s278 + $0x50] sm:$0xff] %vm709, %v2026
      %2145 = vst.msk [vmem:[%s278 + $0x58] sm:$0xff] %vm709, %v2031
      %2146 = vst.msk [vmem:[%s278 + $0x60] sm:$0xff] %vm709, %v2036
      %2147 = vst.msk [vmem:[%s278 + $0x68] sm:$0xff] %vm709, %v2041
      %2148 = vst.msk [vmem:[%s278 + $0x70] sm:$0xff] %vm709, %v2046
      %2149 = vst.msk [vmem:[%s278 + $0x78] sm:$0xff] %vm709, %v2051
      %2150 = vst.msk [vmem:[%s278 + $0x80] sm:$0xff] %vm709, %v2056
      %2151 = vst.msk [vmem:[%s278 + $0x88] sm:$0xff] %vm709, %v2061
      %2152 = vst.msk [vmem:[%s278 + $0x90] sm:$0xff] %vm709, %v2066
      %2153 = vst.msk [vmem:[%s278 + $0x98] sm:$0xff] %vm709, %v2071
      %2154 = vst.msk [vmem:[%s278 + $0xa0] sm:$0xff] %vm709, %v2076
      %2155 = vst.msk [vmem:[%s278 + $0xa8] sm:$0xff] %vm709, %v2081
      %2156 = vst.msk [vmem:[%s278 + $0xb0] sm:$0xff] %vm709, %v2086
      %2157 = vst.msk [vmem:[%s278 + $0xb8] sm:$0xff] %vm709, %v2091
      %2158 = vst.msk [vmem:[%s278 + $0xc0] sm:$0xff] %vm709, %v2096
      %2159 = vst.msk [vmem:[%s278 + $0xc8] sm:$0xff] %vm709, %v2101
      %2160 = vst.msk [vmem:[%s278 + $0xd0] sm:$0xff] %vm709, %v2106
      %2161 = vst.msk [vmem:[%s278 + $0xd8] sm:$0xff] %vm709, %v2111
      %2162 = vst.msk [vmem:[%s278 + $0xe0] sm:$0xff] %vm709, %v2116
      %2163 = vst.msk [vmem:[%s278 + $0xe8] sm:$0xff] %vm709, %v2121
      %2164 = vst.msk [vmem:[%s278 + $0xf0] sm:$0xff] %vm709, %v2126
      %2165 = vst.msk [vmem:[%s278 + $0xf8] sm:$0xff] %vm709, %v2131
      %p2166 = scmp.lt.s32.totalorder %s18, 1
      %s2167 = scalar_select %p2166, %s18, 1
      %s2168 = smul.addr %s2167, 32
      %s2169 = smul.addr %s2168, 8
      %s2170 = scalar_lea.vmem %s7, %s2169
      // Predicated region
      $region49: #{_lambda_.2} parent=47 // pred_check
        %p2171 = pneg %p188
      $region50: #{_lambda_.2} parent=47 // pred_check_branch
        %2173 = sbr.rel (%p2171) target = $region52
      $region51: #{_lambda_.2} parent=47 // pred_region
        _
      $region52: #{_lambda_.2} parent=47 // pred_fallthru
        _
    $region48: #{_lambda_.2} parent=5 // pred_fallthru
      _
    %p2174 = scmp.le.s32.totalorder 2, %s13
    // Predicated region
    $region53: #{_lambda_.2} parent=5 // pred_check
      %p2175 = pneg %p2174
    $region54: #{_lambda_.2} parent=5 // pred_check_branch
      %2177 = sbr.rel (%p2175) target = $region56
    $region55: #{_lambda_.2} parent=5 // pred_region
      %s2178 = ssub.s32 %s13, 2
      // Predicated region
      $region57: #{_lambda_.2} parent=55 // pred_check
        %p2179 = pneg %p194
      $region58: #{_lambda_.2} parent=55 // pred_check_branch
        %2181 = sbr.rel (%p2179) target = $region60
      $region59: #{_lambda_.2} parent=55 // pred_region
        %p2182 = scmp.lt.s32.totalorder %s19, 1
        %s2183 = scalar_select %p2182, %s19, 1
        %s2184 = smul.addr %s2183, 32
        %s2185 = smul.addr %s2184, 8
        %s2186 = scalar_lea.vmem %s7, %s2185
      $region60: #{_lambda_.2} parent=55 // pred_fallthru
        _
    $region56: #{_lambda_.2} parent=5 // pred_fallthru
      _
  $region6: #{_lambda_.2} parent=0 // loop_footer
    %s17 = sadd.s32 1, %s13
  $region7: #{_lambda_.2} parent=0 // loop_footer_branch
    %12 = sbr.rel target = $region3
  $region8: #{_lambda_.2} parent=0 // loop_exit
    _

</llo_original>
